<compile_context>
chip_gen: v7x
topology: tpu7x:2x2x1
jax: 0.10.0
libtpu: 0.0.40
codegen_flags: <defaults>
</compile_context>

<pallas_src>
import functools

import jax
import jax.numpy as jnp
from jax import lax
from jax.experimental import pallas as pl
from jax.experimental.pallas import tpu as pltpu

EXPANSION = 4
BN_EPS = 1e-5


# --------------------------------------------------------------------------
# Pallas kernel: one (batch, row-band) tile of the full bottleneck.
#
#   x_ref  : (1, 1, S, Cin)   f32, S = (TH+2)*(W+2): halo rows + W zero-pad
#   m_ref  : (1, S, 1)        f32, 1.0 inside the image, 0.0 on the pad ring
#   w1     : (Cin, P) bf16    s1,b1 : (1, P)  f32 folded BN1
#   w2     : (9, P, P) bf16   s2,b2 : (1, P)  f32 folded BN2
#   w3     : (P, 4P) bf16     s3,b3 : (1, 4P) f32 folded BN3
#   out_ref: (1, 1, TH*(W+2), 4P) f32   (extended width; host drops pad cols)
#   y1_scr : VMEM (S+2, P) f32 scratch (extra row top/bottom so every 3x3 tap
#            is one contiguous 2-D slice)
# --------------------------------------------------------------------------
def bottleneck_kernel(x_ref, m_ref,
                      w1_ref, s1_ref, b1_ref,
                      w2_ref, s2_ref, b2_ref,
                      w3_ref, s3_ref, b3_ref,
                      out_ref, y1_scr):
    s = x_ref.shape[2]                       # (TH+2) * (W+2)
    l_out = out_ref.shape[2]                 # TH * (W+2)
    wp = (s - l_out) // 2                    # W + 2
    planes = w1_ref.shape[1]

    x = x_ref[0, 0]                                                  # (S, Cin) f32

    # conv1 (1x1) + bn1 + relu, computed once per tile.  bf16 MXU, f32 accum.
    y1 = jnp.dot(x.astype(jnp.bfloat16), w1_ref[...],
                 preferred_element_type=jnp.float32)
    y1 = jnp.maximum(y1 * s1_ref[...] + b1_ref[...], 0.0)
    # zero the positions that are conv2's zero padding (image border / halo
    # rows outside the image) -- single mask multiply per tile.
    y1 = y1 * m_ref[0]

    # Stage y1 into the (+2)-row scratch so every 3x3 tap below is one
    # contiguous slice.  Rows 0 and S+1 are only ever read into discarded
    # (pad-column) outputs; zero them anyway for determinism.
    y1_scr[pl.ds(0, 1), :] = jnp.zeros((1, planes), jnp.float32)
    y1_scr[pl.ds(s + 1, 1), :] = jnp.zeros((1, planes), jnp.float32)
    y1_scr[pl.ds(1, s), :] = y1

    # conv2 (3x3, pad=1): 9 shifted-slice matmuls accumulated in f32.
    acc = jnp.zeros((l_out, planes), dtype=jnp.float32)
    for k in range(9):
        dy, dx = divmod(k, 3)
        tap = y1_scr[pl.ds(dy * wp + dx, l_out), :]
        acc = acc + jnp.dot(tap.astype(jnp.bfloat16), w2_ref[k],
                            preferred_element_type=jnp.float32)
    y2 = jnp.maximum(acc * s2_ref[...] + b2_ref[...], 0.0)           # bn2 + relu

    # conv3 (1x1) + bn3 + residual add + relu.
    y3 = jnp.dot(y2.astype(jnp.bfloat16), w3_ref[...],
                 preferred_element_type=jnp.float32)
    y3 = y3 * s3_ref[...] + b3_ref[...]
    residual = x[wp:wp + l_out, :]           # center rows of the f32 input tile
    out_ref[0, 0] = jnp.maximum(y3 + residual, 0.0)


# --------------------------------------------------------------------------
# Host-side glue: layout conversion, halo tiling, BN folding, pallas_call.
# --------------------------------------------------------------------------
def _fold_bn(gamma, beta, mean, var):
    scale = gamma / jnp.sqrt(var + BN_EPS)
    bias = beta - mean * scale
    return scale[None, :].astype(jnp.float32), bias[None, :].astype(jnp.float32)


def _pick_row_tile(h, w, cin, cout, budget_bytes=2 << 20):
    """Largest divisor of H whose halo'd f32 input tile stays under budget."""
    best = 1
    for th in range(1, h + 1):
        if h % th:
            continue
        if (th + 2) * (w + 2) * max(cin, cout) * 4 <= budget_bytes:
            best = th
    return best


@functools.partial(jax.jit, static_argnames=("row_tile",))
def bottleneck_pallas(x_nchw, params, row_tile=None):
    n, cin, h, w = x_nchw.shape
    planes = params["w1"].shape[0]
    cout = planes * EXPANSION
    assert cin == cout, "downsample=None requires inplanes == planes * expansion"

    th = int(row_tile) if row_tile is not None else _pick_row_tile(h, w, cin, cout)
    assert h % th == 0, f"row tile {th} must divide H={h}"
    num_ht = h // th
    wp = w + 2
    s = (th + 2) * wp
    l_out = th * wp

    # NCHW -> NHWC, spatial zero pad (for conv2's padding=1 and the H halo).
    x = jnp.transpose(x_nchw, (0, 2, 3, 1)).astype(jnp.float32)       # (N,H,W,C)
    xp = jnp.pad(x, ((0, 0), (1, 1), (1, 1), (0, 0)))                 # (N,H+2,W+2,C)

    # Row bands with a 1-row halo on each side, flattened to (S, Cin) slabs.
    x_tiles = jnp.stack([xp[:, j * th: j * th + th + 2] for j in range(num_ht)],
                        axis=1)                                       # (N,nt,TH+2,W+2,C)
    x_tiles = x_tiles.reshape(n, num_ht, s, cin)

    # Per-band mask: zero on the W pad columns, and on halo rows that fall
    # outside the image (top of first band / bottom of last band).
    col_valid = jnp.concatenate(
        [jnp.zeros((1,), jnp.float32), jnp.ones((w,), jnp.float32),
         jnp.zeros((1,), jnp.float32)])
    masks = []
    for j in range(num_ht):
        row_valid = jnp.ones((th + 2,), jnp.float32)
        if j == 0:
            row_valid = row_valid.at[0].set(0.0)
        if j == num_ht - 1:
            row_valid = row_valid.at[-1].set(0.0)
        masks.append((row_valid[:, None] * col_valid[None, :]).reshape(s, 1))
    mask_tiles = jnp.stack(masks)                                     # (nt, S, 1)

    # PyTorch-layout weights -> matmul layout (bf16) + folded BN (f32).
    w1 = params["w1"][:, :, 0, 0].T.astype(jnp.bfloat16)              # (Cin, P)
    w2 = jnp.stack([params["w2"][:, :, kh, kw].T
                    for kh in range(3) for kw in range(3)]).astype(jnp.bfloat16)
    w3 = params["w3"][:, :, 0, 0].T.astype(jnp.bfloat16)              # (P, 4P)
    s1, b1 = _fold_bn(params["g1"], params["be1"], params["m1"], params["v1"])
    s2, b2 = _fold_bn(params["g2"], params["be2"], params["m2"], params["v2"])
    s3, b3 = _fold_bn(params["g3"], params["be3"], params["m3"], params["v3"])

    resident2 = lambda nb, jb: (0, 0)
    in_specs = [
        pl.BlockSpec((1, 1, s, cin), lambda nb, jb: (nb, jb, 0, 0)),   # x band
        pl.BlockSpec((1, s, 1), lambda nb, jb: (jb, 0, 0)),            # mask
        pl.BlockSpec((cin, planes), resident2),                        # w1
        pl.BlockSpec((1, planes), resident2),                          # s1
        pl.BlockSpec((1, planes), resident2),                          # b1
        pl.BlockSpec((9, planes, planes), lambda nb, jb: (0, 0, 0)),   # w2
        pl.BlockSpec((1, planes), resident2),                          # s2
        pl.BlockSpec((1, planes), resident2),                          # b2
        pl.BlockSpec((planes, cout), resident2),                       # w3
        pl.BlockSpec((1, cout), resident2),                            # s3
        pl.BlockSpec((1, cout), resident2),                            # b3
    ]
    out_specs = pl.BlockSpec((1, 1, l_out, cout), lambda nb, jb: (nb, jb, 0, 0))

    out_ext = pl.pallas_call(
        bottleneck_kernel,
        out_shape=jax.ShapeDtypeStruct((n, num_ht, l_out, cout), jnp.float32),
        grid=(n, num_ht),
        in_specs=in_specs,
        out_specs=out_specs,
        scratch_shapes=[pltpu.VMEM((s + 2, planes), jnp.float32)],
        compiler_params=pltpu.CompilerParams(
            dimension_semantics=("parallel", "parallel")),
    )(x_tiles, mask_tiles, w1, s1, b1, w2, s2, b2, w3, s3, b3)

    # Drop the pad columns of the extended output, stitch bands, NHWC -> NCHW.
    out = out_ext.reshape(n, num_ht, th, wp, cout)[:, :, :, 1:w + 1, :]
    out = out.reshape(n, h, w, cout)
    return jnp.transpose(out, (0, 3, 1, 2))


# --------------------------------------------------------------------------
# References for validation.
# --------------------------------------------------------------------------
def _conv_nhwc(a, w_oihw, padding, cast_bf16=False):
    w_hwio = jnp.transpose(w_oihw, (2, 3, 1, 0))
    if cast_bf16:
        a = a.astype(jnp.bfloat16)
        w_hwio = w_hwio.astype(jnp.bfloat16)
    return lax.conv_general_dilated(
        a, w_hwio, window_strides=(1, 1), padding=padding,
        dimension_numbers=("NHWC", "HWIO", "NHWC"),
        preferred_element_type=jnp.float32)


def bottleneck_reference_f32(x_nchw, p):
    x = jnp.transpose(x_nchw, (0, 2, 3, 1)).astype(jnp.float32)

    def bn(y, g, b, m, v):
        return (y - m) / jnp.sqrt(v + BN_EPS) * g + b

    out = jnp.maximum(bn(_conv_nhwc(x, p["w1"], "VALID"),
                         p["g1"], p["be1"], p["m1"], p["v1"]), 0.0)
    out = jnp.maximum(bn(_conv_nhwc(out, p["w2"], [(1, 1), (1, 1)]),
                         p["g2"], p["be2"], p["m2"], p["v2"]), 0.0)
    out = bn(_conv_nhwc(out, p["w3"], "VALID"),
             p["g3"], p["be3"], p["m3"], p["v3"])
    return jnp.transpose(jnp.maximum(out + x, 0.0), (0, 3, 1, 2))


def bottleneck_reference_bf16(x_nchw, p):
    """Mirrors the kernel's bf16-matmul / f32-accum / folded-BN math."""
    x = jnp.transpose(x_nchw, (0, 2, 3, 1)).astype(jnp.float32)
    s1, b1 = _fold_bn(p["g1"], p["be1"], p["m1"], p["v1"])
    s2, b2 = _fold_bn(p["g2"], p["be2"], p["m2"], p["v2"])
    s3, b3 = _fold_bn(p["g3"], p["be3"], p["m3"], p["v3"])
    y = jnp.maximum(_conv_nhwc(x, p["w1"], "VALID", True) * s1 + b1, 0.0)
    y = jnp.maximum(_conv_nhwc(y, p["w2"], [(1, 1), (1, 1)], True) * s2 + b2, 0.0)
    y = _conv_nhwc(y, p["w3"], "VALID", True) * s3 + b3
    return jnp.transpose(jnp.maximum(y + x, 0.0), (0, 3, 1, 2))


# --------------------------------------------------------------------------
def init_params(key, inplanes, planes):
    ks = jax.random.split(key, 6)
    cout = planes * EXPANSION

    def bn_init(k, c):
        k1, k2, k3, k4 = jax.random.split(k, 4)
        return (jax.random.uniform(k1, (c,), minval=0.5, maxval=1.5),
                0.1 * jax.random.normal(k2, (c,)),
                0.1 * jax.random.normal(k3, (c,)),
                jax.random.uniform(k4, (c,), minval=0.5, maxval=1.5))

    g1, be1, m1, v1 = bn_init(ks[3], planes)
    g2, be2, m2, v2 = bn_init(ks[4], planes)
    g3, be3, m3, v3 = bn_init(ks[5], cout)
    return dict(
        w1=0.1 * jax.random.normal(ks[0], (planes, inplanes, 1, 1)),
        w2=0.1 * jax.random.normal(ks[1], (planes, planes, 3, 3)),
        w3=0.1 * jax.random.normal(ks[2], (cout, planes, 1, 1)),
        g1=g1, be1=be1, m1=m1, v1=v1,
        g2=g2, be2=be2, m2=m2, v2=v2,
        g3=g3, be3=be3, m3=m3, v3=v3,
    )


def _check(x, params, row_tile):
    out = jax.block_until_ready(bottleneck_pallas(x, params, row_tile=row_tile))
    ref_bf16 = jax.block_until_ready(bottleneck_reference_bf16(x, params))
    ref_f32 = jax.block_until_ready(bottleneck_reference_f32(x, params))
    assert out.shape == ref_f32.shape, (out.shape, ref_f32.shape)
    if not jnp.allclose(out, ref_bf16, atol=2e-3, rtol=2e-3):
        raise AssertionError(
            f"mismatch vs bf16 reference, max abs err = "
            f"{jnp.max(jnp.abs(out - ref_bf16))}")
    if not jnp.allclose(out, ref_f32, atol=7e-2, rtol=7e-2):
        raise AssertionError(
            f"mismatch vs f32 reference, max abs err = "
            f"{jnp.max(jnp.abs(out - ref_f32))}")


if __name__ == "__main__":
    key = jax.random.PRNGKey(0)
    k1, k2, k3, k4 = jax.random.split(key, 4)

    # Config 1: inplanes = planes * expansion (required for downsample=None).
    N, INPLANES, H, W = 2, 16, 16, 16
    PLANES = INPLANES // EXPANSION
    x1 = jax.random.normal(k1, (N, INPLANES, H, W), dtype=jnp.float32)
    p1 = init_params(k2, INPLANES, PLANES)
    _check(x1, p1, row_tile=8)          # 2 row bands per image (exercises halo)

    # Config 2: different channel/spatial sizes, default (auto) row tiling.
    x2 = jax.random.normal(k3, (1, 32, 8, 8), dtype=jnp.float32)
    p2 = init_params(k4, 32, 8)
    _check(x2, p2, row_tile=None)

    print("KERNEL_OK")
</pallas_src>

<mosaic_0001>
module attributes {stable_mosaic.version = 11 : i64} {
  func.func @bottleneck_kernel(%arg0: i32, %arg1: i32, %arg2: memref<1x1x180x16xf32, #tpu.memory_space<vmem>>, %arg3: memref<1x180x1xf32, #tpu.memory_space<vmem>>, %arg4: memref<16x4xbf16, #tpu.memory_space<vmem>>, %arg5: memref<1x4xf32, #tpu.memory_space<vmem>>, %arg6: memref<1x4xf32, #tpu.memory_space<vmem>>, %arg7: memref<9x4x4xbf16, #tpu.memory_space<vmem>>, %arg8: memref<1x4xf32, #tpu.memory_space<vmem>>, %arg9: memref<1x4xf32, #tpu.memory_space<vmem>>, %arg10: memref<4x16xbf16, #tpu.memory_space<vmem>>, %arg11: memref<1x16xf32, #tpu.memory_space<vmem>>, %arg12: memref<1x16xf32, #tpu.memory_space<vmem>>, %arg13: memref<1x1x144x16xf32, #tpu.memory_space<vmem>>, %arg14: memref<182x4xf32, #tpu.memory_space<vmem>>) attributes {dimension_semantics = [#tpu.dimension_semantics<parallel>, #tpu.dimension_semantics<parallel>], iteration_bounds = array<i64: 2, 2>, scalar_prefetch = 0 : i64, scratch_operands = 1 : i64, tpu.core_type = #tpu.core_type<tc>, window_params = [{transform_indices = @transform_0, window_bounds = array<i64: 1, 1, 180, 16>}, {transform_indices = @transform_1, window_bounds = array<i64: 1, 180, 1>}, {pipeline_mode = #tpu.pipeline_mode<synchronous>, transform_indices = @transform_2, window_bounds = array<i64: 16, 4>}, {pipeline_mode = #tpu.pipeline_mode<synchronous>, transform_indices = @transform_3, window_bounds = array<i64: 1, 4>}, {pipeline_mode = #tpu.pipeline_mode<synchronous>, transform_indices = @transform_4, window_bounds = array<i64: 1, 4>}, {pipeline_mode = #tpu.pipeline_mode<synchronous>, transform_indices = @transform_5, window_bounds = array<i64: 9, 4, 4>}, {pipeline_mode = #tpu.pipeline_mode<synchronous>, transform_indices = @transform_6, window_bounds = array<i64: 1, 4>}, {pipeline_mode = #tpu.pipeline_mode<synchronous>, transform_indices = @transform_7, window_bounds = array<i64: 1, 4>}, {pipeline_mode = #tpu.pipeline_mode<synchronous>, transform_indices = @transform_8, window_bounds = array<i64: 4, 16>}, {pipeline_mode = #tpu.pipeline_mode<synchronous>, transform_indices = @transform_9, window_bounds = array<i64: 1, 16>}, {pipeline_mode = #tpu.pipeline_mode<synchronous>, transform_indices = @transform_10, window_bounds = array<i64: 1, 16>}, {transform_indices = @transform_11, window_bounds = array<i64: 1, 1, 144, 16>}]} {
    %c0 = arith.constant 0 : index
    %c0_0 = arith.constant 0 : index
    %c0_1 = arith.constant 0 : index
    %c0_2 = arith.constant 0 : index
    %0 = vector.load %arg2[%c0, %c0_0, %c0_1, %c0_2] : memref<1x1x180x16xf32, #tpu.memory_space<vmem>>, vector<1x1x180x16xf32>
    %1 = vector.shape_cast %0 : vector<1x1x180x16xf32> to vector<180x16xf32>
    %2 = arith.truncf %1 : vector<180x16xf32> to vector<180x16xbf16>
    %c0_3 = arith.constant 0 : index
    %c0_4 = arith.constant 0 : index
    %3 = vector.load %arg4[%c0_3, %c0_4] : memref<16x4xbf16, #tpu.memory_space<vmem>>, vector<16x4xbf16>
    %cst = arith.constant dense<0.000000e+00> : vector<180x4xf32>
    %4 = tpu.matmul %2, %3, %cst {dimension_numbers = #tpu.dot_dimension_numbers<[1], [0], [0], [1], [0, 0, 1, 1], [], []>} : vector<180x16xbf16>, vector<16x4xbf16>, vector<180x4xf32> -> vector<180x4xf32>
    %c0_5 = arith.constant 0 : index
    %c0_6 = arith.constant 0 : index
    %5 = vector.load %arg5[%c0_5, %c0_6] : memref<1x4xf32, #tpu.memory_space<vmem>>, vector<1x4xf32>
    %6 = vector.broadcast %5 : vector<1x4xf32> to vector<180x4xf32>
    %7 = arith.mulf %4, %6 : vector<180x4xf32>
    %c0_7 = arith.constant 0 : index
    %c0_8 = arith.constant 0 : index
    %8 = vector.load %arg6[%c0_7, %c0_8] : memref<1x4xf32, #tpu.memory_space<vmem>>, vector<1x4xf32>
    %9 = vector.broadcast %8 : vector<1x4xf32> to vector<180x4xf32>
    %10 = arith.addf %7, %9 : vector<180x4xf32>
    %cst_9 = arith.constant 0.000000e+00 : f32
    %11 = vector.broadcast %cst_9 : f32 to vector<180x4xf32>
    %12 = arith.maximumf %10, %11 : vector<180x4xf32>
    %c0_10 = arith.constant 0 : index
    %c0_11 = arith.constant 0 : index
    %c0_12 = arith.constant 0 : index
    %13 = vector.load %arg3[%c0_10, %c0_11, %c0_12] : memref<1x180x1xf32, #tpu.memory_space<vmem>>, vector<1x180x1xf32>
    %14 = vector.shape_cast %13 : vector<1x180x1xf32> to vector<180x1xf32>
    %15 = vector.broadcast %14 : vector<180x1xf32> to vector<180x4xf32>
    %16 = arith.mulf %12, %15 : vector<180x4xf32>
    %cst_13 = arith.constant 0.000000e+00 : f32
    %17 = vector.broadcast %cst_13 : f32 to vector<1x4xf32>
    %c0_14 = arith.constant 0 : index
    %c0_15 = arith.constant 0 : index
    %18 = vector.load %arg14[%c0_14, %c0_15] : memref<182x4xf32, #tpu.memory_space<vmem>>, vector<1x4xf32>
    tpu.vector_store %arg14[%c0_14, %c0_15], %17 {strides = array<i32>} : memref<182x4xf32, #tpu.memory_space<vmem>>, vector<1x4xf32>,
    %cst_16 = arith.constant 0.000000e+00 : f32
    %19 = vector.broadcast %cst_16 : f32 to vector<1x4xf32>
    %c181 = arith.constant 181 : index
    %c0_17 = arith.constant 0 : index
    %20 = vector.load %arg14[%c181, %c0_17] : memref<182x4xf32, #tpu.memory_space<vmem>>, vector<1x4xf32>
    tpu.vector_store %arg14[%c181, %c0_17], %19 {strides = array<i32>} : memref<182x4xf32, #tpu.memory_space<vmem>>, vector<1x4xf32>,
    %c1 = arith.constant 1 : index
    %c0_18 = arith.constant 0 : index
    %21 = vector.load %arg14[%c1, %c0_18] : memref<182x4xf32, #tpu.memory_space<vmem>>, vector<180x4xf32>
    tpu.vector_store %arg14[%c1, %c0_18], %16 {strides = array<i32>} : memref<182x4xf32, #tpu.memory_space<vmem>>, vector<180x4xf32>,
    %cst_19 = arith.constant 0.000000e+00 : f32
    %22 = vector.broadcast %cst_19 : f32 to vector<144x4xf32>
    %c0_20 = arith.constant 0 : index
    %c0_21 = arith.constant 0 : index
    %23 = vector.load %arg14[%c0_20, %c0_21] : memref<182x4xf32, #tpu.memory_space<vmem>>, vector<144x4xf32>
    %24 = arith.truncf %23 : vector<144x4xf32> to vector<144x4xbf16>
    %c0_22 = arith.constant 0 : index
    %c0_23 = arith.constant 0 : index
    %c0_24 = arith.constant 0 : index
    %25 = vector.load %arg7[%c0_22, %c0_23, %c0_24] : memref<9x4x4xbf16, #tpu.memory_space<vmem>>, vector<1x4x4xbf16>
    %26 = vector.shape_cast %25 : vector<1x4x4xbf16> to vector<4x4xbf16>
    %cst_25 = arith.constant dense<0.000000e+00> : vector<144x4xf32>
    %27 = tpu.matmul %24, %26, %cst_25 {dimension_numbers = #tpu.dot_dimension_numbers<[1], [0], [0], [1], [0, 0, 1, 1], [], []>} : vector<144x4xbf16>, vector<4x4xbf16>, vector<144x4xf32> -> vector<144x4xf32>
    %28 = arith.addf %22, %27 : vector<144x4xf32>
    %c1_26 = arith.constant 1 : index
    %c0_27 = arith.constant 0 : index
    %29 = vector.load %arg14[%c1_26, %c0_27] : memref<182x4xf32, #tpu.memory_space<vmem>>, vector<144x4xf32>
    %30 = arith.truncf %29 : vector<144x4xf32> to vector<144x4xbf16>
    %c1_28 = arith.constant 1 : index
    %c0_29 = arith.constant 0 : index
    %c0_30 = arith.constant 0 : index
    %31 = vector.load %arg7[%c1_28, %c0_29, %c0_30] : memref<9x4x4xbf16, #tpu.memory_space<vmem>>, vector<1x4x4xbf16>
    %32 = vector.shape_cast %31 : vector<1x4x4xbf16> to vector<4x4xbf16>
    %cst_31 = arith.constant dense<0.000000e+00> : vector<144x4xf32>
    %33 = tpu.matmul %30, %32, %cst_31 {dimension_numbers = #tpu.dot_dimension_numbers<[1], [0], [0], [1], [0, 0, 1, 1], [], []>} : vector<144x4xbf16>, vector<4x4xbf16>, vector<144x4xf32> -> vector<144x4xf32>
    %34 = arith.addf %28, %33 : vector<144x4xf32>
    %c2 = arith.constant 2 : index
    %c0_32 = arith.constant 0 : index
    %35 = vector.load %arg14[%c2, %c0_32] : memref<182x4xf32, #tpu.memory_space<vmem>>, vector<144x4xf32>
    %36 = arith.truncf %35 : vector<144x4xf32> to vector<144x4xbf16>
    %c2_33 = arith.constant 2 : index
    %c0_34 = arith.constant 0 : index
    %c0_35 = arith.constant 0 : index
    %37 = vector.load %arg7[%c2_33, %c0_34, %c0_35] : memref<9x4x4xbf16, #tpu.memory_space<vmem>>, vector<1x4x4xbf16>
    %38 = vector.shape_cast %37 : vector<1x4x4xbf16> to vector<4x4xbf16>
    %cst_36 = arith.constant dense<0.000000e+00> : vector<144x4xf32>
    %39 = tpu.matmul %36, %38, %cst_36 {dimension_numbers = #tpu.dot_dimension_numbers<[1], [0], [0], [1], [0, 0, 1, 1], [], []>} : vector<144x4xbf16>, vector<4x4xbf16>, vector<144x4xf32> -> vector<144x4xf32>
    %40 = arith.addf %34, %39 : vector<144x4xf32>
    %c18 = arith.constant 18 : index
    %c0_37 = arith.constant 0 : index
    %41 = vector.load %arg14[%c18, %c0_37] : memref<182x4xf32, #tpu.memory_space<vmem>>, vector<144x4xf32>
    %42 = arith.truncf %41 : vector<144x4xf32> to vector<144x4xbf16>
    %c3 = arith.constant 3 : index
    %c0_38 = arith.constant 0 : index
    %c0_39 = arith.constant 0 : index
    %43 = vector.load %arg7[%c3, %c0_38, %c0_39] : memref<9x4x4xbf16, #tpu.memory_space<vmem>>, vector<1x4x4xbf16>
    %44 = vector.shape_cast %43 : vector<1x4x4xbf16> to vector<4x4xbf16>
    %cst_40 = arith.constant dense<0.000000e+00> : vector<144x4xf32>
    %45 = tpu.matmul %42, %44, %cst_40 {dimension_numbers = #tpu.dot_dimension_numbers<[1], [0], [0], [1], [0, 0, 1, 1], [], []>} : vector<144x4xbf16>, vector<4x4xbf16>, vector<144x4xf32> -> vector<144x4xf32>
    %46 = arith.addf %40, %45 : vector<144x4xf32>
    %c19 = arith.constant 19 : index
    %c0_41 = arith.constant 0 : index
    %47 = vector.load %arg14[%c19, %c0_41] : memref<182x4xf32, #tpu.memory_space<vmem>>, vector<144x4xf32>
    %48 = arith.truncf %47 : vector<144x4xf32> to vector<144x4xbf16>
    %c4 = arith.constant 4 : index
    %c0_42 = arith.constant 0 : index
    %c0_43 = arith.constant 0 : index
    %49 = vector.load %arg7[%c4, %c0_42, %c0_43] : memref<9x4x4xbf16, #tpu.memory_space<vmem>>, vector<1x4x4xbf16>
    %50 = vector.shape_cast %49 : vector<1x4x4xbf16> to vector<4x4xbf16>
    %cst_44 = arith.constant dense<0.000000e+00> : vector<144x4xf32>
    %51 = tpu.matmul %48, %50, %cst_44 {dimension_numbers = #tpu.dot_dimension_numbers<[1], [0], [0], [1], [0, 0, 1, 1], [], []>} : vector<144x4xbf16>, vector<4x4xbf16>, vector<144x4xf32> -> vector<144x4xf32>
    %52 = arith.addf %46, %51 : vector<144x4xf32>
    %c20 = arith.constant 20 : index
    %c0_45 = arith.constant 0 : index
    %53 = vector.load %arg14[%c20, %c0_45] : memref<182x4xf32, #tpu.memory_space<vmem>>, vector<144x4xf32>
    %54 = arith.truncf %53 : vector<144x4xf32> to vector<144x4xbf16>
    %c5 = arith.constant 5 : index
    %c0_46 = arith.constant 0 : index
    %c0_47 = arith.constant 0 : index
    %55 = vector.load %arg7[%c5, %c0_46, %c0_47] : memref<9x4x4xbf16, #tpu.memory_space<vmem>>, vector<1x4x4xbf16>
    %56 = vector.shape_cast %55 : vector<1x4x4xbf16> to vector<4x4xbf16>
    %cst_48 = arith.constant dense<0.000000e+00> : vector<144x4xf32>
    %57 = tpu.matmul %54, %56, %cst_48 {dimension_numbers = #tpu.dot_dimension_numbers<[1], [0], [0], [1], [0, 0, 1, 1], [], []>} : vector<144x4xbf16>, vector<4x4xbf16>, vector<144x4xf32> -> vector<144x4xf32>
    %58 = arith.addf %52, %57 : vector<144x4xf32>
    %c36 = arith.constant 36 : index
    %c0_49 = arith.constant 0 : index
    %59 = vector.load %arg14[%c36, %c0_49] : memref<182x4xf32, #tpu.memory_space<vmem>>, vector<144x4xf32>
    %60 = arith.truncf %59 : vector<144x4xf32> to vector<144x4xbf16>
    %c6 = arith.constant 6 : index
    %c0_50 = arith.constant 0 : index
    %c0_51 = arith.constant 0 : index
    %61 = vector.load %arg7[%c6, %c0_50, %c0_51] : memref<9x4x4xbf16, #tpu.memory_space<vmem>>, vector<1x4x4xbf16>
    %62 = vector.shape_cast %61 : vector<1x4x4xbf16> to vector<4x4xbf16>
    %cst_52 = arith.constant dense<0.000000e+00> : vector<144x4xf32>
    %63 = tpu.matmul %60, %62, %cst_52 {dimension_numbers = #tpu.dot_dimension_numbers<[1], [0], [0], [1], [0, 0, 1, 1], [], []>} : vector<144x4xbf16>, vector<4x4xbf16>, vector<144x4xf32> -> vector<144x4xf32>
    %64 = arith.addf %58, %63 : vector<144x4xf32>
    %c37 = arith.constant 37 : index
    %c0_53 = arith.constant 0 : index
    %65 = vector.load %arg14[%c37, %c0_53] : memref<182x4xf32, #tpu.memory_space<vmem>>, vector<144x4xf32>
    %66 = arith.truncf %65 : vector<144x4xf32> to vector<144x4xbf16>
    %c7 = arith.constant 7 : index
    %c0_54 = arith.constant 0 : index
    %c0_55 = arith.constant 0 : index
    %67 = vector.load %arg7[%c7, %c0_54, %c0_55] : memref<9x4x4xbf16, #tpu.memory_space<vmem>>, vector<1x4x4xbf16>
    %68 = vector.shape_cast %67 : vector<1x4x4xbf16> to vector<4x4xbf16>
    %cst_56 = arith.constant dense<0.000000e+00> : vector<144x4xf32>
    %69 = tpu.matmul %66, %68, %cst_56 {dimension_numbers = #tpu.dot_dimension_numbers<[1], [0], [0], [1], [0, 0, 1, 1], [], []>} : vector<144x4xbf16>, vector<4x4xbf16>, vector<144x4xf32> -> vector<144x4xf32>
    %70 = arith.addf %64, %69 : vector<144x4xf32>
    %c38 = arith.constant 38 : index
    %c0_57 = arith.constant 0 : index
    %71 = vector.load %arg14[%c38, %c0_57] : memref<182x4xf32, #tpu.memory_space<vmem>>, vector<144x4xf32>
    %72 = arith.truncf %71 : vector<144x4xf32> to vector<144x4xbf16>
    %c8 = arith.constant 8 : index
    %c0_58 = arith.constant 0 : index
    %c0_59 = arith.constant 0 : index
    %73 = vector.load %arg7[%c8, %c0_58, %c0_59] : memref<9x4x4xbf16, #tpu.memory_space<vmem>>, vector<1x4x4xbf16>
    %74 = vector.shape_cast %73 : vector<1x4x4xbf16> to vector<4x4xbf16>
    %cst_60 = arith.constant dense<0.000000e+00> : vector<144x4xf32>
    %75 = tpu.matmul %72, %74, %cst_60 {dimension_numbers = #tpu.dot_dimension_numbers<[1], [0], [0], [1], [0, 0, 1, 1], [], []>} : vector<144x4xbf16>, vector<4x4xbf16>, vector<144x4xf32> -> vector<144x4xf32>
    %76 = arith.addf %70, %75 : vector<144x4xf32>
    %c0_61 = arith.constant 0 : index
    %c0_62 = arith.constant 0 : index
    %77 = vector.load %arg8[%c0_61, %c0_62] : memref<1x4xf32, #tpu.memory_space<vmem>>, vector<1x4xf32>
    %78 = vector.broadcast %77 : vector<1x4xf32> to vector<144x4xf32>
    %79 = arith.mulf %76, %78 : vector<144x4xf32>
    %c0_63 = arith.constant 0 : index
    %c0_64 = arith.constant 0 : index
    %80 = vector.load %arg9[%c0_63, %c0_64] : memref<1x4xf32, #tpu.memory_space<vmem>>, vector<1x4xf32>
    %81 = vector.broadcast %80 : vector<1x4xf32> to vector<144x4xf32>
    %82 = arith.addf %79, %81 : vector<144x4xf32>
    %cst_65 = arith.constant 0.000000e+00 : f32
    %83 = vector.broadcast %cst_65 : f32 to vector<144x4xf32>
    %84 = arith.maximumf %82, %83 : vector<144x4xf32>
    %85 = arith.truncf %84 : vector<144x4xf32> to vector<144x4xbf16>
    %c0_66 = arith.constant 0 : index
    %c0_67 = arith.constant 0 : index
    %86 = vector.load %arg10[%c0_66, %c0_67] : memref<4x16xbf16, #tpu.memory_space<vmem>>, vector<4x16xbf16>
    %cst_68 = arith.constant dense<0.000000e+00> : vector<144x16xf32>
    %87 = tpu.matmul %85, %86, %cst_68 {dimension_numbers = #tpu.dot_dimension_numbers<[1], [0], [0], [1], [0, 0, 1, 1], [], []>} : vector<144x4xbf16>, vector<4x16xbf16>, vector<144x16xf32> -> vector<144x16xf32>
    %c0_69 = arith.constant 0 : index
    %c0_70 = arith.constant 0 : index
    %88 = vector.load %arg11[%c0_69, %c0_70] : memref<1x16xf32, #tpu.memory_space<vmem>>, vector<1x16xf32>
    %89 = vector.broadcast %88 : vector<1x16xf32> to vector<144x16xf32>
    %90 = arith.mulf %87, %89 : vector<144x16xf32>
    %c0_71 = arith.constant 0 : index
    %c0_72 = arith.constant 0 : index
    %91 = vector.load %arg12[%c0_71, %c0_72] : memref<1x16xf32, #tpu.memory_space<vmem>>, vector<1x16xf32>
    %92 = vector.broadcast %91 : vector<1x16xf32> to vector<144x16xf32>
    %93 = arith.addf %90, %92 : vector<144x16xf32>
    %94 = vector.extract_strided_slice %1 {offsets = [18, 0], sizes = [144, 16], strides = [1, 1]} : vector<180x16xf32> to vector<144x16xf32>
    %95 = arith.addf %93, %94 : vector<144x16xf32>
    %cst_73 = arith.constant 0.000000e+00 : f32
    %96 = vector.broadcast %cst_73 : f32 to vector<144x16xf32>
    %97 = arith.maximumf %95, %96 : vector<144x16xf32>
    %c0_74 = arith.constant 0 : index
    %c0_75 = arith.constant 0 : index
    %c0_76 = arith.constant 0 : index
    %c0_77 = arith.constant 0 : index
    %98 = vector.load %arg13[%c0_74, %c0_75, %c0_76, %c0_77] : memref<1x1x144x16xf32, #tpu.memory_space<vmem>>, vector<1x1x144x16xf32>
    %99 = vector.shape_cast %98 : vector<1x1x144x16xf32> to vector<144x16xf32>
    %100 = vector.shape_cast %97 : vector<144x16xf32> to vector<1x1x144x16xf32>
    tpu.vector_store %arg13[%c0_74, %c0_75, %c0_76, %c0_77], %100 {strides = array<i32>} : memref<1x1x144x16xf32, #tpu.memory_space<vmem>>, vector<1x1x144x16xf32>,
    return
  }
  func.func @transform_0(%arg0: i32, %arg1: i32) -> (i32, i32, i32, i32) {
    %c0_i32 = arith.constant 0 : i32
    %c0_i32_0 = arith.constant 0 : i32
    %c0_i32_1 = arith.constant 0 : i32
    return %arg0, %arg1, %c0_i32, %c0_i32_0 : i32, i32, i32, i32
  }
  func.func @transform_1(%arg0: i32, %arg1: i32) -> (i32, i32, i32) {
    %c0_i32 = arith.constant 0 : i32
    %c0_i32_0 = arith.constant 0 : i32
    %c0_i32_1 = arith.constant 0 : i32
    return %arg1, %c0_i32, %c0_i32_0 : i32, i32, i32
  }
  func.func @transform_2(%arg0: i32, %arg1: i32) -> (i32, i32) {
    %c0_i32 = arith.constant 0 : i32
    %c0_i32_0 = arith.constant 0 : i32
    %c0_i32_1 = arith.constant 0 : i32
    return %c0_i32, %c0_i32_0 : i32, i32
  }
  func.func @transform_3(%arg0: i32, %arg1: i32) -> (i32, i32) {
    %c0_i32 = arith.constant 0 : i32
    %c0_i32_0 = arith.constant 0 : i32
    %c0_i32_1 = arith.constant 0 : i32
    return %c0_i32, %c0_i32_0 : i32, i32
  }
  func.func @transform_4(%arg0: i32, %arg1: i32) -> (i32, i32) {
    %c0_i32 = arith.constant 0 : i32
    %c0_i32_0 = arith.constant 0 : i32
    %c0_i32_1 = arith.constant 0 : i32
    return %c0_i32, %c0_i32_0 : i32, i32
  }
  func.func @transform_5(%arg0: i32, %arg1: i32) -> (i32, i32, i32) {
    %c0_i32 = arith.constant 0 : i32
    %c0_i32_0 = arith.constant 0 : i32
    %c0_i32_1 = arith.constant 0 : i32
    %c0_i32_2 = arith.constant 0 : i32
    return %c0_i32, %c0_i32_0, %c0_i32_1 : i32, i32, i32
  }
  func.func @transform_6(%arg0: i32, %arg1: i32) -> (i32, i32) {
    %c0_i32 = arith.constant 0 : i32
    %c0_i32_0 = arith.constant 0 : i32
    %c0_i32_1 = arith.constant 0 : i32
    return %c0_i32, %c0_i32_0 : i32, i32
  }
  func.func @transform_7(%arg0: i32, %arg1: i32) -> (i32, i32) {
    %c0_i32 = arith.constant 0 : i32
    %c0_i32_0 = arith.constant 0 : i32
    %c0_i32_1 = arith.constant 0 : i32
    return %c0_i32, %c0_i32_0 : i32, i32
  }
  func.func @transform_8(%arg0: i32, %arg1: i32) -> (i32, i32) {
    %c0_i32 = arith.constant 0 : i32
    %c0_i32_0 = arith.constant 0 : i32
    %c0_i32_1 = arith.constant 0 : i32
    return %c0_i32, %c0_i32_0 : i32, i32
  }
  func.func @transform_9(%arg0: i32, %arg1: i32) -> (i32, i32) {
    %c0_i32 = arith.constant 0 : i32
    %c0_i32_0 = arith.constant 0 : i32
    %c0_i32_1 = arith.constant 0 : i32
    return %c0_i32, %c0_i32_0 : i32, i32
  }
  func.func @transform_10(%arg0: i32, %arg1: i32) -> (i32, i32) {
    %c0_i32 = arith.constant 0 : i32
    %c0_i32_0 = arith.constant 0 : i32
    %c0_i32_1 = arith.constant 0 : i32
    return %c0_i32, %c0_i32_0 : i32, i32
  }
  func.func @transform_11(%arg0: i32, %arg1: i32) -> (i32, i32, i32, i32) {
    %c0_i32 = arith.constant 0 : i32
    %c0_i32_0 = arith.constant 0 : i32
    %c0_i32_1 = arith.constant 0 : i32
    return %arg0, %arg1, %c0_i32, %c0_i32_0 : i32, i32, i32, i32
  }
}

</mosaic_0001>

<llo_original>
// kernel: bottleneck_pallas.1
$region0: #{bottleneck_pallas.1}
  #allocation0 [shape = 'u32[]', space=smem, size = 0x4, offset = 0x4, fixed_abs, tag = 'smem constant byte address 0x4 - core index']
  #allocation1 [shape = 'u32[144,128]{1,0:T(1,128)}', space=vmem, size = 0x12000, scoped, tag = 'internal scratch']
  #allocation2 [shape = 'f32[182,4]{1,0:T(8,128)}', space=vmem, size = 0x17000, scoped, tag = 'scratch operand']
  %s0 = inlined_call_operand.vmem [shape: f32[2,2,180,16], index: 0, kind: input, shape index: {}]
  %s1 = inlined_call_operand.vmem [shape: f32[2,180,1], index: 1, kind: input, shape index: {}]
  %s2 = inlined_call_operand.vmem [shape: bf16[16,4], index: 2, kind: input, shape index: {}]
  %s3 = inlined_call_operand.vmem [shape: f32[1,4], index: 3, kind: input, shape index: {}]
  %s4 = inlined_call_operand.vmem [shape: f32[1,4], index: 4, kind: input, shape index: {}]
  %s5 = inlined_call_operand.vmem [shape: bf16[9,4,4], index: 5, kind: input, shape index: {}]
  %s6 = inlined_call_operand.vmem [shape: f32[1,4], index: 6, kind: input, shape index: {}]
  %s7 = inlined_call_operand.vmem [shape: f32[1,4], index: 7, kind: input, shape index: {}]
  %s8 = inlined_call_operand.vmem [shape: bf16[4,16], index: 8, kind: input, shape index: {}]
  %s9 = inlined_call_operand.vmem [shape: f32[1,16], index: 9, kind: input, shape index: {}]
  %s10 = inlined_call_operand.vmem [shape: f32[1,16], index: 10, kind: input, shape index: {}]
  %s11 = inlined_call_operand.vmem [shape: f32[2,2,144,16], index: 11, kind: output, shape index: {}]
  %s12 = sld [smem:[#allocation0]]
  $region77: #{bottleneck_pallas.1} parent=0
    _
  %s14 = ssub.s32 1, %s12
  %s15 = scalar_select 0, %s14, %s12
  loop: start=0, step=1, limit=6
  $region2: #{bottleneck_pallas.1} parent=0 // loop_pre_header
    _
  $region3: #{bottleneck_pallas.1} parent=0 // loop_header
    %s17 = sphi 0, %s21
    %p18 = scmp.ge.s32.totalorder %s17, 6
    %s24 = sphi 0, %s36
    %s25 = sphi 0, %s32
    %s26 = sphi 0, %s24
    %s27 = sphi 0, %s25
    %s28 = sphi 0, %s26
    %s29 = sphi 0, %s27
    %s41 = sphi 0, %s43
    %s44 = sphi 0, %s41
    %s45 = sphi 0, %s44
    %s61 = sphi 0, %s45
    %s67 = sphi 0, %s69
    %s70 = sphi 0, %s67
    %s71 = sphi 0, %s70
    %s87 = sphi 0, %s71
    %s91 = sphi 0, %s91
    %s93 = sphi 0, %s91
    %s94 = sphi 0, %s93
    %s108 = sphi 0, %s94
    %s112 = sphi 0, %s112
    %s114 = sphi 0, %s112
    %s115 = sphi 0, %s114
    %s129 = sphi 0, %s115
    %s133 = sphi 0, %s133
    %s135 = sphi 0, %s133
    %s136 = sphi 0, %s135
    %s150 = sphi 0, %s136
    %s154 = sphi 0, %s154
    %s156 = sphi 0, %s154
    %s157 = sphi 0, %s156
    %s171 = sphi 0, %s157
    %s175 = sphi 0, %s175
    %s177 = sphi 0, %s175
    %s178 = sphi 0, %s177
    %s192 = sphi 0, %s178
    %s196 = sphi 0, %s196
    %s198 = sphi 0, %s196
    %s199 = sphi 0, %s198
    %s213 = sphi 0, %s199
    %s217 = sphi 0, %s217
    %s219 = sphi 0, %s217
    %s220 = sphi 0, %s219
    %s234 = sphi 0, %s220
    %s238 = sphi 0, %s238
    %s240 = sphi 0, %s238
    %s241 = sphi 0, %s240
    %s255 = sphi 0, %s241
    %s259 = sphi 0, %s259
    %s261 = sphi 0, %s259
    %s262 = sphi 0, %s261
    %s276 = sphi 0, %s262
    %s284 = sphi 0, %s286
    %s287 = sphi 0, %s284
    %s288 = sphi 0, %s287
    %s304 = sphi 0, %s288
  $region4: #{bottleneck_pallas.1} parent=0 // loop_header_branch
    %20 = sbr.rel (%p18) target = $region8
  $region5: #{bottleneck_pallas.1} parent=0 // loop_body
    %s22 = ssub.s32 %s17, 1
    %s23 = ssub.s32 %s17, 2
    %s30 = sadd.s32 1, %s25
    %p31 = scmp.ge.s32.totalorder %s30, 2
    %s32 = scalar_select %p31, 0, %s30
    %s33 = sadd.s32 1, %s24
    %s34 = scalar_select %p31, %s33, %s24
    %p35 = scmp.ge.s32.totalorder %s34, 2
    %s36 = scalar_select %p35, 0, %s34
    %s37 = ssub.s32 %s24, %s36
    %s38 = ssub.s32 %s25, %s32
    %s39 = sor.u32 %s37, %s38
    %p40 = scmp.eq.s32.totalorder %s39, 0
    %s42 = sadd.s32 %s41, 1
    %s43 = scalar_select %p40, %s41, %s42
    %p46 = pneg %p40
    %p47 = scmp.eq.s32.totalorder %s17, 3
    %p48 = por %p46, %p47
    %p49 = scmp.ne.s32.totalorder %s41, %s44
    %p50 = scmp.eq.s32.totalorder %s17, 0
    %p51 = por %p49, %p50
    %p52 = scmp.ne.s32.totalorder %s41, %s44
    %p53 = scmp.eq.s32.totalorder %s22, 3
    %p54 = por %p52, %p53
    %p55 = scmp.ne.s32.totalorder %s44, %s45
    %p56 = scmp.eq.s32.totalorder %s22, 0
    %p57 = por %p55, %p56
    %p58 = scmp.ne.s32.totalorder %s44, %s45
    %p59 = scmp.eq.s32.totalorder %s23, 3
    %p60 = por %p58, %p59
    %p62 = scmp.ne.s32.totalorder %s45, %s61
    %p63 = scmp.eq.s32.totalorder %s23, 0
    %p64 = por %p62, %p63
    %s65 = ssub.s32 %s25, %s32
    %p66 = scmp.eq.s32.totalorder %s65, 0
    %s68 = sadd.s32 %s67, 1
    %s69 = scalar_select %p66, %s67, %s68
    %p72 = pneg %p66
    %p73 = scmp.eq.s32.totalorder %s17, 3
    %p74 = por %p72, %p73
    %p75 = scmp.ne.s32.totalorder %s67, %s70
    %p76 = scmp.eq.s32.totalorder %s17, 0
    %p77 = por %p75, %p76
    %p78 = scmp.ne.s32.totalorder %s67, %s70
    %p79 = scmp.eq.s32.totalorder %s22, 3
    %p80 = por %p78, %p79
    %p81 = scmp.ne.s32.totalorder %s70, %s71
    %p82 = scmp.eq.s32.totalorder %s22, 0
    %p83 = por %p81, %p82
    %p84 = scmp.ne.s32.totalorder %s70, %s71
    %p85 = scmp.eq.s32.totalorder %s23, 3
    %p86 = por %p84, %p85
    %p88 = scmp.ne.s32.totalorder %s71, %s87
    %p89 = scmp.eq.s32.totalorder %s23, 0
    %p90 = por %p88, %p89
    %s92 = sadd.s32 %s91, 1
    %p95 = scmp.eq.s32.totalorder %s17, 3
    %p96 = scmp.ne.s32.totalorder %s91, %s93
    %p97 = scmp.eq.s32.totalorder %s17, 0
    %p98 = por %p96, %p97
    %p99 = scmp.ne.s32.totalorder %s91, %s93
    %p100 = scmp.eq.s32.totalorder %s22, 3
    %p101 = por %p99, %p100
    %p102 = scmp.ne.s32.totalorder %s93, %s94
    %p103 = scmp.eq.s32.totalorder %s22, 0
    %p104 = por %p102, %p103
    %p105 = scmp.ne.s32.totalorder %s93, %s94
    %p106 = scmp.eq.s32.totalorder %s23, 3
    %p107 = por %p105, %p106
    %p109 = scmp.ne.s32.totalorder %s94, %s108
    %p110 = scmp.eq.s32.totalorder %s23, 0
    %p111 = por %p109, %p110
    %s113 = sadd.s32 %s112, 1
    %p116 = scmp.eq.s32.totalorder %s17, 3
    %p117 = scmp.ne.s32.totalorder %s112, %s114
    %p118 = scmp.eq.s32.totalorder %s17, 0
    %p119 = por %p117, %p118
    %p120 = scmp.ne.s32.totalorder %s112, %s114
    %p121 = scmp.eq.s32.totalorder %s22, 3
    %p122 = por %p120, %p121
    %p123 = scmp.ne.s32.totalorder %s114, %s115
    %p124 = scmp.eq.s32.totalorder %s22, 0
    %p125 = por %p123, %p124
    %p126 = scmp.ne.s32.totalorder %s114, %s115
    %p127 = scmp.eq.s32.totalorder %s23, 3
    %p128 = por %p126, %p127
    %p130 = scmp.ne.s32.totalorder %s115, %s129
    %p131 = scmp.eq.s32.totalorder %s23, 0
    %p132 = por %p130, %p131
    %s134 = sadd.s32 %s133, 1
    %p137 = scmp.eq.s32.totalorder %s17, 3
    %p138 = scmp.ne.s32.totalorder %s133, %s135
    %p139 = scmp.eq.s32.totalorder %s17, 0
    %p140 = por %p138, %p139
    %p141 = scmp.ne.s32.totalorder %s133, %s135
    %p142 = scmp.eq.s32.totalorder %s22, 3
    %p143 = por %p141, %p142
    %p144 = scmp.ne.s32.totalorder %s135, %s136
    %p145 = scmp.eq.s32.totalorder %s22, 0
    %p146 = por %p144, %p145
    %p147 = scmp.ne.s32.totalorder %s135, %s136
    %p148 = scmp.eq.s32.totalorder %s23, 3
    %p149 = por %p147, %p148
    %p151 = scmp.ne.s32.totalorder %s136, %s150
    %p152 = scmp.eq.s32.totalorder %s23, 0
    %p153 = por %p151, %p152
    %s155 = sadd.s32 %s154, 1
    %p158 = scmp.eq.s32.totalorder %s17, 3
    %p159 = scmp.ne.s32.totalorder %s154, %s156
    %p160 = scmp.eq.s32.totalorder %s17, 0
    %p161 = por %p159, %p160
    %p162 = scmp.ne.s32.totalorder %s154, %s156
    %p163 = scmp.eq.s32.totalorder %s22, 3
    %p164 = por %p162, %p163
    %p165 = scmp.ne.s32.totalorder %s156, %s157
    %p166 = scmp.eq.s32.totalorder %s22, 0
    %p167 = por %p165, %p166
    %p168 = scmp.ne.s32.totalorder %s156, %s157
    %p169 = scmp.eq.s32.totalorder %s23, 3
    %p170 = por %p168, %p169
    %p172 = scmp.ne.s32.totalorder %s157, %s171
    %p173 = scmp.eq.s32.totalorder %s23, 0
    %p174 = por %p172, %p173
    %s176 = sadd.s32 %s175, 1
    %p179 = scmp.eq.s32.totalorder %s17, 3
    %p180 = scmp.ne.s32.totalorder %s175, %s177
    %p181 = scmp.eq.s32.totalorder %s17, 0
    %p182 = por %p180, %p181
    %p183 = scmp.ne.s32.totalorder %s175, %s177
    %p184 = scmp.eq.s32.totalorder %s22, 3
    %p185 = por %p183, %p184
    %p186 = scmp.ne.s32.totalorder %s177, %s178
    %p187 = scmp.eq.s32.totalorder %s22, 0
    %p188 = por %p186, %p187
    %p189 = scmp.ne.s32.totalorder %s177, %s178
    %p190 = scmp.eq.s32.totalorder %s23, 3
    %p191 = por %p189, %p190
    %p193 = scmp.ne.s32.totalorder %s178, %s192
    %p194 = scmp.eq.s32.totalorder %s23, 0
    %p195 = por %p193, %p194
    %s197 = sadd.s32 %s196, 1
    %p200 = scmp.eq.s32.totalorder %s17, 3
    %p201 = scmp.ne.s32.totalorder %s196, %s198
    %p202 = scmp.eq.s32.totalorder %s17, 0
    %p203 = por %p201, %p202
    %p204 = scmp.ne.s32.totalorder %s196, %s198
    %p205 = scmp.eq.s32.totalorder %s22, 3
    %p206 = por %p204, %p205
    %p207 = scmp.ne.s32.totalorder %s198, %s199
    %p208 = scmp.eq.s32.totalorder %s22, 0
    %p209 = por %p207, %p208
    %p210 = scmp.ne.s32.totalorder %s198, %s199
    %p211 = scmp.eq.s32.totalorder %s23, 3
    %p212 = por %p210, %p211
    %p214 = scmp.ne.s32.totalorder %s199, %s213
    %p215 = scmp.eq.s32.totalorder %s23, 0
    %p216 = por %p214, %p215
    %s218 = sadd.s32 %s217, 1
    %p221 = scmp.eq.s32.totalorder %s17, 3
    %p222 = scmp.ne.s32.totalorder %s217, %s219
    %p223 = scmp.eq.s32.totalorder %s17, 0
    %p224 = por %p222, %p223
    %p225 = scmp.ne.s32.totalorder %s217, %s219
    %p226 = scmp.eq.s32.totalorder %s22, 3
    %p227 = por %p225, %p226
    %p228 = scmp.ne.s32.totalorder %s219, %s220
    %p229 = scmp.eq.s32.totalorder %s22, 0
    %p230 = por %p228, %p229
    %p231 = scmp.ne.s32.totalorder %s219, %s220
    %p232 = scmp.eq.s32.totalorder %s23, 3
    %p233 = por %p231, %p232
    %p235 = scmp.ne.s32.totalorder %s220, %s234
    %p236 = scmp.eq.s32.totalorder %s23, 0
    %p237 = por %p235, %p236
    %s239 = sadd.s32 %s238, 1
    %p242 = scmp.eq.s32.totalorder %s17, 3
    %p243 = scmp.ne.s32.totalorder %s238, %s240
    %p244 = scmp.eq.s32.totalorder %s17, 0
    %p245 = por %p243, %p244
    %p246 = scmp.ne.s32.totalorder %s238, %s240
    %p247 = scmp.eq.s32.totalorder %s22, 3
    %p248 = por %p246, %p247
    %p249 = scmp.ne.s32.totalorder %s240, %s241
    %p250 = scmp.eq.s32.totalorder %s22, 0
    %p251 = por %p249, %p250
    %p252 = scmp.ne.s32.totalorder %s240, %s241
    %p253 = scmp.eq.s32.totalorder %s23, 3
    %p254 = por %p252, %p253
    %p256 = scmp.ne.s32.totalorder %s241, %s255
    %p257 = scmp.eq.s32.totalorder %s23, 0
    %p258 = por %p256, %p257
    %s260 = sadd.s32 %s259, 1
    %p263 = scmp.eq.s32.totalorder %s17, 3
    %p264 = scmp.ne.s32.totalorder %s259, %s261
    %p265 = scmp.eq.s32.totalorder %s17, 0
    %p266 = por %p264, %p265
    %p267 = scmp.ne.s32.totalorder %s259, %s261
    %p268 = scmp.eq.s32.totalorder %s22, 3
    %p269 = por %p267, %p268
    %p270 = scmp.ne.s32.totalorder %s261, %s262
    %p271 = scmp.eq.s32.totalorder %s22, 0
    %p272 = por %p270, %p271
    %p273 = scmp.ne.s32.totalorder %s261, %s262
    %p274 = scmp.eq.s32.totalorder %s23, 3
    %p275 = por %p273, %p274
    %p277 = scmp.ne.s32.totalorder %s262, %s276
    %p278 = scmp.eq.s32.totalorder %s23, 0
    %p279 = por %p277, %p278
    %s280 = ssub.s32 %s24, %s36
    %s281 = ssub.s32 %s25, %s32
    %s282 = sor.u32 %s280, %s281
    %p283 = scmp.eq.s32.totalorder %s282, 0
    %s285 = sadd.s32 %s284, 1
    %s286 = scalar_select %p283, %s284, %s285
    %p289 = pneg %p283
    %p290 = scmp.eq.s32.totalorder %s17, 3
    %p291 = por %p289, %p290
    %p292 = scmp.ne.s32.totalorder %s284, %s287
    %p293 = scmp.eq.s32.totalorder %s17, 0
    %p294 = por %p292, %p293
    %p295 = scmp.ne.s32.totalorder %s284, %s287
    %p296 = scmp.eq.s32.totalorder %s22, 3
    %p297 = por %p295, %p296
    %p298 = scmp.ne.s32.totalorder %s287, %s288
    %p299 = scmp.eq.s32.totalorder %s22, 0
    %p300 = por %p298, %p299
    %p301 = scmp.ne.s32.totalorder %s287, %s288
    %p302 = scmp.eq.s32.totalorder %s23, 3
    %p303 = por %p301, %p302
    %p305 = scmp.ne.s32.totalorder %s288, %s304
    %p306 = scmp.eq.s32.totalorder %s23, 0
    %p307 = por %p305, %p306
    %p308 = scmp.le.s32.totalorder 1, %s17
    %p309 = scmp.lt.s32.totalorder %s17, 5
    %p310 = pnand %p308, %p309
    %p311 = pneg %p310
    // Predicated region
    $region9: #{bottleneck_pallas.1} parent=5 // pred_check
      _
    $region10: #{bottleneck_pallas.1} parent=5 // pred_check_branch
      %313 = sbr.rel (%p310) target = $region12
    $region11: #{bottleneck_pallas.1} parent=5 // pred_region
      %s314 = ssub.s32 %s17, 1
      // Predicated region
      $region13: #{bottleneck_pallas.1} parent=11 // pred_check
        %p315 = pneg %p104
      $region14: #{bottleneck_pallas.1} parent=11 // pred_check_branch
        %317 = sbr.rel (%p315) target = $region16
      $region15: #{bottleneck_pallas.1} parent=11 // pred_region
        _
      $region16: #{bottleneck_pallas.1} parent=11 // pred_fallthru
        _
      // Predicated region
      $region17: #{bottleneck_pallas.1} parent=11 // pred_check
        %p318 = pneg %p125
      $region18: #{bottleneck_pallas.1} parent=11 // pred_check_branch
        %320 = sbr.rel (%p318) target = $region20
      $region19: #{bottleneck_pallas.1} parent=11 // pred_region
        _
      $region20: #{bottleneck_pallas.1} parent=11 // pred_fallthru
        _
      // Predicated region
      $region21: #{bottleneck_pallas.1} parent=11 // pred_check
        %p321 = pneg %p146
      $region22: #{bottleneck_pallas.1} parent=11 // pred_check_branch
        %323 = sbr.rel (%p321) target = $region24
      $region23: #{bottleneck_pallas.1} parent=11 // pred_region
        _
      $region24: #{bottleneck_pallas.1} parent=11 // pred_fallthru
        _
      // Predicated region
      $region25: #{bottleneck_pallas.1} parent=11 // pred_check
        %p324 = pneg %p167
      $region26: #{bottleneck_pallas.1} parent=11 // pred_check_branch
        %326 = sbr.rel (%p324) target = $region28
      $region27: #{bottleneck_pallas.1} parent=11 // pred_region
        _
      $region28: #{bottleneck_pallas.1} parent=11 // pred_fallthru
        _
      // Predicated region
      $region29: #{bottleneck_pallas.1} parent=11 // pred_check
        %p327 = pneg %p188
      $region30: #{bottleneck_pallas.1} parent=11 // pred_check_branch
        %329 = sbr.rel (%p327) target = $region32
      $region31: #{bottleneck_pallas.1} parent=11 // pred_region
        _
      $region32: #{bottleneck_pallas.1} parent=11 // pred_fallthru
        _
      // Predicated region
      $region33: #{bottleneck_pallas.1} parent=11 // pred_check
        %p330 = pneg %p209
      $region34: #{bottleneck_pallas.1} parent=11 // pred_check_branch
        %332 = sbr.rel (%p330) target = $region36
      $region35: #{bottleneck_pallas.1} parent=11 // pred_region
        _
      $region36: #{bottleneck_pallas.1} parent=11 // pred_fallthru
        _
      // Predicated region
      $region37: #{bottleneck_pallas.1} parent=11 // pred_check
        %p333 = pneg %p230
      $region38: #{bottleneck_pallas.1} parent=11 // pred_check_branch
        %335 = sbr.rel (%p333) target = $region40
      $region39: #{bottleneck_pallas.1} parent=11 // pred_region
        _
      $region40: #{bottleneck_pallas.1} parent=11 // pred_fallthru
        _
      // Predicated region
      $region41: #{bottleneck_pallas.1} parent=11 // pred_check
        %p336 = pneg %p251
      $region42: #{bottleneck_pallas.1} parent=11 // pred_check_branch
        %338 = sbr.rel (%p336) target = $region44
      $region43: #{bottleneck_pallas.1} parent=11 // pred_region
        _
      $region44: #{bottleneck_pallas.1} parent=11 // pred_fallthru
        _
      // Predicated region
      $region45: #{bottleneck_pallas.1} parent=11 // pred_check
        %p339 = pneg %p272
      $region46: #{bottleneck_pallas.1} parent=11 // pred_check_branch
        %341 = sbr.rel (%p339) target = $region48
      $region47: #{bottleneck_pallas.1} parent=11 // pred_region
        _
      $region48: #{bottleneck_pallas.1} parent=11 // pred_fallthru
        _
    $region12: #{bottleneck_pallas.1} parent=5 // pred_fallthru
      _
    %p342 = scmp.lt.s32.totalorder %s17, 4
    // Predicated region
    $region49: #{bottleneck_pallas.1} parent=5 // pred_check
      %p343 = pneg %p342
    $region50: #{bottleneck_pallas.1} parent=5 // pred_check_branch
      %345 = sbr.rel (%p343) target = $region52
    $region51: #{bottleneck_pallas.1} parent=5 // pred_region
      // Predicated region
      $region53: #{bottleneck_pallas.1} parent=51 // pred_check
        %p346 = pneg %p51
      $region54: #{bottleneck_pallas.1} parent=51 // pred_check_branch
        %348 = sbr.rel (%p346) target = $region56
      $region55: #{bottleneck_pallas.1} parent=51 // pred_region
        %p349 = scmp.lt.s32.totalorder %s24, 1
        %s350 = scalar_select %p349, %s24, 1
        %p351 = scmp.lt.s32.totalorder %s25, 1
        %s352 = scalar_select %p351, %s25, 1
        %s353 = smul.addr %s352, 23
        %s354 = smul.addr %s350, 46
        %s355 = sadd.s32 %s353, %s354
        %s356 = smul.addr %s355, 8
        %s357 = scalar_lea.vmem %s0, %s356
      $region56: #{bottleneck_pallas.1} parent=51 // pred_fallthru
        _
      // Predicated region
      $region57: #{bottleneck_pallas.1} parent=51 // pred_check
        %p358 = pneg %p77
      $region58: #{bottleneck_pallas.1} parent=51 // pred_check_branch
        %360 = sbr.rel (%p358) target = $region60
      $region59: #{bottleneck_pallas.1} parent=51 // pred_region
        %p361 = scmp.lt.s32.totalorder %s25, 1
        %s362 = scalar_select %p361, %s25, 1
        %s363 = smul.addr %s362, 23
        %s364 = smul.addr %s363, 8
        %s365 = scalar_lea.vmem %s1, %s364
      $region60: #{bottleneck_pallas.1} parent=51 // pred_fallthru
        _
    $region52: #{bottleneck_pallas.1} parent=5 // pred_fallthru
      _
    %p366 = scmp.le.s32.totalorder 1, %s17
    %p367 = scmp.lt.s32.totalorder %s17, 5
    %p368 = pnand %p366, %p367
    %p369 = pneg %p368
    // Predicated region
    $region61: #{bottleneck_pallas.1} parent=5 // pred_check
      _
    $region62: #{bottleneck_pallas.1} parent=5 // pred_check_branch
      %371 = sbr.rel (%p368) target = $region64
    $region63: #{bottleneck_pallas.1} parent=5 // pred_region
      %s372 = ssub.s32 %s17, 1
      %p373 = scmp.lt.s32.totalorder %s26, 1
      %s374 = scalar_select %p373, %s26, 1
      %p375 = scmp.lt.s32.totalorder %s27, 1
      %s376 = scalar_select %p375, %s27, 1
      %s377 = smul.addr %s376, 23
      %s378 = smul.addr %s374, 46
      %s379 = sadd.s32 %s377, %s378
      %s380 = smul.addr %s379, 8
      %s381 = scalar_lea.vmem %s0, %s380
      %p382 = pneg %p57
      %p383 = pneg %p54
      %p384 = scmp.lt.s32.totalorder %s27, 1
      %s385 = scalar_select %p384, %s27, 1
      %s386 = smul.addr %s385, 23
      %s387 = smul.addr %s386, 8
      %s388 = scalar_lea.vmem %s1, %s387
      %p389 = pneg %p83
      %p390 = pneg %p80
      %p391 = pneg %p104
      %p392 = pneg %p101
      %p393 = pneg %p125
      %p394 = pneg %p122
      %p395 = pneg %p146
      %p396 = pneg %p143
      %p397 = pneg %p167
      %p398 = pneg %p164
      %p399 = pneg %p188
      %p400 = pneg %p185
      %p401 = pneg %p209
      %p402 = pneg %p206
      %p403 = pneg %p230
      %p404 = pneg %p227
      %p405 = pneg %p251
      %p406 = pneg %p248
      %p407 = pneg %p272
      %p408 = pneg %p269
      %p409 = pneg %p300
      %p410 = pneg %p297
      %p411 = scmp.lt.s32.totalorder %s26, 1
      %s412 = scalar_select %p411, %s26, 1
      %p413 = scmp.lt.s32.totalorder %s27, 1
      %s414 = scalar_select %p413, %s27, 1
      %s415 = smul.addr %s414, 18
      %s416 = smul.addr %s412, 36
      %s417 = sadd.s32 %s415, %s416
      %s418 = smul.addr %s417, 8
      %s419 = scalar_lea.vmem %s11, %s418
      %p420 = scmp.lt.s32.totalorder %s26, 1
      %s421 = scalar_select %p420, %s26, 1
      %p422 = scmp.lt.s32.totalorder %s27, 1
      %s423 = scalar_select %p422, %s27, 1
      %s424 = smul.addr %s423, 23
      %s425 = smul.addr %s421, 46
      %s426 = sadd.s32 %s424, %s425
      %s427 = smul.addr %s426, 8
      %s428 = scalar_lea.vmem %s0, %s427
      %p429 = scmp.lt.s32.totalorder %s27, 1
      %s430 = scalar_select %p429, %s27, 1
      %s431 = smul.addr %s430, 23
      %s432 = smul.addr %s431, 8
      %s433 = scalar_lea.vmem %s1, %s432
      %p434 = scmp.lt.s32.totalorder %s26, 1
      %s435 = scalar_select %p434, %s26, 1
      %p436 = scmp.lt.s32.totalorder %s27, 1
      %s437 = scalar_select %p436, %s27, 1
      %s438 = smul.addr %s437, 18
      %s439 = smul.addr %s435, 36
      %s440 = sadd.s32 %s438, %s439
      %s441 = smul.addr %s440, 8
      %s442 = scalar_lea.vmem %s11, %s441
      %v444 = vld [vmem:[%s428] sm:$0xff]
      %v445 = vld [vmem:[%s428 + $0x8] sm:$0xff]
      %v446 = vld [vmem:[%s428 + $0x10] sm:$0xff]
      %v447 = vld [vmem:[%s428 + $0x18] sm:$0xff]
      %v448 = vld [vmem:[%s428 + $0x20] sm:$0xff]
      %v449 = vld [vmem:[%s428 + $0x28] sm:$0xff]
      %v450 = vld [vmem:[%s428 + $0x30] sm:$0xff]
      %v451 = vld [vmem:[%s428 + $0x38] sm:$0xff]
      %v452 = vld [vmem:[%s428 + $0x40] sm:$0xff]
      %v453 = vld [vmem:[%s428 + $0x48] sm:$0xff]
      %v454 = vld [vmem:[%s428 + $0x50] sm:$0xff]
      %v455 = vld [vmem:[%s428 + $0x58] sm:$0xff]
      %v456 = vld [vmem:[%s428 + $0x60] sm:$0xff]
      %v457 = vld [vmem:[%s428 + $0x68] sm:$0xff]
      %v458 = vld [vmem:[%s428 + $0x70] sm:$0xff]
      %v459 = vld [vmem:[%s428 + $0x78] sm:$0xff]
      %v460 = vld [vmem:[%s428 + $0x80] sm:$0xff]
      %v461 = vld [vmem:[%s428 + $0x88] sm:$0xff]
      %v462 = vld [vmem:[%s428 + $0x90] sm:$0xff]
      %v463 = vld [vmem:[%s428 + $0x98] sm:$0xff]
      %v464 = vld [vmem:[%s428 + $0xa0] sm:$0xff]
      %v465 = vld [vmem:[%s428 + $0xa8] sm:$0xff]
      %v466 = vld [vmem:[%s428 + $0xb0] sm:$0xf]
      %v467 = vpack.c.bf16 %v445, %v444
      %v468 = vpack.c.bf16 %v447, %v446
      %v469 = vpack.c.bf16 %v449, %v448
      %v470 = vpack.c.bf16 %v451, %v450
      %v471 = vpack.c.bf16 %v453, %v452
      %v472 = vpack.c.bf16 %v455, %v454
      %v473 = vpack.c.bf16 %v457, %v456
      %v474 = vpack.c.bf16 %v459, %v458
      %v475 = vpack.c.bf16 %v461, %v460
      %v476 = vpack.c.bf16 %v463, %v462
      %v477 = vpack.c.bf16 %v465, %v464
      %v478 = vpack.c.bf16 %v466, %v466
      %v479 = vld [vmem:[%s2] sm:$0xf]
      %v480 = vld [vmem:[%s2 + $0x4] sm:$0xf]
      %v483 = vunpack.c.l.b16 %v479
      %v484 = vunpack.c.l.b16 %v480
      %v485 = vpack.c.b16 %v484, %v483
      %vm487 = vcmask 130048
      %v489 = vsel %vm487, %v467, 0
      %v492 = vsel %vm487, %v468, 0
      %v495 = vsel %vm487, %v469, 0
      %v498 = vsel %vm487, %v470, 0
      %v501 = vsel %vm487, %v471, 0
      %v504 = vsel %vm487, %v472, 0
      %v507 = vsel %vm487, %v473, 0
      %v510 = vsel %vm487, %v474, 0
      %v513 = vsel %vm487, %v475, 0
      %v516 = vsel %vm487, %v476, 0
      %v519 = vsel %vm487, %v477, 0
      %v522 = vsel %vm487, %v478, 0
      %524 = vmatprep.subr.bf16.mxu0 0
      %525 = vmatpush1.bf16.msra.mxu0 %v485
      %526 = vmatprep.subr.bf16.mxu0 0
      %527 = vmatpush1.bf16.msra.mxu0 0
      %528 = vmatprep.subr.bf16.mxu0 0
      %529 = vmatpush1.bf16.msra.mxu0 0
      %530 = vmatprep.subr.bf16.mxu0 0
      %531 = vmatpush1.bf16.msra.mxu0 0
      %532 = vmatprep.subr.bf16.mxu0 0
      %533 = vmatpush1.bf16.msra.mxu0 0
      %534 = vmatprep.subr.bf16.mxu0 0
      %535 = vmatpush1.bf16.msra.mxu0 0
      %536 = vmatprep.subr.bf16.mxu0 0
      %537 = vmatpush1.bf16.msra.mxu0 0
      %538 = vmatprep.subr.bf16.mxu0 0
      %539 = vmatpush1.bf16.msra.mxu0 0
      %540 = vmatprep.subr.bf16.mxu0 0
      %541 = vmatpush1.bf16.msra.mxu0 0
      %542 = vmatprep.subr.bf16.mxu0 0
      %543 = vmatpush1.bf16.msra.mxu0 0
      %544 = vmatprep.subr.bf16.mxu0 0
      %545 = vmatpush1.bf16.msra.mxu0 0
      %546 = vmatprep.subr.bf16.mxu0 0
      %547 = vmatpush1.bf16.msra.mxu0 0
      %548 = vmatprep.subr.bf16.mxu0 0
      %549 = vmatpush1.bf16.msra.mxu0 0
      %550 = vmatprep.subr.bf16.mxu0 0
      %551 = vmatpush1.bf16.msra.mxu0 0
      %552 = vmatprep.subr.bf16.mxu0 0
      %553 = vmatpush1.bf16.msra.mxu0 0
      %554 = vmatprep.subr.bf16.mxu0 0
      %555 = vmatpush1.bf16.msra.mxu0 0
      %556 = vmatprep.mubr.bf16.mxu0 0
      %557 = vmatmul.mubr.bf16.gmra.mrb[0].mxu0 %v489
      %v558 = vpop.f32.mrb[0].mxu0
      %v559 = vadd.f32 0.0, %v558
      %v560 = vpop.f32.mrb[0].mxu0
      %v561 = vpop.f32.mrb[0].mxu0
      %v562 = vadd.f32 0.0, %v561
      %v563 = vpop.f32.mrb[0].mxu0
      %564 = vmatprep.mubr.bf16.mxu0 0
      %565 = vmatmul.mubr.bf16.gmra.mrb[0].mxu0 %v492
      %v566 = vpop.f32.mrb[0].mxu0
      %v567 = vadd.f32 0.0, %v566
      %v568 = vpop.f32.mrb[0].mxu0
      %v569 = vpop.f32.mrb[0].mxu0
      %v570 = vadd.f32 0.0, %v569
      %v571 = vpop.f32.mrb[0].mxu0
      %572 = vmatprep.mubr.bf16.mxu0 0
      %573 = vmatmul.mubr.bf16.gmra.mrb[0].mxu0 %v495
      %v574 = vpop.f32.mrb[0].mxu0
      %v575 = vadd.f32 0.0, %v574
      %v576 = vpop.f32.mrb[0].mxu0
      %v577 = vpop.f32.mrb[0].mxu0
      %v578 = vadd.f32 0.0, %v577
      %v579 = vpop.f32.mrb[0].mxu0
      %580 = vmatprep.mubr.bf16.mxu0 0
      %581 = vmatmul.mubr.bf16.gmra.mrb[0].mxu0 %v498
      %v582 = vpop.f32.mrb[0].mxu0
      %v583 = vadd.f32 0.0, %v582
      %v584 = vpop.f32.mrb[0].mxu0
      %v585 = vpop.f32.mrb[0].mxu0
      %v586 = vadd.f32 0.0, %v585
      %v587 = vpop.f32.mrb[0].mxu0
      %588 = vmatprep.mubr.bf16.mxu0 0
      %589 = vmatmul.mubr.bf16.gmra.mrb[0].mxu0 %v501
      %v590 = vpop.f32.mrb[0].mxu0
      %v591 = vadd.f32 0.0, %v590
      %v592 = vpop.f32.mrb[0].mxu0
      %v593 = vpop.f32.mrb[0].mxu0
      %v594 = vadd.f32 0.0, %v593
      %v595 = vpop.f32.mrb[0].mxu0
      %596 = vmatprep.mubr.bf16.mxu0 0
      %597 = vmatmul.mubr.bf16.gmra.mrb[0].mxu0 %v504
      %v598 = vpop.f32.mrb[0].mxu0
      %v599 = vadd.f32 0.0, %v598
      %v600 = vpop.f32.mrb[0].mxu0
      %v601 = vpop.f32.mrb[0].mxu0
      %v602 = vadd.f32 0.0, %v601
      %v603 = vpop.f32.mrb[0].mxu0
      %604 = vmatprep.mubr.bf16.mxu0 0
      %605 = vmatmul.mubr.bf16.gmra.mrb[0].mxu0 %v507
      %v606 = vpop.f32.mrb[0].mxu0
      %v607 = vadd.f32 0.0, %v606
      %v608 = vpop.f32.mrb[0].mxu0
      %v609 = vpop.f32.mrb[0].mxu0
      %v610 = vadd.f32 0.0, %v609
      %v611 = vpop.f32.mrb[0].mxu0
      %612 = vmatprep.mubr.bf16.mxu0 0
      %613 = vmatmul.mubr.bf16.gmra.mrb[0].mxu0 %v510
      %v614 = vpop.f32.mrb[0].mxu0
      %v615 = vadd.f32 0.0, %v614
      %v616 = vpop.f32.mrb[0].mxu0
      %v617 = vpop.f32.mrb[0].mxu0
      %v618 = vadd.f32 0.0, %v617
      %v619 = vpop.f32.mrb[0].mxu0
      %620 = vmatprep.mubr.bf16.mxu0 0
      %621 = vmatmul.mubr.bf16.gmra.mrb[0].mxu0 %v513
      %v622 = vpop.f32.mrb[0].mxu0
      %v623 = vadd.f32 0.0, %v622
      %v624 = vpop.f32.mrb[0].mxu0
      %v625 = vpop.f32.mrb[0].mxu0
      %v626 = vadd.f32 0.0, %v625
      %v627 = vpop.f32.mrb[0].mxu0
      %628 = vmatprep.mubr.bf16.mxu0 0
      %629 = vmatmul.mubr.bf16.gmra.mrb[0].mxu0 %v516
      %v630 = vpop.f32.mrb[0].mxu0
      %v631 = vadd.f32 0.0, %v630
      %v632 = vpop.f32.mrb[0].mxu0
      %v633 = vpop.f32.mrb[0].mxu0
      %v634 = vadd.f32 0.0, %v633
      %v635 = vpop.f32.mrb[0].mxu0
      %636 = vmatprep.mubr.bf16.mxu0 0
      %637 = vmatmul.mubr.bf16.gmra.mrb[0].mxu0 %v519
      %v638 = vpop.f32.mrb[0].mxu0
      %v639 = vadd.f32 0.0, %v638
      %v640 = vpop.f32.mrb[0].mxu0
      %v641 = vpop.f32.mrb[0].mxu0
      %v642 = vadd.f32 0.0, %v641
      %v643 = vpop.f32.mrb[0].mxu0
      %644 = vmatprep.mubr.bf16.mxu0 0
      %645 = vmatmul.mubr.bf16.gmra.mrb[0].mxu0 %v522
      %v646 = vpop.f32.mrb[0].mxu0
      %v647 = vadd.f32 0.0, %v646
      %v648 = vpop.f32.mrb[0].mxu0
      %v649 = vpop.f32.mrb[0].mxu0
      %v650 = vpop.f32.mrb[0].mxu0
      %651 = vdwg.mxu0
      %v652 = vld [vmem:[%s3] sm:$0x1]
      %v654 = vlaneseq
      %v655 = vshrl.u32 %v654, 7
      %v656 = vsub.s32 0, %v655
      %v657 = vrot.slane %v652, %v656
      %v659 = vmul.f32 %v559, %v657
      %v660 = vmul.f32 %v562, %v657
      %v661 = vmul.f32 %v567, %v657
      %v662 = vmul.f32 %v570, %v657
      %v663 = vmul.f32 %v575, %v657
      %v664 = vmul.f32 %v578, %v657
      %v665 = vmul.f32 %v583, %v657
      %v666 = vmul.f32 %v586, %v657
      %v667 = vmul.f32 %v591, %v657
      %v668 = vmul.f32 %v594, %v657
      %v669 = vmul.f32 %v599, %v657
      %v670 = vmul.f32 %v602, %v657
      %v671 = vmul.f32 %v607, %v657
      %v672 = vmul.f32 %v610, %v657
      %v673 = vmul.f32 %v615, %v657
      %v674 = vmul.f32 %v618, %v657
      %v675 = vmul.f32 %v623, %v657
      %v676 = vmul.f32 %v626, %v657
      %v677 = vmul.f32 %v631, %v657
      %v678 = vmul.f32 %v634, %v657
      %v679 = vmul.f32 %v639, %v657
      %v680 = vmul.f32 %v642, %v657
      %v681 = vmul.f32 %v647, %v657
      %v682 = vld [vmem:[%s4] sm:$0x1]
      %v684 = vlaneseq
      %v685 = vshrl.u32 %v684, 7
      %v686 = vsub.s32 0, %v685
      %v687 = vrot.slane %v682, %v686
      %v689 = vadd.f32 %v659, %v687
      %v690 = vadd.f32 %v660, %v687
      %v691 = vadd.f32 %v661, %v687
      %v692 = vadd.f32 %v662, %v687
      %v693 = vadd.f32 %v663, %v687
      %v694 = vadd.f32 %v664, %v687
      %v695 = vadd.f32 %v665, %v687
      %v696 = vadd.f32 %v666, %v687
      %v697 = vadd.f32 %v667, %v687
      %v698 = vadd.f32 %v668, %v687
      %v699 = vadd.f32 %v669, %v687
      %v700 = vadd.f32 %v670, %v687
      %v701 = vadd.f32 %v671, %v687
      %v702 = vadd.f32 %v672, %v687
      %v703 = vadd.f32 %v673, %v687
      %v704 = vadd.f32 %v674, %v687
      %v705 = vadd.f32 %v675, %v687
      %v706 = vadd.f32 %v676, %v687
      %v707 = vadd.f32 %v677, %v687
      %v708 = vadd.f32 %v678, %v687
      %v709 = vadd.f32 %v679, %v687
      %v710 = vadd.f32 %v680, %v687
      %v711 = vadd.f32 %v681, %v687
      %v712 = vmax.f32 %v689, 0.0
      %v713 = vmax.f32 %v690, 0.0
      %v714 = vmax.f32 %v691, 0.0
      %v715 = vmax.f32 %v692, 0.0
      %v716 = vmax.f32 %v693, 0.0
      %v717 = vmax.f32 %v694, 0.0
      %v718 = vmax.f32 %v695, 0.0
      %v719 = vmax.f32 %v696, 0.0
      %v720 = vmax.f32 %v697, 0.0
      %v721 = vmax.f32 %v698, 0.0
      %v722 = vmax.f32 %v699, 0.0
      %v723 = vmax.f32 %v700, 0.0
      %v724 = vmax.f32 %v701, 0.0
      %v725 = vmax.f32 %v702, 0.0
      %v726 = vmax.f32 %v703, 0.0
      %v727 = vmax.f32 %v704, 0.0
      %v728 = vmax.f32 %v705, 0.0
      %v729 = vmax.f32 %v706, 0.0
      %v730 = vmax.f32 %v707, 0.0
      %v731 = vmax.f32 %v708, 0.0
      %v732 = vmax.f32 %v709, 0.0
      %v733 = vmax.f32 %v710, 0.0
      %v734 = vmax.f32 %v711, 0.0
      %v735 = vld [vmem:[%s433] sm:$0xff]
      %v736 = vld [vmem:[%s433 + $0x8] sm:$0xff]
      %v737 = vld [vmem:[%s433 + $0x10] sm:$0xff]
      %v738 = vld [vmem:[%s433 + $0x18] sm:$0xff]
      %v739 = vld [vmem:[%s433 + $0x20] sm:$0xff]
      %v740 = vld [vmem:[%s433 + $0x28] sm:$0xff]
      %v741 = vld [vmem:[%s433 + $0x30] sm:$0xff]
      %v742 = vld [vmem:[%s433 + $0x38] sm:$0xff]
      %v743 = vld [vmem:[%s433 + $0x40] sm:$0xff]
      %v744 = vld [vmem:[%s433 + $0x48] sm:$0xff]
      %v745 = vld [vmem:[%s433 + $0x50] sm:$0xff]
      %v746 = vld [vmem:[%s433 + $0x58] sm:$0xff]
      %v747 = vld [vmem:[%s433 + $0x60] sm:$0xff]
      %v748 = vld [vmem:[%s433 + $0x68] sm:$0xff]
      %v749 = vld [vmem:[%s433 + $0x70] sm:$0xff]
      %v750 = vld [vmem:[%s433 + $0x78] sm:$0xff]
      %v751 = vld [vmem:[%s433 + $0x80] sm:$0xff]
      %v752 = vld [vmem:[%s433 + $0x88] sm:$0xff]
      %v753 = vld [vmem:[%s433 + $0x90] sm:$0xff]
      %v754 = vld [vmem:[%s433 + $0x98] sm:$0xff]
      %v755 = vld [vmem:[%s433 + $0xa0] sm:$0xff]
      %v756 = vld [vmem:[%s433 + $0xa8] sm:$0xff]
      %v757 = vld [vmem:[%s433 + $0xb0] sm:$0xf]
      %759 = vset.pattern.permute.xlu0 0
      %760 = vperm.xlu0 %759, %v735
      %v761 = vpop.permute.xlu0 %760
      %764 = vset.pattern.permute.xlu0 0
      %765 = vperm.xlu0 %764, %v736
      %v766 = vpop.permute.xlu0 %765
      %769 = vset.pattern.permute.xlu0 0
      %770 = vperm.xlu0 %769, %v737
      %v771 = vpop.permute.xlu0 %770
      %774 = vset.pattern.permute.xlu0 0
      %775 = vperm.xlu0 %774, %v738
      %v776 = vpop.permute.xlu0 %775
      %779 = vset.pattern.permute.xlu0 0
      %780 = vperm.xlu0 %779, %v739
      %v781 = vpop.permute.xlu0 %780
      %784 = vset.pattern.permute.xlu0 0
      %785 = vperm.xlu0 %784, %v740
      %v786 = vpop.permute.xlu0 %785
      %789 = vset.pattern.permute.xlu0 0
      %790 = vperm.xlu0 %789, %v741
      %v791 = vpop.permute.xlu0 %790
      %794 = vset.pattern.permute.xlu0 0
      %795 = vperm.xlu0 %794, %v742
      %v796 = vpop.permute.xlu0 %795
      %799 = vset.pattern.permute.xlu0 0
      %800 = vperm.xlu0 %799, %v743
      %v801 = vpop.permute.xlu0 %800
      %804 = vset.pattern.permute.xlu0 0
      %805 = vperm.xlu0 %804, %v744
      %v806 = vpop.permute.xlu0 %805
      %809 = vset.pattern.permute.xlu0 0
      %810 = vperm.xlu0 %809, %v745
      %v811 = vpop.permute.xlu0 %810
      %814 = vset.pattern.permute.xlu0 0
      %815 = vperm.xlu0 %814, %v746
      %v816 = vpop.permute.xlu0 %815
      %819 = vset.pattern.permute.xlu0 0
      %820 = vperm.xlu0 %819, %v747
      %v821 = vpop.permute.xlu0 %820
      %824 = vset.pattern.permute.xlu0 0
      %825 = vperm.xlu0 %824, %v748
      %v826 = vpop.permute.xlu0 %825
      %829 = vset.pattern.permute.xlu0 0
      %830 = vperm.xlu0 %829, %v749
      %v831 = vpop.permute.xlu0 %830
      %834 = vset.pattern.permute.xlu0 0
      %835 = vperm.xlu0 %834, %v750
      %v836 = vpop.permute.xlu0 %835
      %839 = vset.pattern.permute.xlu0 0
      %840 = vperm.xlu0 %839, %v751
      %v841 = vpop.permute.xlu0 %840
      %844 = vset.pattern.permute.xlu0 0
      %845 = vperm.xlu0 %844, %v752
      %v846 = vpop.permute.xlu0 %845
      %849 = vset.pattern.permute.xlu0 0
      %850 = vperm.xlu0 %849, %v753
      %v851 = vpop.permute.xlu0 %850
      %854 = vset.pattern.permute.xlu0 0
      %855 = vperm.xlu0 %854, %v754
      %v856 = vpop.permute.xlu0 %855
      %859 = vset.pattern.permute.xlu0 0
      %860 = vperm.xlu0 %859, %v755
      %v861 = vpop.permute.xlu0 %860
      %864 = vset.pattern.permute.xlu0 0
      %865 = vperm.xlu0 %864, %v756
      %v866 = vpop.permute.xlu0 %865
      %869 = vset.pattern.permute.xlu0 0
      %870 = vperm.xlu0 %869, %v757
      %v871 = vpop.permute.xlu0 %870
      %v873 = vmul.f32 %v712, %v761
      %v874 = vmul.f32 %v713, %v766
      %v875 = vmul.f32 %v714, %v771
      %v876 = vmul.f32 %v715, %v776
      %v877 = vmul.f32 %v716, %v781
      %v878 = vmul.f32 %v717, %v786
      %v879 = vmul.f32 %v718, %v791
      %v880 = vmul.f32 %v719, %v796
      %v881 = vmul.f32 %v720, %v801
      %v882 = vmul.f32 %v721, %v806
      %v883 = vmul.f32 %v722, %v811
      %v884 = vmul.f32 %v723, %v816
      %v885 = vmul.f32 %v724, %v821
      %v886 = vmul.f32 %v725, %v826
      %v887 = vmul.f32 %v726, %v831
      %v888 = vmul.f32 %v727, %v836
      %v889 = vmul.f32 %v728, %v841
      %v890 = vmul.f32 %v729, %v846
      %v891 = vmul.f32 %v730, %v851
      %v892 = vmul.f32 %v731, %v856
      %v893 = vmul.f32 %v732, %v861
      %v894 = vmul.f32 %v733, %v866
      %v895 = vmul.f32 %v734, %v871
      %vm896 = vcmask 24576
      %897 = vst.msk [vmem:[#allocation2] sm:$0x1] %vm896, 0.0
      %898 = vst.msk [vmem:[#allocation2 + $0xb5] sm:$0x1] %vm896, 0.0
      %vm899 = vcmask 31744
      %900 = vst.msk [vmem:[#allocation2 + $0x1] sm:$0xff] %vm899, %v873
      %901 = vst.msk [vmem:[#allocation2 + $0x9] sm:$0xff] %vm899, %v874
      %902 = vst.msk [vmem:[#allocation2 + $0x11] sm:$0xff] %vm899, %v875
      %903 = vst.msk [vmem:[#allocation2 + $0x19] sm:$0xff] %vm899, %v876
      %904 = vst.msk [vmem:[#allocation2 + $0x21] sm:$0xff] %vm899, %v877
      %905 = vst.msk [vmem:[#allocation2 + $0x29] sm:$0xff] %vm899, %v878
      %906 = vst.msk [vmem:[#allocation2 + $0x31] sm:$0xff] %vm899, %v879
      %907 = vst.msk [vmem:[#allocation2 + $0x39] sm:$0xff] %vm899, %v880
      %908 = vst.msk [vmem:[#allocation2 + $0x41] sm:$0xff] %vm899, %v881
      %909 = vst.msk [vmem:[#allocation2 + $0x49] sm:$0xff] %vm899, %v882
      %910 = vst.msk [vmem:[#allocation2 + $0x51] sm:$0xff] %vm899, %v883
      %911 = vst.msk [vmem:[#allocation2 + $0x59] sm:$0xff] %vm899, %v884
      %912 = vst.msk [vmem:[#allocation2 + $0x61] sm:$0xff] %vm899, %v885
      %913 = vst.msk [vmem:[#allocation2 + $0x69] sm:$0xff] %vm899, %v886
      %914 = vst.msk [vmem:[#allocation2 + $0x71] sm:$0xff] %vm899, %v887
      %915 = vst.msk [vmem:[#allocation2 + $0x79] sm:$0xff] %vm899, %v888
      %916 = vst.msk [vmem:[#allocation2 + $0x81] sm:$0xff] %vm899, %v889
      %917 = vst.msk [vmem:[#allocation2 + $0x89] sm:$0xff] %vm899, %v890
      %918 = vst.msk [vmem:[#allocation2 + $0x91] sm:$0xff] %vm899, %v891
      %919 = vst.msk [vmem:[#allocation2 + $0x99] sm:$0xff] %vm899, %v892
      %920 = vst.msk [vmem:[#allocation2 + $0xa1] sm:$0xff] %vm899, %v893
      %921 = vst.msk [vmem:[#allocation2 + $0xa9] sm:$0xff] %vm899, %v894
      %vm922 = vcmask 27648
      %923 = vst.msk [vmem:[#allocation2 + $0xb1] sm:$0xf] %vm922, %v895
      %v924 = vld [vmem:[#allocation2] sm:$0xff]
      %v925 = vld [vmem:[#allocation2 + $0x8] sm:$0xff]
      %v926 = vld [vmem:[#allocation2 + $0x10] sm:$0xff]
      %v927 = vld [vmem:[#allocation2 + $0x18] sm:$0xff]
      %v928 = vld [vmem:[#allocation2 + $0x20] sm:$0xff]
      %v929 = vld [vmem:[#allocation2 + $0x28] sm:$0xff]
      %v930 = vld [vmem:[#allocation2 + $0x30] sm:$0xff]
      %v931 = vld [vmem:[#allocation2 + $0x38] sm:$0xff]
      %v932 = vld [vmem:[#allocation2 + $0x40] sm:$0xff]
      %v933 = vld [vmem:[#allocation2 + $0x48] sm:$0xff]
      %v934 = vld [vmem:[#allocation2 + $0x50] sm:$0xff]
      %v935 = vld [vmem:[#allocation2 + $0x58] sm:$0xff]
      %v936 = vld [vmem:[#allocation2 + $0x60] sm:$0xff]
      %v937 = vld [vmem:[#allocation2 + $0x68] sm:$0xff]
      %v938 = vld [vmem:[#allocation2 + $0x70] sm:$0xff]
      %v939 = vld [vmem:[#allocation2 + $0x78] sm:$0xff]
      %v940 = vld [vmem:[#allocation2 + $0x80] sm:$0xff]
      %v941 = vld [vmem:[#allocation2 + $0x88] sm:$0xff]
      %v942 = vpack.c.bf16 %v925, %v924
      %v943 = vpack.c.bf16 %v927, %v926
      %v944 = vpack.c.bf16 %v929, %v928
      %v945 = vpack.c.bf16 %v931, %v930
      %v946 = vpack.c.bf16 %v933, %v932
      %v947 = vpack.c.bf16 %v935, %v934
      %v948 = vpack.c.bf16 %v937, %v936
      %v949 = vpack.c.bf16 %v939, %v938
      %v950 = vpack.c.bf16 %v941, %v940
      %v951 = vld [vmem:[%s5] sm:$0x3]
      %v952 = vld [vmem:[#allocation2 + $0x1] sm:$0xff]
      %v953 = vld [vmem:[#allocation2 + $0x9] sm:$0xff]
      %v954 = vld [vmem:[#allocation2 + $0x11] sm:$0xff]
      %v955 = vld [vmem:[#allocation2 + $0x19] sm:$0xff]
      %v956 = vld [vmem:[#allocation2 + $0x21] sm:$0xff]
      %v957 = vld [vmem:[#allocation2 + $0x29] sm:$0xff]
      %v958 = vld [vmem:[#allocation2 + $0x31] sm:$0xff]
      %v959 = vld [vmem:[#allocation2 + $0x39] sm:$0xff]
      %v960 = vld [vmem:[#allocation2 + $0x41] sm:$0xff]
      %v961 = vld [vmem:[#allocation2 + $0x49] sm:$0xff]
      %v962 = vld [vmem:[#allocation2 + $0x51] sm:$0xff]
      %v963 = vld [vmem:[#allocation2 + $0x59] sm:$0xff]
      %v964 = vld [vmem:[#allocation2 + $0x61] sm:$0xff]
      %v965 = vld [vmem:[#allocation2 + $0x69] sm:$0xff]
      %v966 = vld [vmem:[#allocation2 + $0x71] sm:$0xff]
      %v967 = vld [vmem:[#allocation2 + $0x79] sm:$0xff]
      %v968 = vld [vmem:[#allocation2 + $0x81] sm:$0xff]
      %v969 = vld [vmem:[#allocation2 + $0x89] sm:$0xff]
      %v970 = vpack.c.bf16 %v953, %v952
      %v971 = vpack.c.bf16 %v955, %v954
      %v972 = vpack.c.bf16 %v957, %v956
      %v973 = vpack.c.bf16 %v959, %v958
      %v974 = vpack.c.bf16 %v961, %v960
      %v975 = vpack.c.bf16 %v963, %v962
      %v976 = vpack.c.bf16 %v965, %v964
      %v977 = vpack.c.bf16 %v967, %v966
      %v978 = vpack.c.bf16 %v969, %v968
      %s979 = scalar_lea.vmem %s5, 2
      %v980 = vld [vmem:[%s979] sm:$0x3]
      %v982 = vsel %vm899, %v970, 0
      %v985 = vsel %vm899, %v971, 0
      %v988 = vsel %vm899, %v972, 0
      %v991 = vsel %vm899, %v973, 0
      %v994 = vsel %vm899, %v974, 0
      %v997 = vsel %vm899, %v975, 0
      %v1000 = vsel %vm899, %v976, 0
      %v1003 = vsel %vm899, %v977, 0
      %v1006 = vsel %vm899, %v978, 0
      %vm1008 = vcmask 1041408
      %v1010 = vsel %vm1008, %v980, 0
      %1012 = vmatprep.subr.bf16.mxu0 0
      %1013 = vmatpush1.bf16.msra.mxu0 %v1010
      %1014 = vmatprep.subr.bf16.mxu0 0
      %1015 = vmatpush1.bf16.msra.mxu0 0
      %1016 = vmatprep.subr.bf16.mxu0 0
      %1017 = vmatpush1.bf16.msra.mxu0 0
      %1018 = vmatprep.subr.bf16.mxu0 0
      %1019 = vmatpush1.bf16.msra.mxu0 0
      %1020 = vmatprep.subr.bf16.mxu0 0
      %1021 = vmatpush1.bf16.msra.mxu0 0
      %1022 = vmatprep.subr.bf16.mxu0 0
      %1023 = vmatpush1.bf16.msra.mxu0 0
      %1024 = vmatprep.subr.bf16.mxu0 0
      %1025 = vmatpush1.bf16.msra.mxu0 0
      %1026 = vmatprep.subr.bf16.mxu0 0
      %1027 = vmatpush1.bf16.msra.mxu0 0
      %1028 = vmatprep.subr.bf16.mxu0 0
      %1029 = vmatpush1.bf16.msra.mxu0 0
      %1030 = vmatprep.subr.bf16.mxu0 0
      %1031 = vmatpush1.bf16.msra.mxu0 0
      %1032 = vmatprep.subr.bf16.mxu0 0
      %1033 = vmatpush1.bf16.msra.mxu0 0
      %1034 = vmatprep.subr.bf16.mxu0 0
      %1035 = vmatpush1.bf16.msra.mxu0 0
      %1036 = vmatprep.subr.bf16.mxu0 0
      %1037 = vmatpush1.bf16.msra.mxu0 0
      %1038 = vmatprep.subr.bf16.mxu0 0
      %1039 = vmatpush1.bf16.msra.mxu0 0
      %1040 = vmatprep.subr.bf16.mxu0 0
      %1041 = vmatpush1.bf16.msra.mxu0 0
      %1042 = vmatprep.subr.bf16.mxu0 0
      %1043 = vmatpush1.bf16.msra.mxu0 0
      %1044 = vmatprep.mubr.bf16.mxu0 0
      %1045 = vmatmul.mubr.bf16.gmra.mrb[0].mxu0 %v982
      %v1046 = vpop.f32.mrb[0].mxu0
      %v1047 = vadd.f32 0.0, %v1046
      %v1048 = vpop.f32.mrb[0].mxu0
      %v1049 = vpop.f32.mrb[0].mxu0
      %v1050 = vadd.f32 0.0, %v1049
      %v1051 = vpop.f32.mrb[0].mxu0
      %1052 = vmatprep.mubr.bf16.mxu0 0
      %1053 = vmatmul.mubr.bf16.gmra.mrb[0].mxu0 %v985
      %v1054 = vpop.f32.mrb[0].mxu0
      %v1055 = vadd.f32 0.0, %v1054
      %v1056 = vpop.f32.mrb[0].mxu0
      %v1057 = vpop.f32.mrb[0].mxu0
      %v1058 = vadd.f32 0.0, %v1057
      %v1059 = vpop.f32.mrb[0].mxu0
      %1060 = vmatprep.mubr.bf16.mxu0 0
      %1061 = vmatmul.mubr.bf16.gmra.mrb[0].mxu0 %v988
      %v1062 = vpop.f32.mrb[0].mxu0
      %v1063 = vadd.f32 0.0, %v1062
      %v1064 = vpop.f32.mrb[0].mxu0
      %v1065 = vpop.f32.mrb[0].mxu0
      %v1066 = vadd.f32 0.0, %v1065
      %v1067 = vpop.f32.mrb[0].mxu0
      %1068 = vmatprep.mubr.bf16.mxu0 0
      %1069 = vmatmul.mubr.bf16.gmra.mrb[0].mxu0 %v991
      %v1070 = vpop.f32.mrb[0].mxu0
      %v1071 = vadd.f32 0.0, %v1070
      %v1072 = vpop.f32.mrb[0].mxu0
      %v1073 = vpop.f32.mrb[0].mxu0
      %v1074 = vadd.f32 0.0, %v1073
      %v1075 = vpop.f32.mrb[0].mxu0
      %1076 = vmatprep.mubr.bf16.mxu0 0
      %1077 = vmatmul.mubr.bf16.gmra.mrb[0].mxu0 %v994
      %v1078 = vpop.f32.mrb[0].mxu0
      %v1079 = vadd.f32 0.0, %v1078
      %v1080 = vpop.f32.mrb[0].mxu0
      %v1081 = vpop.f32.mrb[0].mxu0
      %v1082 = vadd.f32 0.0, %v1081
      %v1083 = vpop.f32.mrb[0].mxu0
      %1084 = vmatprep.mubr.bf16.mxu0 0
      %1085 = vmatmul.mubr.bf16.gmra.mrb[0].mxu0 %v997
      %v1086 = vpop.f32.mrb[0].mxu0
      %v1087 = vadd.f32 0.0, %v1086
      %v1088 = vpop.f32.mrb[0].mxu0
      %v1089 = vpop.f32.mrb[0].mxu0
      %v1090 = vadd.f32 0.0, %v1089
      %v1091 = vpop.f32.mrb[0].mxu0
      %1092 = vmatprep.mubr.bf16.mxu0 0
      %1093 = vmatmul.mubr.bf16.gmra.mrb[0].mxu0 %v1000
      %v1094 = vpop.f32.mrb[0].mxu0
      %v1095 = vadd.f32 0.0, %v1094
      %v1096 = vpop.f32.mrb[0].mxu0
      %v1097 = vpop.f32.mrb[0].mxu0
      %v1098 = vadd.f32 0.0, %v1097
      %v1099 = vpop.f32.mrb[0].mxu0
      %1100 = vmatprep.mubr.bf16.mxu0 0
      %1101 = vmatmul.mubr.bf16.gmra.mrb[0].mxu0 %v1003
      %v1102 = vpop.f32.mrb[0].mxu0
      %v1103 = vadd.f32 0.0, %v1102
      %v1104 = vpop.f32.mrb[0].mxu0
      %v1105 = vpop.f32.mrb[0].mxu0
      %v1106 = vadd.f32 0.0, %v1105
      %v1107 = vpop.f32.mrb[0].mxu0
      %1108 = vmatprep.mubr.bf16.mxu0 0
      %1109 = vmatmul.mubr.bf16.gmra.mrb[0].mxu0 %v1006
      %v1110 = vpop.f32.mrb[0].mxu0
      %v1111 = vadd.f32 0.0, %v1110
      %v1112 = vpop.f32.mrb[0].mxu0
      %v1113 = vpop.f32.mrb[0].mxu0
      %v1114 = vadd.f32 0.0, %v1113
      %v1115 = vpop.f32.mrb[0].mxu0
      %1116 = vdwg.mxu0
      %v1118 = vsel %vm899, %v942, 0
      %v1121 = vsel %vm899, %v943, 0
      %v1124 = vsel %vm899, %v944, 0
      %v1127 = vsel %vm899, %v945, 0
      %v1130 = vsel %vm899, %v946, 0
      %v1133 = vsel %vm899, %v947, 0
      %v1136 = vsel %vm899, %v948, 0
      %v1139 = vsel %vm899, %v949, 0
      %v1142 = vsel %vm899, %v950, 0
      %v1145 = vsel %vm1008, %v951, 0
      %1147 = vmatprep.subr.bf16.mxu0 0
      %1148 = vmatpush1.bf16.msra.mxu0 %v1145
      %1149 = vmatprep.subr.bf16.mxu0 0
      %1150 = vmatpush1.bf16.msra.mxu0 0
      %1151 = vmatprep.subr.bf16.mxu0 0
      %1152 = vmatpush1.bf16.msra.mxu0 0
      %1153 = vmatprep.subr.bf16.mxu0 0
      %1154 = vmatpush1.bf16.msra.mxu0 0
      %1155 = vmatprep.subr.bf16.mxu0 0
      %1156 = vmatpush1.bf16.msra.mxu0 0
      %1157 = vmatprep.subr.bf16.mxu0 0
      %1158 = vmatpush1.bf16.msra.mxu0 0
      %1159 = vmatprep.subr.bf16.mxu0 0
      %1160 = vmatpush1.bf16.msra.mxu0 0
      %1161 = vmatprep.subr.bf16.mxu0 0
      %1162 = vmatpush1.bf16.msra.mxu0 0
      %1163 = vmatprep.subr.bf16.mxu0 0
      %1164 = vmatpush1.bf16.msra.mxu0 0
      %1165 = vmatprep.subr.bf16.mxu0 0
      %1166 = vmatpush1.bf16.msra.mxu0 0
      %1167 = vmatprep.subr.bf16.mxu0 0
      %1168 = vmatpush1.bf16.msra.mxu0 0
      %1169 = vmatprep.subr.bf16.mxu0 0
      %1170 = vmatpush1.bf16.msra.mxu0 0
      %1171 = vmatprep.subr.bf16.mxu0 0
      %1172 = vmatpush1.bf16.msra.mxu0 0
      %1173 = vmatprep.subr.bf16.mxu0 0
      %1174 = vmatpush1.bf16.msra.mxu0 0
      %1175 = vmatprep.subr.bf16.mxu0 0
      %1176 = vmatpush1.bf16.msra.mxu0 0
      %1177 = vmatprep.subr.bf16.mxu0 0
      %1178 = vmatpush1.bf16.msra.mxu0 0
      %1179 = vmatprep.mubr.bf16.mxu0 0
      %1180 = vmatmul.mubr.bf16.gmra.mrb[0].mxu0 %v1118
      %v1181 = vpop.f32.mrb[0].mxu0
      %v1182 = vadd.f32 %v1047, %v1181
      %v1183 = vpop.f32.mrb[0].mxu0
      %v1184 = vpop.f32.mrb[0].mxu0
      %v1185 = vadd.f32 %v1050, %v1184
      %v1186 = vpop.f32.mrb[0].mxu0
      %1187 = vmatprep.mubr.bf16.mxu0 0
      %1188 = vmatmul.mubr.bf16.gmra.mrb[0].mxu0 %v1121
      %v1189 = vpop.f32.mrb[0].mxu0
      %v1190 = vadd.f32 %v1055, %v1189
      %v1191 = vpop.f32.mrb[0].mxu0
      %v1192 = vpop.f32.mrb[0].mxu0
      %v1193 = vadd.f32 %v1058, %v1192
      %v1194 = vpop.f32.mrb[0].mxu0
      %1195 = vmatprep.mubr.bf16.mxu0 0
      %1196 = vmatmul.mubr.bf16.gmra.mrb[0].mxu0 %v1124
      %v1197 = vpop.f32.mrb[0].mxu0
      %v1198 = vadd.f32 %v1063, %v1197
      %v1199 = vpop.f32.mrb[0].mxu0
      %v1200 = vpop.f32.mrb[0].mxu0
      %v1201 = vadd.f32 %v1066, %v1200
      %v1202 = vpop.f32.mrb[0].mxu0
      %1203 = vmatprep.mubr.bf16.mxu0 0
      %1204 = vmatmul.mubr.bf16.gmra.mrb[0].mxu0 %v1127
      %v1205 = vpop.f32.mrb[0].mxu0
      %v1206 = vadd.f32 %v1071, %v1205
      %v1207 = vpop.f32.mrb[0].mxu0
      %v1208 = vpop.f32.mrb[0].mxu0
      %v1209 = vadd.f32 %v1074, %v1208
      %v1210 = vpop.f32.mrb[0].mxu0
      %1211 = vmatprep.mubr.bf16.mxu0 0
      %1212 = vmatmul.mubr.bf16.gmra.mrb[0].mxu0 %v1130
      %v1213 = vpop.f32.mrb[0].mxu0
      %v1214 = vadd.f32 %v1079, %v1213
      %v1215 = vpop.f32.mrb[0].mxu0
      %v1216 = vpop.f32.mrb[0].mxu0
      %v1217 = vadd.f32 %v1082, %v1216
      %v1218 = vpop.f32.mrb[0].mxu0
      %1219 = vmatprep.mubr.bf16.mxu0 0
      %1220 = vmatmul.mubr.bf16.gmra.mrb[0].mxu0 %v1133
      %v1221 = vpop.f32.mrb[0].mxu0
      %v1222 = vadd.f32 %v1087, %v1221
      %v1223 = vpop.f32.mrb[0].mxu0
      %v1224 = vpop.f32.mrb[0].mxu0
      %v1225 = vadd.f32 %v1090, %v1224
      %v1226 = vpop.f32.mrb[0].mxu0
      %1227 = vmatprep.mubr.bf16.mxu0 0
      %1228 = vmatmul.mubr.bf16.gmra.mrb[0].mxu0 %v1136
      %v1229 = vpop.f32.mrb[0].mxu0
      %v1230 = vadd.f32 %v1095, %v1229
      %v1231 = vpop.f32.mrb[0].mxu0
      %v1232 = vpop.f32.mrb[0].mxu0
      %v1233 = vadd.f32 %v1098, %v1232
      %v1234 = vpop.f32.mrb[0].mxu0
      %1235 = vmatprep.mubr.bf16.mxu0 0
      %1236 = vmatmul.mubr.bf16.gmra.mrb[0].mxu0 %v1139
      %v1237 = vpop.f32.mrb[0].mxu0
      %v1238 = vadd.f32 %v1103, %v1237
      %v1239 = vpop.f32.mrb[0].mxu0
      %v1240 = vpop.f32.mrb[0].mxu0
      %v1241 = vadd.f32 %v1106, %v1240
      %v1242 = vpop.f32.mrb[0].mxu0
      %1243 = vmatprep.mubr.bf16.mxu0 0
      %1244 = vmatmul.mubr.bf16.gmra.mrb[0].mxu0 %v1142
      %v1245 = vpop.f32.mrb[0].mxu0
      %v1246 = vadd.f32 %v1111, %v1245
      %v1247 = vpop.f32.mrb[0].mxu0
      %v1248 = vpop.f32.mrb[0].mxu0
      %v1249 = vadd.f32 %v1114, %v1248
      %v1250 = vpop.f32.mrb[0].mxu0
      %1251 = vdwg.mxu0
      %v1252 = vld [vmem:[#allocation2 + $0x2] sm:$0xff]
      %v1253 = vld [vmem:[#allocation2 + $0xa] sm:$0xff]
      %v1254 = vld [vmem:[#allocation2 + $0x12] sm:$0xff]
      %v1255 = vld [vmem:[#allocation2 + $0x1a] sm:$0xff]
      %v1256 = vld [vmem:[#allocation2 + $0x22] sm:$0xff]
      %v1257 = vld [vmem:[#allocation2 + $0x2a] sm:$0xff]
      %v1258 = vld [vmem:[#allocation2 + $0x32] sm:$0xff]
      %v1259 = vld [vmem:[#allocation2 + $0x3a] sm:$0xff]
      %v1260 = vld [vmem:[#allocation2 + $0x42] sm:$0xff]
      %v1261 = vld [vmem:[#allocation2 + $0x4a] sm:$0xff]
      %v1262 = vld [vmem:[#allocation2 + $0x52] sm:$0xff]
      %v1263 = vld [vmem:[#allocation2 + $0x5a] sm:$0xff]
      %v1264 = vld [vmem:[#allocation2 + $0x62] sm:$0xff]
      %v1265 = vld [vmem:[#allocation2 + $0x6a] sm:$0xff]
      %v1266 = vld [vmem:[#allocation2 + $0x72] sm:$0xff]
      %v1267 = vld [vmem:[#allocation2 + $0x7a] sm:$0xff]
      %v1268 = vld [vmem:[#allocation2 + $0x82] sm:$0xff]
      %v1269 = vld [vmem:[#allocation2 + $0x8a] sm:$0xff]
      %v1270 = vpack.c.bf16 %v1253, %v1252
      %v1271 = vpack.c.bf16 %v1255, %v1254
      %v1272 = vpack.c.bf16 %v1257, %v1256
      %v1273 = vpack.c.bf16 %v1259, %v1258
      %v1274 = vpack.c.bf16 %v1261, %v1260
      %v1275 = vpack.c.bf16 %v1263, %v1262
      %v1276 = vpack.c.bf16 %v1265, %v1264
      %v1277 = vpack.c.bf16 %v1267, %v1266
      %v1278 = vpack.c.bf16 %v1269, %v1268
      %s1279 = scalar_lea.vmem %s5, 4
      %v1280 = vld [vmem:[%s1279] sm:$0x3]
      %v1282 = vsel %vm899, %v1270, 0
      %v1285 = vsel %vm899, %v1271, 0
      %v1288 = vsel %vm899, %v1272, 0
      %v1291 = vsel %vm899, %v1273, 0
      %v1294 = vsel %vm899, %v1274, 0
      %v1297 = vsel %vm899, %v1275, 0
      %v1300 = vsel %vm899, %v1276, 0
      %v1303 = vsel %vm899, %v1277, 0
      %v1306 = vsel %vm899, %v1278, 0
      %v1309 = vsel %vm1008, %v1280, 0
      %1311 = vmatprep.subr.bf16.mxu0 0
      %1312 = vmatpush1.bf16.msra.mxu0 %v1309
      %1313 = vmatprep.subr.bf16.mxu0 0
      %1314 = vmatpush1.bf16.msra.mxu0 0
      %1315 = vmatprep.subr.bf16.mxu0 0
      %1316 = vmatpush1.bf16.msra.mxu0 0
      %1317 = vmatprep.subr.bf16.mxu0 0
      %1318 = vmatpush1.bf16.msra.mxu0 0
      %1319 = vmatprep.subr.bf16.mxu0 0
      %1320 = vmatpush1.bf16.msra.mxu0 0
      %1321 = vmatprep.subr.bf16.mxu0 0
      %1322 = vmatpush1.bf16.msra.mxu0 0
      %1323 = vmatprep.subr.bf16.mxu0 0
      %1324 = vmatpush1.bf16.msra.mxu0 0
      %1325 = vmatprep.subr.bf16.mxu0 0
      %1326 = vmatpush1.bf16.msra.mxu0 0
      %1327 = vmatprep.subr.bf16.mxu0 0
      %1328 = vmatpush1.bf16.msra.mxu0 0
      %1329 = vmatprep.subr.bf16.mxu0 0
      %1330 = vmatpush1.bf16.msra.mxu0 0
      %1331 = vmatprep.subr.bf16.mxu0 0
      %1332 = vmatpush1.bf16.msra.mxu0 0
      %1333 = vmatprep.subr.bf16.mxu0 0
      %1334 = vmatpush1.bf16.msra.mxu0 0
      %1335 = vmatprep.subr.bf16.mxu0 0
      %1336 = vmatpush1.bf16.msra.mxu0 0
      %1337 = vmatprep.subr.bf16.mxu0 0
      %1338 = vmatpush1.bf16.msra.mxu0 0
      %1339 = vmatprep.subr.bf16.mxu0 0
      %1340 = vmatpush1.bf16.msra.mxu0 0
      %1341 = vmatprep.subr.bf16.mxu0 0
      %1342 = vmatpush1.bf16.msra.mxu0 0
      %1343 = vmatprep.mubr.bf16.mxu0 0
      %1344 = vmatmul.mubr.bf16.gmra.mrb[0].mxu0 %v1282
      %v1345 = vpop.f32.mrb[0].mxu0
      %v1346 = vadd.f32 0.0, %v1345
      %v1347 = vpop.f32.mrb[0].mxu0
      %v1348 = vpop.f32.mrb[0].mxu0
      %v1349 = vadd.f32 0.0, %v1348
      %v1350 = vpop.f32.mrb[0].mxu0
      %1351 = vmatprep.mubr.bf16.mxu0 0
      %1352 = vmatmul.mubr.bf16.gmra.mrb[0].mxu0 %v1285
      %v1353 = vpop.f32.mrb[0].mxu0
      %v1354 = vadd.f32 0.0, %v1353
      %v1355 = vpop.f32.mrb[0].mxu0
      %v1356 = vpop.f32.mrb[0].mxu0
      %v1357 = vadd.f32 0.0, %v1356
      %v1358 = vpop.f32.mrb[0].mxu0
      %1359 = vmatprep.mubr.bf16.mxu0 0
      %1360 = vmatmul.mubr.bf16.gmra.mrb[0].mxu0 %v1288
      %v1361 = vpop.f32.mrb[0].mxu0
      %v1362 = vadd.f32 0.0, %v1361
      %v1363 = vpop.f32.mrb[0].mxu0
      %v1364 = vpop.f32.mrb[0].mxu0
      %v1365 = vadd.f32 0.0, %v1364
      %v1366 = vpop.f32.mrb[0].mxu0
      %1367 = vmatprep.mubr.bf16.mxu0 0
      %1368 = vmatmul.mubr.bf16.gmra.mrb[0].mxu0 %v1291
      %v1369 = vpop.f32.mrb[0].mxu0
      %v1370 = vadd.f32 0.0, %v1369
      %v1371 = vpop.f32.mrb[0].mxu0
      %v1372 = vpop.f32.mrb[0].mxu0
      %v1373 = vadd.f32 0.0, %v1372
      %v1374 = vpop.f32.mrb[0].mxu0
      %1375 = vmatprep.mubr.bf16.mxu0 0
      %1376 = vmatmul.mubr.bf16.gmra.mrb[0].mxu0 %v1294
      %v1377 = vpop.f32.mrb[0].mxu0
      %v1378 = vadd.f32 0.0, %v1377
      %v1379 = vpop.f32.mrb[0].mxu0
      %v1380 = vpop.f32.mrb[0].mxu0
      %v1381 = vadd.f32 0.0, %v1380
      %v1382 = vpop.f32.mrb[0].mxu0
      %1383 = vmatprep.mubr.bf16.mxu0 0
      %1384 = vmatmul.mubr.bf16.gmra.mrb[0].mxu0 %v1297
      %v1385 = vpop.f32.mrb[0].mxu0
      %v1386 = vadd.f32 0.0, %v1385
      %v1387 = vpop.f32.mrb[0].mxu0
      %v1388 = vpop.f32.mrb[0].mxu0
      %v1389 = vadd.f32 0.0, %v1388
      %v1390 = vpop.f32.mrb[0].mxu0
      %1391 = vmatprep.mubr.bf16.mxu0 0
      %1392 = vmatmul.mubr.bf16.gmra.mrb[0].mxu0 %v1300
      %v1393 = vpop.f32.mrb[0].mxu0
      %v1394 = vadd.f32 0.0, %v1393
      %v1395 = vpop.f32.mrb[0].mxu0
      %v1396 = vpop.f32.mrb[0].mxu0
      %v1397 = vadd.f32 0.0, %v1396
      %v1398 = vpop.f32.mrb[0].mxu0
      %1399 = vmatprep.mubr.bf16.mxu0 0
      %1400 = vmatmul.mubr.bf16.gmra.mrb[0].mxu0 %v1303
      %v1401 = vpop.f32.mrb[0].mxu0
      %v1402 = vadd.f32 0.0, %v1401
      %v1403 = vpop.f32.mrb[0].mxu0
      %v1404 = vpop.f32.mrb[0].mxu0
      %v1405 = vadd.f32 0.0, %v1404
      %v1406 = vpop.f32.mrb[0].mxu0
      %1407 = vmatprep.mubr.bf16.mxu0 0
      %1408 = vmatmul.mubr.bf16.gmra.mrb[0].mxu0 %v1306
      %v1409 = vpop.f32.mrb[0].mxu0
      %v1410 = vadd.f32 0.0, %v1409
      %v1411 = vpop.f32.mrb[0].mxu0
      %v1412 = vpop.f32.mrb[0].mxu0
      %v1413 = vadd.f32 0.0, %v1412
      %v1414 = vpop.f32.mrb[0].mxu0
      %1415 = vdwg.mxu0
      %v1416 = vadd.f32 %v1182, %v1346
      %v1417 = vadd.f32 %v1185, %v1349
      %v1418 = vadd.f32 %v1190, %v1354
      %v1419 = vadd.f32 %v1193, %v1357
      %v1420 = vadd.f32 %v1198, %v1362
      %v1421 = vadd.f32 %v1201, %v1365
      %v1422 = vadd.f32 %v1206, %v1370
      %v1423 = vadd.f32 %v1209, %v1373
      %v1424 = vadd.f32 %v1214, %v1378
      %v1425 = vadd.f32 %v1217, %v1381
      %v1426 = vadd.f32 %v1222, %v1386
      %v1427 = vadd.f32 %v1225, %v1389
      %v1428 = vadd.f32 %v1230, %v1394
      %v1429 = vadd.f32 %v1233, %v1397
      %v1430 = vadd.f32 %v1238, %v1402
      %v1431 = vadd.f32 %v1241, %v1405
      %v1432 = vadd.f32 %v1246, %v1410
      %v1433 = vadd.f32 %v1249, %v1413
      %v1434 = vld [vmem:[#allocation2 + $0x12] sm:$0xff]
      %v1435 = vld [vmem:[#allocation2 + $0x1a] sm:$0xff]
      %v1436 = vld [vmem:[#allocation2 + $0x22] sm:$0xff]
      %v1437 = vld [vmem:[#allocation2 + $0x2a] sm:$0xff]
      %v1438 = vld [vmem:[#allocation2 + $0x32] sm:$0xff]
      %v1439 = vld [vmem:[#allocation2 + $0x3a] sm:$0xff]
      %v1440 = vld [vmem:[#allocation2 + $0x42] sm:$0xff]
      %v1441 = vld [vmem:[#allocation2 + $0x4a] sm:$0xff]
      %v1442 = vld [vmem:[#allocation2 + $0x52] sm:$0xff]
      %v1443 = vld [vmem:[#allocation2 + $0x5a] sm:$0xff]
      %v1444 = vld [vmem:[#allocation2 + $0x62] sm:$0xff]
      %v1445 = vld [vmem:[#allocation2 + $0x6a] sm:$0xff]
      %v1446 = vld [vmem:[#allocation2 + $0x72] sm:$0xff]
      %v1447 = vld [vmem:[#allocation2 + $0x7a] sm:$0xff]
      %v1448 = vld [vmem:[#allocation2 + $0x82] sm:$0xff]
      %v1449 = vld [vmem:[#allocation2 + $0x8a] sm:$0xff]
      %v1450 = vld [vmem:[#allocation2 + $0x92] sm:$0xff]
      %v1451 = vld [vmem:[#allocation2 + $0x9a] sm:$0xff]
      %v1452 = vpack.c.bf16 %v1435, %v1434
      %v1453 = vpack.c.bf16 %v1437, %v1436
      %v1454 = vpack.c.bf16 %v1439, %v1438
      %v1455 = vpack.c.bf16 %v1441, %v1440
      %v1456 = vpack.c.bf16 %v1443, %v1442
      %v1457 = vpack.c.bf16 %v1445, %v1444
      %v1458 = vpack.c.bf16 %v1447, %v1446
      %v1459 = vpack.c.bf16 %v1449, %v1448
      %v1460 = vpack.c.bf16 %v1451, %v1450
      %s1461 = scalar_lea.vmem %s5, 6
      %v1462 = vld [vmem:[%s1461] sm:$0x3]
      %v1464 = vsel %vm899, %v1452, 0
      %v1467 = vsel %vm899, %v1453, 0
      %v1470 = vsel %vm899, %v1454, 0
      %v1473 = vsel %vm899, %v1455, 0
      %v1476 = vsel %vm899, %v1456, 0
      %v1479 = vsel %vm899, %v1457, 0
      %v1482 = vsel %vm899, %v1458, 0
      %v1485 = vsel %vm899, %v1459, 0
      %v1488 = vsel %vm899, %v1460, 0
      %v1491 = vsel %vm1008, %v1462, 0
      %1493 = vmatprep.subr.bf16.mxu0 0
      %1494 = vmatpush1.bf16.msra.mxu0 %v1491
      %1495 = vmatprep.subr.bf16.mxu0 0
      %1496 = vmatpush1.bf16.msra.mxu0 0
      %1497 = vmatprep.subr.bf16.mxu0 0
      %1498 = vmatpush1.bf16.msra.mxu0 0
      %1499 = vmatprep.subr.bf16.mxu0 0
      %1500 = vmatpush1.bf16.msra.mxu0 0
      %1501 = vmatprep.subr.bf16.mxu0 0
      %1502 = vmatpush1.bf16.msra.mxu0 0
      %1503 = vmatprep.subr.bf16.mxu0 0
      %1504 = vmatpush1.bf16.msra.mxu0 0
      %1505 = vmatprep.subr.bf16.mxu0 0
      %1506 = vmatpush1.bf16.msra.mxu0 0
      %1507 = vmatprep.subr.bf16.mxu0 0
      %1508 = vmatpush1.bf16.msra.mxu0 0
      %1509 = vmatprep.subr.bf16.mxu0 0
      %1510 = vmatpush1.bf16.msra.mxu0 0
      %1511 = vmatprep.subr.bf16.mxu0 0
      %1512 = vmatpush1.bf16.msra.mxu0 0
      %1513 = vmatprep.subr.bf16.mxu0 0
      %1514 = vmatpush1.bf16.msra.mxu0 0
      %1515 = vmatprep.subr.bf16.mxu0 0
      %1516 = vmatpush1.bf16.msra.mxu0 0
      %1517 = vmatprep.subr.bf16.mxu0 0
      %1518 = vmatpush1.bf16.msra.mxu0 0
      %1519 = vmatprep.subr.bf16.mxu0 0
      %1520 = vmatpush1.bf16.msra.mxu0 0
      %1521 = vmatprep.subr.bf16.mxu0 0
      %1522 = vmatpush1.bf16.msra.mxu0 0
      %1523 = vmatprep.subr.bf16.mxu0 0
      %1524 = vmatpush1.bf16.msra.mxu0 0
      %1525 = vmatprep.mubr.bf16.mxu0 0
      %1526 = vmatmul.mubr.bf16.gmra.mrb[0].mxu0 %v1464
      %v1527 = vpop.f32.mrb[0].mxu0
      %v1528 = vadd.f32 0.0, %v1527
      %v1529 = vpop.f32.mrb[0].mxu0
      %v1530 = vpop.f32.mrb[0].mxu0
      %v1531 = vadd.f32 0.0, %v1530
      %v1532 = vpop.f32.mrb[0].mxu0
      %1533 = vmatprep.mubr.bf16.mxu0 0
      %1534 = vmatmul.mubr.bf16.gmra.mrb[0].mxu0 %v1467
      %v1535 = vpop.f32.mrb[0].mxu0
      %v1536 = vadd.f32 0.0, %v1535
      %v1537 = vpop.f32.mrb[0].mxu0
      %v1538 = vpop.f32.mrb[0].mxu0
      %v1539 = vadd.f32 0.0, %v1538
      %v1540 = vpop.f32.mrb[0].mxu0
      %1541 = vmatprep.mubr.bf16.mxu0 0
      %1542 = vmatmul.mubr.bf16.gmra.mrb[0].mxu0 %v1470
      %v1543 = vpop.f32.mrb[0].mxu0
      %v1544 = vadd.f32 0.0, %v1543
      %v1545 = vpop.f32.mrb[0].mxu0
      %v1546 = vpop.f32.mrb[0].mxu0
      %v1547 = vadd.f32 0.0, %v1546
      %v1548 = vpop.f32.mrb[0].mxu0
      %1549 = vmatprep.mubr.bf16.mxu0 0
      %1550 = vmatmul.mubr.bf16.gmra.mrb[0].mxu0 %v1473
      %v1551 = vpop.f32.mrb[0].mxu0
      %v1552 = vadd.f32 0.0, %v1551
      %v1553 = vpop.f32.mrb[0].mxu0
      %v1554 = vpop.f32.mrb[0].mxu0
      %v1555 = vadd.f32 0.0, %v1554
      %v1556 = vpop.f32.mrb[0].mxu0
      %1557 = vmatprep.mubr.bf16.mxu0 0
      %1558 = vmatmul.mubr.bf16.gmra.mrb[0].mxu0 %v1476
      %v1559 = vpop.f32.mrb[0].mxu0
      %v1560 = vadd.f32 0.0, %v1559
      %v1561 = vpop.f32.mrb[0].mxu0
      %v1562 = vpop.f32.mrb[0].mxu0
      %v1563 = vadd.f32 0.0, %v1562
      %v1564 = vpop.f32.mrb[0].mxu0
      %1565 = vmatprep.mubr.bf16.mxu0 0
      %1566 = vmatmul.mubr.bf16.gmra.mrb[0].mxu0 %v1479
      %v1567 = vpop.f32.mrb[0].mxu0
      %v1568 = vadd.f32 0.0, %v1567
      %v1569 = vpop.f32.mrb[0].mxu0
      %v1570 = vpop.f32.mrb[0].mxu0
      %v1571 = vadd.f32 0.0, %v1570
      %v1572 = vpop.f32.mrb[0].mxu0
      %1573 = vmatprep.mubr.bf16.mxu0 0
      %1574 = vmatmul.mubr.bf16.gmra.mrb[0].mxu0 %v1482
      %v1575 = vpop.f32.mrb[0].mxu0
      %v1576 = vadd.f32 0.0, %v1575
      %v1577 = vpop.f32.mrb[0].mxu0
      %v1578 = vpop.f32.mrb[0].mxu0
      %v1579 = vadd.f32 0.0, %v1578
      %v1580 = vpop.f32.mrb[0].mxu0
      %1581 = vmatprep.mubr.bf16.mxu0 0
      %1582 = vmatmul.mubr.bf16.gmra.mrb[0].mxu0 %v1485
      %v1583 = vpop.f32.mrb[0].mxu0
      %v1584 = vadd.f32 0.0, %v1583
      %v1585 = vpop.f32.mrb[0].mxu0
      %v1586 = vpop.f32.mrb[0].mxu0
      %v1587 = vadd.f32 0.0, %v1586
      %v1588 = vpop.f32.mrb[0].mxu0
      %1589 = vmatprep.mubr.bf16.mxu0 0
      %1590 = vmatmul.mubr.bf16.gmra.mrb[0].mxu0 %v1488
      %v1591 = vpop.f32.mrb[0].mxu0
      %v1592 = vadd.f32 0.0, %v1591
      %v1593 = vpop.f32.mrb[0].mxu0
      %v1594 = vpop.f32.mrb[0].mxu0
      %v1595 = vadd.f32 0.0, %v1594
      %v1596 = vpop.f32.mrb[0].mxu0
      %1597 = vdwg.mxu0
      %v1598 = vadd.f32 %v1416, %v1528
      %v1599 = vadd.f32 %v1417, %v1531
      %v1600 = vadd.f32 %v1418, %v1536
      %v1601 = vadd.f32 %v1419, %v1539
      %v1602 = vadd.f32 %v1420, %v1544
      %v1603 = vadd.f32 %v1421, %v1547
      %v1604 = vadd.f32 %v1422, %v1552
      %v1605 = vadd.f32 %v1423, %v1555
      %v1606 = vadd.f32 %v1424, %v1560
      %v1607 = vadd.f32 %v1425, %v1563
      %v1608 = vadd.f32 %v1426, %v1568
      %v1609 = vadd.f32 %v1427, %v1571
      %v1610 = vadd.f32 %v1428, %v1576
      %v1611 = vadd.f32 %v1429, %v1579
      %v1612 = vadd.f32 %v1430, %v1584
      %v1613 = vadd.f32 %v1431, %v1587
      %v1614 = vadd.f32 %v1432, %v1592
      %v1615 = vadd.f32 %v1433, %v1595
      %v1616 = vld [vmem:[#allocation2 + $0x13] sm:$0xff]
      %v1617 = vld [vmem:[#allocation2 + $0x1b] sm:$0xff]
      %v1618 = vld [vmem:[#allocation2 + $0x23] sm:$0xff]
      %v1619 = vld [vmem:[#allocation2 + $0x2b] sm:$0xff]
      %v1620 = vld [vmem:[#allocation2 + $0x33] sm:$0xff]
      %v1621 = vld [vmem:[#allocation2 + $0x3b] sm:$0xff]
      %v1622 = vld [vmem:[#allocation2 + $0x43] sm:$0xff]
      %v1623 = vld [vmem:[#allocation2 + $0x4b] sm:$0xff]
      %v1624 = vld [vmem:[#allocation2 + $0x53] sm:$0xff]
      %v1625 = vld [vmem:[#allocation2 + $0x5b] sm:$0xff]
      %v1626 = vld [vmem:[#allocation2 + $0x63] sm:$0xff]
      %v1627 = vld [vmem:[#allocation2 + $0x6b] sm:$0xff]
      %v1628 = vld [vmem:[#allocation2 + $0x73] sm:$0xff]
      %v1629 = vld [vmem:[#allocation2 + $0x7b] sm:$0xff]
      %v1630 = vld [vmem:[#allocation2 + $0x83] sm:$0xff]
      %v1631 = vld [vmem:[#allocation2 + $0x8b] sm:$0xff]
      %v1632 = vld [vmem:[#allocation2 + $0x93] sm:$0xff]
      %v1633 = vld [vmem:[#allocation2 + $0x9b] sm:$0xff]
      %v1634 = vpack.c.bf16 %v1617, %v1616
      %v1635 = vpack.c.bf16 %v1619, %v1618
      %v1636 = vpack.c.bf16 %v1621, %v1620
      %v1637 = vpack.c.bf16 %v1623, %v1622
      %v1638 = vpack.c.bf16 %v1625, %v1624
      %v1639 = vpack.c.bf16 %v1627, %v1626
      %v1640 = vpack.c.bf16 %v1629, %v1628
      %v1641 = vpack.c.bf16 %v1631, %v1630
      %v1642 = vpack.c.bf16 %v1633, %v1632
      %s1643 = scalar_lea.vmem %s5, 8
      %v1644 = vld [vmem:[%s1643] sm:$0x3]
      %v1646 = vsel %vm899, %v1634, 0
      %v1649 = vsel %vm899, %v1635, 0
      %v1652 = vsel %vm899, %v1636, 0
      %v1655 = vsel %vm899, %v1637, 0
      %v1658 = vsel %vm899, %v1638, 0
      %v1661 = vsel %vm899, %v1639, 0
      %v1664 = vsel %vm899, %v1640, 0
      %v1667 = vsel %vm899, %v1641, 0
      %v1670 = vsel %vm899, %v1642, 0
      %v1673 = vsel %vm1008, %v1644, 0
      %1675 = vmatprep.subr.bf16.mxu0 0
      %1676 = vmatpush1.bf16.msra.mxu0 %v1673
      %1677 = vmatprep.subr.bf16.mxu0 0
      %1678 = vmatpush1.bf16.msra.mxu0 0
      %1679 = vmatprep.subr.bf16.mxu0 0
      %1680 = vmatpush1.bf16.msra.mxu0 0
      %1681 = vmatprep.subr.bf16.mxu0 0
      %1682 = vmatpush1.bf16.msra.mxu0 0
      %1683 = vmatprep.subr.bf16.mxu0 0
      %1684 = vmatpush1.bf16.msra.mxu0 0
      %1685 = vmatprep.subr.bf16.mxu0 0
      %1686 = vmatpush1.bf16.msra.mxu0 0
      %1687 = vmatprep.subr.bf16.mxu0 0
      %1688 = vmatpush1.bf16.msra.mxu0 0
      %1689 = vmatprep.subr.bf16.mxu0 0
      %1690 = vmatpush1.bf16.msra.mxu0 0
      %1691 = vmatprep.subr.bf16.mxu0 0
      %1692 = vmatpush1.bf16.msra.mxu0 0
      %1693 = vmatprep.subr.bf16.mxu0 0
      %1694 = vmatpush1.bf16.msra.mxu0 0
      %1695 = vmatprep.subr.bf16.mxu0 0
      %1696 = vmatpush1.bf16.msra.mxu0 0
      %1697 = vmatprep.subr.bf16.mxu0 0
      %1698 = vmatpush1.bf16.msra.mxu0 0
      %1699 = vmatprep.subr.bf16.mxu0 0
      %1700 = vmatpush1.bf16.msra.mxu0 0
      %1701 = vmatprep.subr.bf16.mxu0 0
      %1702 = vmatpush1.bf16.msra.mxu0 0
      %1703 = vmatprep.subr.bf16.mxu0 0
      %1704 = vmatpush1.bf16.msra.mxu0 0
      %1705 = vmatprep.subr.bf16.mxu0 0
      %1706 = vmatpush1.bf16.msra.mxu0 0
      %1707 = vmatprep.mubr.bf16.mxu0 0
      %1708 = vmatmul.mubr.bf16.gmra.mrb[0].mxu0 %v1646
      %v1709 = vpop.f32.mrb[0].mxu0
      %v1710 = vadd.f32 0.0, %v1709
      %v1711 = vpop.f32.mrb[0].mxu0
      %v1712 = vpop.f32.mrb[0].mxu0
      %v1713 = vadd.f32 0.0, %v1712
      %v1714 = vpop.f32.mrb[0].mxu0
      %1715 = vmatprep.mubr.bf16.mxu0 0
      %1716 = vmatmul.mubr.bf16.gmra.mrb[0].mxu0 %v1649
      %v1717 = vpop.f32.mrb[0].mxu0
      %v1718 = vadd.f32 0.0, %v1717
      %v1719 = vpop.f32.mrb[0].mxu0
      %v1720 = vpop.f32.mrb[0].mxu0
      %v1721 = vadd.f32 0.0, %v1720
      %v1722 = vpop.f32.mrb[0].mxu0
      %1723 = vmatprep.mubr.bf16.mxu0 0
      %1724 = vmatmul.mubr.bf16.gmra.mrb[0].mxu0 %v1652
      %v1725 = vpop.f32.mrb[0].mxu0
      %v1726 = vadd.f32 0.0, %v1725
      %v1727 = vpop.f32.mrb[0].mxu0
      %v1728 = vpop.f32.mrb[0].mxu0
      %v1729 = vadd.f32 0.0, %v1728
      %v1730 = vpop.f32.mrb[0].mxu0
      %1731 = vmatprep.mubr.bf16.mxu0 0
      %1732 = vmatmul.mubr.bf16.gmra.mrb[0].mxu0 %v1655
      %v1733 = vpop.f32.mrb[0].mxu0
      %v1734 = vadd.f32 0.0, %v1733
      %v1735 = vpop.f32.mrb[0].mxu0
      %v1736 = vpop.f32.mrb[0].mxu0
      %v1737 = vadd.f32 0.0, %v1736
      %v1738 = vpop.f32.mrb[0].mxu0
      %1739 = vmatprep.mubr.bf16.mxu0 0
      %1740 = vmatmul.mubr.bf16.gmra.mrb[0].mxu0 %v1658
      %v1741 = vpop.f32.mrb[0].mxu0
      %v1742 = vadd.f32 0.0, %v1741
      %v1743 = vpop.f32.mrb[0].mxu0
      %v1744 = vpop.f32.mrb[0].mxu0
      %v1745 = vadd.f32 0.0, %v1744
      %v1746 = vpop.f32.mrb[0].mxu0
      %1747 = vmatprep.mubr.bf16.mxu0 0
      %1748 = vmatmul.mubr.bf16.gmra.mrb[0].mxu0 %v1661
      %v1749 = vpop.f32.mrb[0].mxu0
      %v1750 = vadd.f32 0.0, %v1749
      %v1751 = vpop.f32.mrb[0].mxu0
      %v1752 = vpop.f32.mrb[0].mxu0
      %v1753 = vadd.f32 0.0, %v1752
      %v1754 = vpop.f32.mrb[0].mxu0
      %1755 = vmatprep.mubr.bf16.mxu0 0
      %1756 = vmatmul.mubr.bf16.gmra.mrb[0].mxu0 %v1664
      %v1757 = vpop.f32.mrb[0].mxu0
      %v1758 = vadd.f32 0.0, %v1757
      %v1759 = vpop.f32.mrb[0].mxu0
      %v1760 = vpop.f32.mrb[0].mxu0
      %v1761 = vadd.f32 0.0, %v1760
      %v1762 = vpop.f32.mrb[0].mxu0
      %1763 = vmatprep.mubr.bf16.mxu0 0
      %1764 = vmatmul.mubr.bf16.gmra.mrb[0].mxu0 %v1667
      %v1765 = vpop.f32.mrb[0].mxu0
      %v1766 = vadd.f32 0.0, %v1765
      %v1767 = vpop.f32.mrb[0].mxu0
      %v1768 = vpop.f32.mrb[0].mxu0
      %v1769 = vadd.f32 0.0, %v1768
      %v1770 = vpop.f32.mrb[0].mxu0
      %1771 = vmatprep.mubr.bf16.mxu0 0
      %1772 = vmatmul.mubr.bf16.gmra.mrb[0].mxu0 %v1670
      %v1773 = vpop.f32.mrb[0].mxu0
      %v1774 = vadd.f32 0.0, %v1773
      %v1775 = vpop.f32.mrb[0].mxu0
      %v1776 = vpop.f32.mrb[0].mxu0
      %v1777 = vadd.f32 0.0, %v1776
      %v1778 = vpop.f32.mrb[0].mxu0
      %1779 = vdwg.mxu0
      %v1780 = vadd.f32 %v1598, %v1710
      %v1781 = vadd.f32 %v1599, %v1713
      %v1782 = vadd.f32 %v1600, %v1718
      %v1783 = vadd.f32 %v1601, %v1721
      %v1784 = vadd.f32 %v1602, %v1726
      %v1785 = vadd.f32 %v1603, %v1729
      %v1786 = vadd.f32 %v1604, %v1734
      %v1787 = vadd.f32 %v1605, %v1737
      %v1788 = vadd.f32 %v1606, %v1742
      %v1789 = vadd.f32 %v1607, %v1745
      %v1790 = vadd.f32 %v1608, %v1750
      %v1791 = vadd.f32 %v1609, %v1753
      %v1792 = vadd.f32 %v1610, %v1758
      %v1793 = vadd.f32 %v1611, %v1761
      %v1794 = vadd.f32 %v1612, %v1766
      %v1795 = vadd.f32 %v1613, %v1769
      %v1796 = vadd.f32 %v1614, %v1774
      %v1797 = vadd.f32 %v1615, %v1777
      %v1798 = vld [vmem:[#allocation2 + $0x14] sm:$0xff]
      %v1799 = vld [vmem:[#allocation2 + $0x1c] sm:$0xff]
      %v1800 = vld [vmem:[#allocation2 + $0x24] sm:$0xff]
      %v1801 = vld [vmem:[#allocation2 + $0x2c] sm:$0xff]
      %v1802 = vld [vmem:[#allocation2 + $0x34] sm:$0xff]
      %v1803 = vld [vmem:[#allocation2 + $0x3c] sm:$0xff]
      %v1804 = vld [vmem:[#allocation2 + $0x44] sm:$0xff]
      %v1805 = vld [vmem:[#allocation2 + $0x4c] sm:$0xff]
      %v1806 = vld [vmem:[#allocation2 + $0x54] sm:$0xff]
      %v1807 = vld [vmem:[#allocation2 + $0x5c] sm:$0xff]
      %v1808 = vld [vmem:[#allocation2 + $0x64] sm:$0xff]
      %v1809 = vld [vmem:[#allocation2 + $0x6c] sm:$0xff]
      %v1810 = vld [vmem:[#allocation2 + $0x74] sm:$0xff]
      %v1811 = vld [vmem:[#allocation2 + $0x7c] sm:$0xff]
      %v1812 = vld [vmem:[#allocation2 + $0x84] sm:$0xff]
      %v1813 = vld [vmem:[#allocation2 + $0x8c] sm:$0xff]
      %v1814 = vld [vmem:[#allocation2 + $0x94] sm:$0xff]
      %v1815 = vld [vmem:[#allocation2 + $0x9c] sm:$0xff]
      %v1816 = vpack.c.bf16 %v1799, %v1798
      %v1817 = vpack.c.bf16 %v1801, %v1800
      %v1818 = vpack.c.bf16 %v1803, %v1802
      %v1819 = vpack.c.bf16 %v1805, %v1804
      %v1820 = vpack.c.bf16 %v1807, %v1806
      %v1821 = vpack.c.bf16 %v1809, %v1808
      %v1822 = vpack.c.bf16 %v1811, %v1810
      %v1823 = vpack.c.bf16 %v1813, %v1812
      %v1824 = vpack.c.bf16 %v1815, %v1814
      %s1825 = scalar_lea.vmem %s5, 10
      %v1826 = vld [vmem:[%s1825] sm:$0x3]
      %v1828 = vsel %vm899, %v1816, 0
      %v1831 = vsel %vm899, %v1817, 0
      %v1834 = vsel %vm899, %v1818, 0
      %v1837 = vsel %vm899, %v1819, 0
      %v1840 = vsel %vm899, %v1820, 0
      %v1843 = vsel %vm899, %v1821, 0
      %v1846 = vsel %vm899, %v1822, 0
      %v1849 = vsel %vm899, %v1823, 0
      %v1852 = vsel %vm899, %v1824, 0
      %v1855 = vsel %vm1008, %v1826, 0
      %1857 = vmatprep.subr.bf16.mxu0 0
      %1858 = vmatpush1.bf16.msra.mxu0 %v1855
      %1859 = vmatprep.subr.bf16.mxu0 0
      %1860 = vmatpush1.bf16.msra.mxu0 0
      %1861 = vmatprep.subr.bf16.mxu0 0
      %1862 = vmatpush1.bf16.msra.mxu0 0
      %1863 = vmatprep.subr.bf16.mxu0 0
      %1864 = vmatpush1.bf16.msra.mxu0 0
      %1865 = vmatprep.subr.bf16.mxu0 0
      %1866 = vmatpush1.bf16.msra.mxu0 0
      %1867 = vmatprep.subr.bf16.mxu0 0
      %1868 = vmatpush1.bf16.msra.mxu0 0
      %1869 = vmatprep.subr.bf16.mxu0 0
      %1870 = vmatpush1.bf16.msra.mxu0 0
      %1871 = vmatprep.subr.bf16.mxu0 0
      %1872 = vmatpush1.bf16.msra.mxu0 0
      %1873 = vmatprep.subr.bf16.mxu0 0
      %1874 = vmatpush1.bf16.msra.mxu0 0
      %1875 = vmatprep.subr.bf16.mxu0 0
      %1876 = vmatpush1.bf16.msra.mxu0 0
      %1877 = vmatprep.subr.bf16.mxu0 0
      %1878 = vmatpush1.bf16.msra.mxu0 0
      %1879 = vmatprep.subr.bf16.mxu0 0
      %1880 = vmatpush1.bf16.msra.mxu0 0
      %1881 = vmatprep.subr.bf16.mxu0 0
      %1882 = vmatpush1.bf16.msra.mxu0 0
      %1883 = vmatprep.subr.bf16.mxu0 0
      %1884 = vmatpush1.bf16.msra.mxu0 0
      %1885 = vmatprep.subr.bf16.mxu0 0
      %1886 = vmatpush1.bf16.msra.mxu0 0
      %1887 = vmatprep.subr.bf16.mxu0 0
      %1888 = vmatpush1.bf16.msra.mxu0 0
      %1889 = vmatprep.mubr.bf16.mxu0 0
      %1890 = vmatmul.mubr.bf16.gmra.mrb[0].mxu0 %v1828
      %v1891 = vpop.f32.mrb[0].mxu0
      %v1892 = vadd.f32 0.0, %v1891
      %v1893 = vpop.f32.mrb[0].mxu0
      %v1894 = vpop.f32.mrb[0].mxu0
      %v1895 = vadd.f32 0.0, %v1894
      %v1896 = vpop.f32.mrb[0].mxu0
      %1897 = vmatprep.mubr.bf16.mxu0 0
      %1898 = vmatmul.mubr.bf16.gmra.mrb[0].mxu0 %v1831
      %v1899 = vpop.f32.mrb[0].mxu0
      %v1900 = vadd.f32 0.0, %v1899
      %v1901 = vpop.f32.mrb[0].mxu0
      %v1902 = vpop.f32.mrb[0].mxu0
      %v1903 = vadd.f32 0.0, %v1902
      %v1904 = vpop.f32.mrb[0].mxu0
      %1905 = vmatprep.mubr.bf16.mxu0 0
      %1906 = vmatmul.mubr.bf16.gmra.mrb[0].mxu0 %v1834
      %v1907 = vpop.f32.mrb[0].mxu0
      %v1908 = vadd.f32 0.0, %v1907
      %v1909 = vpop.f32.mrb[0].mxu0
      %v1910 = vpop.f32.mrb[0].mxu0
      %v1911 = vadd.f32 0.0, %v1910
      %v1912 = vpop.f32.mrb[0].mxu0
      %1913 = vmatprep.mubr.bf16.mxu0 0
      %1914 = vmatmul.mubr.bf16.gmra.mrb[0].mxu0 %v1837
      %v1915 = vpop.f32.mrb[0].mxu0
      %v1916 = vadd.f32 0.0, %v1915
      %v1917 = vpop.f32.mrb[0].mxu0
      %v1918 = vpop.f32.mrb[0].mxu0
      %v1919 = vadd.f32 0.0, %v1918
      %v1920 = vpop.f32.mrb[0].mxu0
      %1921 = vmatprep.mubr.bf16.mxu0 0
      %1922 = vmatmul.mubr.bf16.gmra.mrb[0].mxu0 %v1840
      %v1923 = vpop.f32.mrb[0].mxu0
      %v1924 = vadd.f32 0.0, %v1923
      %v1925 = vpop.f32.mrb[0].mxu0
      %v1926 = vpop.f32.mrb[0].mxu0
      %v1927 = vadd.f32 0.0, %v1926
      %v1928 = vpop.f32.mrb[0].mxu0
      %1929 = vmatprep.mubr.bf16.mxu0 0
      %1930 = vmatmul.mubr.bf16.gmra.mrb[0].mxu0 %v1843
      %v1931 = vpop.f32.mrb[0].mxu0
      %v1932 = vadd.f32 0.0, %v1931
      %v1933 = vpop.f32.mrb[0].mxu0
      %v1934 = vpop.f32.mrb[0].mxu0
      %v1935 = vadd.f32 0.0, %v1934
      %v1936 = vpop.f32.mrb[0].mxu0
      %1937 = vmatprep.mubr.bf16.mxu0 0
      %1938 = vmatmul.mubr.bf16.gmra.mrb[0].mxu0 %v1846
      %v1939 = vpop.f32.mrb[0].mxu0
      %v1940 = vadd.f32 0.0, %v1939
      %v1941 = vpop.f32.mrb[0].mxu0
      %v1942 = vpop.f32.mrb[0].mxu0
      %v1943 = vadd.f32 0.0, %v1942
      %v1944 = vpop.f32.mrb[0].mxu0
      %1945 = vmatprep.mubr.bf16.mxu0 0
      %1946 = vmatmul.mubr.bf16.gmra.mrb[0].mxu0 %v1849
      %v1947 = vpop.f32.mrb[0].mxu0
      %v1948 = vadd.f32 0.0, %v1947
      %v1949 = vpop.f32.mrb[0].mxu0
      %v1950 = vpop.f32.mrb[0].mxu0
      %v1951 = vadd.f32 0.0, %v1950
      %v1952 = vpop.f32.mrb[0].mxu0
      %1953 = vmatprep.mubr.bf16.mxu0 0
      %1954 = vmatmul.mubr.bf16.gmra.mrb[0].mxu0 %v1852
      %v1955 = vpop.f32.mrb[0].mxu0
      %v1956 = vadd.f32 0.0, %v1955
      %v1957 = vpop.f32.mrb[0].mxu0
      %v1958 = vpop.f32.mrb[0].mxu0
      %v1959 = vadd.f32 0.0, %v1958
      %v1960 = vpop.f32.mrb[0].mxu0
      %1961 = vdwg.mxu0
      %v1962 = vadd.f32 %v1780, %v1892
      %v1963 = vadd.f32 %v1781, %v1895
      %v1964 = vadd.f32 %v1782, %v1900
      %v1965 = vadd.f32 %v1783, %v1903
      %v1966 = vadd.f32 %v1784, %v1908
      %v1967 = vadd.f32 %v1785, %v1911
      %v1968 = vadd.f32 %v1786, %v1916
      %v1969 = vadd.f32 %v1787, %v1919
      %v1970 = vadd.f32 %v1788, %v1924
      %v1971 = vadd.f32 %v1789, %v1927
      %v1972 = vadd.f32 %v1790, %v1932
      %v1973 = vadd.f32 %v1791, %v1935
      %v1974 = vadd.f32 %v1792, %v1940
      %v1975 = vadd.f32 %v1793, %v1943
      %v1976 = vadd.f32 %v1794, %v1948
      %v1977 = vadd.f32 %v1795, %v1951
      %v1978 = vadd.f32 %v1796, %v1956
      %v1979 = vadd.f32 %v1797, %v1959
      %v1980 = vld [vmem:[#allocation2 + $0x24] sm:$0xff]
      %v1981 = vld [vmem:[#allocation2 + $0x2c] sm:$0xff]
      %v1982 = vld [vmem:[#allocation2 + $0x34] sm:$0xff]
      %v1983 = vld [vmem:[#allocation2 + $0x3c] sm:$0xff]
      %v1984 = vld [vmem:[#allocation2 + $0x44] sm:$0xff]
      %v1985 = vld [vmem:[#allocation2 + $0x4c] sm:$0xff]
      %v1986 = vld [vmem:[#allocation2 + $0x54] sm:$0xff]
      %v1987 = vld [vmem:[#allocation2 + $0x5c] sm:$0xff]
      %v1988 = vld [vmem:[#allocation2 + $0x64] sm:$0xff]
      %v1989 = vld [vmem:[#allocation2 + $0x6c] sm:$0xff]
      %v1990 = vld [vmem:[#allocation2 + $0x74] sm:$0xff]
      %v1991 = vld [vmem:[#allocation2 + $0x7c] sm:$0xff]
      %v1992 = vld [vmem:[#allocation2 + $0x84] sm:$0xff]
      %v1993 = vld [vmem:[#allocation2 + $0x8c] sm:$0xff]
      %v1994 = vld [vmem:[#allocation2 + $0x94] sm:$0xff]
      %v1995 = vld [vmem:[#allocation2 + $0x9c] sm:$0xff]
      %v1996 = vld [vmem:[#allocation2 + $0xa4] sm:$0xff]
      %v1997 = vld [vmem:[#allocation2 + $0xac] sm:$0xff]
      %v1998 = vpack.c.bf16 %v1981, %v1980
      %v1999 = vpack.c.bf16 %v1983, %v1982
      %v2000 = vpack.c.bf16 %v1985, %v1984
      %v2001 = vpack.c.bf16 %v1987, %v1986
      %v2002 = vpack.c.bf16 %v1989, %v1988
      %v2003 = vpack.c.bf16 %v1991, %v1990
      %v2004 = vpack.c.bf16 %v1993, %v1992
      %v2005 = vpack.c.bf16 %v1995, %v1994
      %v2006 = vpack.c.bf16 %v1997, %v1996
      %s2007 = scalar_lea.vmem %s5, 12
      %v2008 = vld [vmem:[%s2007] sm:$0x3]
      %v2010 = vsel %vm899, %v1998, 0
      %v2013 = vsel %vm899, %v1999, 0
      %v2016 = vsel %vm899, %v2000, 0
      %v2019 = vsel %vm899, %v2001, 0
      %v2022 = vsel %vm899, %v2002, 0
      %v2025 = vsel %vm899, %v2003, 0
      %v2028 = vsel %vm899, %v2004, 0
      %v2031 = vsel %vm899, %v2005, 0
      %v2034 = vsel %vm899, %v2006, 0
      %v2037 = vsel %vm1008, %v2008, 0
      %2039 = vmatprep.subr.bf16.mxu0 0
      %2040 = vmatpush1.bf16.msra.mxu0 %v2037
      %2041 = vmatprep.subr.bf16.mxu0 0
      %2042 = vmatpush1.bf16.msra.mxu0 0
      %2043 = vmatprep.subr.bf16.mxu0 0
      %2044 = vmatpush1.bf16.msra.mxu0 0
      %2045 = vmatprep.subr.bf16.mxu0 0
      %2046 = vmatpush1.bf16.msra.mxu0 0
      %2047 = vmatprep.subr.bf16.mxu0 0
      %2048 = vmatpush1.bf16.msra.mxu0 0
      %2049 = vmatprep.subr.bf16.mxu0 0
      %2050 = vmatpush1.bf16.msra.mxu0 0
      %2051 = vmatprep.subr.bf16.mxu0 0
      %2052 = vmatpush1.bf16.msra.mxu0 0
      %2053 = vmatprep.subr.bf16.mxu0 0
      %2054 = vmatpush1.bf16.msra.mxu0 0
      %2055 = vmatprep.subr.bf16.mxu0 0
      %2056 = vmatpush1.bf16.msra.mxu0 0
      %2057 = vmatprep.subr.bf16.mxu0 0
      %2058 = vmatpush1.bf16.msra.mxu0 0
      %2059 = vmatprep.subr.bf16.mxu0 0
      %2060 = vmatpush1.bf16.msra.mxu0 0
      %2061 = vmatprep.subr.bf16.mxu0 0
      %2062 = vmatpush1.bf16.msra.mxu0 0
      %2063 = vmatprep.subr.bf16.mxu0 0
      %2064 = vmatpush1.bf16.msra.mxu0 0
      %2065 = vmatprep.subr.bf16.mxu0 0
      %2066 = vmatpush1.bf16.msra.mxu0 0
      %2067 = vmatprep.subr.bf16.mxu0 0
      %2068 = vmatpush1.bf16.msra.mxu0 0
      %2069 = vmatprep.subr.bf16.mxu0 0
      %2070 = vmatpush1.bf16.msra.mxu0 0
      %2071 = vmatprep.mubr.bf16.mxu0 0
      %2072 = vmatmul.mubr.bf16.gmra.mrb[0].mxu0 %v2010
      %v2073 = vpop.f32.mrb[0].mxu0
      %v2074 = vadd.f32 0.0, %v2073
      %v2075 = vpop.f32.mrb[0].mxu0
      %v2076 = vpop.f32.mrb[0].mxu0
      %v2077 = vadd.f32 0.0, %v2076
      %v2078 = vpop.f32.mrb[0].mxu0
      %2079 = vmatprep.mubr.bf16.mxu0 0
      %2080 = vmatmul.mubr.bf16.gmra.mrb[0].mxu0 %v2013
      %v2081 = vpop.f32.mrb[0].mxu0
      %v2082 = vadd.f32 0.0, %v2081
      %v2083 = vpop.f32.mrb[0].mxu0
      %v2084 = vpop.f32.mrb[0].mxu0
      %v2085 = vadd.f32 0.0, %v2084
      %v2086 = vpop.f32.mrb[0].mxu0
      %2087 = vmatprep.mubr.bf16.mxu0 0
      %2088 = vmatmul.mubr.bf16.gmra.mrb[0].mxu0 %v2016
      %v2089 = vpop.f32.mrb[0].mxu0
      %v2090 = vadd.f32 0.0, %v2089
      %v2091 = vpop.f32.mrb[0].mxu0
      %v2092 = vpop.f32.mrb[0].mxu0
      %v2093 = vadd.f32 0.0, %v2092
      %v2094 = vpop.f32.mrb[0].mxu0
      %2095 = vmatprep.mubr.bf16.mxu0 0
      %2096 = vmatmul.mubr.bf16.gmra.mrb[0].mxu0 %v2019
      %v2097 = vpop.f32.mrb[0].mxu0
      %v2098 = vadd.f32 0.0, %v2097
      %v2099 = vpop.f32.mrb[0].mxu0
      %v2100 = vpop.f32.mrb[0].mxu0
      %v2101 = vadd.f32 0.0, %v2100
      %v2102 = vpop.f32.mrb[0].mxu0
      %2103 = vmatprep.mubr.bf16.mxu0 0
      %2104 = vmatmul.mubr.bf16.gmra.mrb[0].mxu0 %v2022
      %v2105 = vpop.f32.mrb[0].mxu0
      %v2106 = vadd.f32 0.0, %v2105
      %v2107 = vpop.f32.mrb[0].mxu0
      %v2108 = vpop.f32.mrb[0].mxu0
      %v2109 = vadd.f32 0.0, %v2108
      %v2110 = vpop.f32.mrb[0].mxu0
      %2111 = vmatprep.mubr.bf16.mxu0 0
      %2112 = vmatmul.mubr.bf16.gmra.mrb[0].mxu0 %v2025
      %v2113 = vpop.f32.mrb[0].mxu0
      %v2114 = vadd.f32 0.0, %v2113
      %v2115 = vpop.f32.mrb[0].mxu0
      %v2116 = vpop.f32.mrb[0].mxu0
      %v2117 = vadd.f32 0.0, %v2116
      %v2118 = vpop.f32.mrb[0].mxu0
      %2119 = vmatprep.mubr.bf16.mxu0 0
      %2120 = vmatmul.mubr.bf16.gmra.mrb[0].mxu0 %v2028
      %v2121 = vpop.f32.mrb[0].mxu0
      %v2122 = vadd.f32 0.0, %v2121
      %v2123 = vpop.f32.mrb[0].mxu0
      %v2124 = vpop.f32.mrb[0].mxu0
      %v2125 = vadd.f32 0.0, %v2124
      %v2126 = vpop.f32.mrb[0].mxu0
      %2127 = vmatprep.mubr.bf16.mxu0 0
      %2128 = vmatmul.mubr.bf16.gmra.mrb[0].mxu0 %v2031
      %v2129 = vpop.f32.mrb[0].mxu0
      %v2130 = vadd.f32 0.0, %v2129
      %v2131 = vpop.f32.mrb[0].mxu0
      %v2132 = vpop.f32.mrb[0].mxu0
      %v2133 = vadd.f32 0.0, %v2132
      %v2134 = vpop.f32.mrb[0].mxu0
      %2135 = vmatprep.mubr.bf16.mxu0 0
      %2136 = vmatmul.mubr.bf16.gmra.mrb[0].mxu0 %v2034
      %v2137 = vpop.f32.mrb[0].mxu0
      %v2138 = vadd.f32 0.0, %v2137
      %v2139 = vpop.f32.mrb[0].mxu0
      %v2140 = vpop.f32.mrb[0].mxu0
      %v2141 = vadd.f32 0.0, %v2140
      %v2142 = vpop.f32.mrb[0].mxu0
      %2143 = vdwg.mxu0
      %v2144 = vadd.f32 %v1962, %v2074
      %v2145 = vadd.f32 %v1963, %v2077
      %v2146 = vadd.f32 %v1964, %v2082
      %v2147 = vadd.f32 %v1965, %v2085
      %v2148 = vadd.f32 %v1966, %v2090
      %v2149 = vadd.f32 %v1967, %v2093
      %v2150 = vadd.f32 %v1968, %v2098
      %v2151 = vadd.f32 %v1969, %v2101
      %v2152 = vadd.f32 %v1970, %v2106
      %v2153 = vadd.f32 %v1971, %v2109
      %v2154 = vadd.f32 %v1972, %v2114
      %v2155 = vadd.f32 %v1973, %v2117
      %v2156 = vadd.f32 %v1974, %v2122
      %v2157 = vadd.f32 %v1975, %v2125
      %v2158 = vadd.f32 %v1976, %v2130
      %v2159 = vadd.f32 %v1977, %v2133
      %v2160 = vadd.f32 %v1978, %v2138
      %v2161 = vadd.f32 %v1979, %v2141
      %v2162 = vld [vmem:[#allocation2 + $0x25] sm:$0xff]
      %v2163 = vld [vmem:[#allocation2 + $0x2d] sm:$0xff]
      %v2164 = vld [vmem:[#allocation2 + $0x35] sm:$0xff]
      %v2165 = vld [vmem:[#allocation2 + $0x3d] sm:$0xff]
      %v2166 = vld [vmem:[#allocation2 + $0x45] sm:$0xff]
      %v2167 = vld [vmem:[#allocation2 + $0x4d] sm:$0xff]
      %v2168 = vld [vmem:[#allocation2 + $0x55] sm:$0xff]
      %v2169 = vld [vmem:[#allocation2 + $0x5d] sm:$0xff]
      %v2170 = vld [vmem:[#allocation2 + $0x65] sm:$0xff]
      %v2171 = vld [vmem:[#allocation2 + $0x6d] sm:$0xff]
      %v2172 = vld [vmem:[#allocation2 + $0x75] sm:$0xff]
      %v2173 = vld [vmem:[#allocation2 + $0x7d] sm:$0xff]
      %v2174 = vld [vmem:[#allocation2 + $0x85] sm:$0xff]
      %v2175 = vld [vmem:[#allocation2 + $0x8d] sm:$0xff]
      %v2176 = vld [vmem:[#allocation2 + $0x95] sm:$0xff]
      %v2177 = vld [vmem:[#allocation2 + $0x9d] sm:$0xff]
      %v2178 = vld [vmem:[#allocation2 + $0xa5] sm:$0xff]
      %v2179 = vld [vmem:[#allocation2 + $0xad] sm:$0xff]
      %v2180 = vpack.c.bf16 %v2163, %v2162
      %v2181 = vpack.c.bf16 %v2165, %v2164
      %v2182 = vpack.c.bf16 %v2167, %v2166
      %v2183 = vpack.c.bf16 %v2169, %v2168
      %v2184 = vpack.c.bf16 %v2171, %v2170
      %v2185 = vpack.c.bf16 %v2173, %v2172
      %v2186 = vpack.c.bf16 %v2175, %v2174
      %v2187 = vpack.c.bf16 %v2177, %v2176
      %v2188 = vpack.c.bf16 %v2179, %v2178
      %s2189 = scalar_lea.vmem %s5, 14
      %v2190 = vld [vmem:[%s2189] sm:$0x3]
      %v2192 = vsel %vm899, %v2180, 0
      %v2195 = vsel %vm899, %v2181, 0
      %v2198 = vsel %vm899, %v2182, 0
      %v2201 = vsel %vm899, %v2183, 0
      %v2204 = vsel %vm899, %v2184, 0
      %v2207 = vsel %vm899, %v2185, 0
      %v2210 = vsel %vm899, %v2186, 0
      %v2213 = vsel %vm899, %v2187, 0
      %v2216 = vsel %vm899, %v2188, 0
      %v2219 = vsel %vm1008, %v2190, 0
      %2221 = vmatprep.subr.bf16.mxu0 0
      %2222 = vmatpush1.bf16.msra.mxu0 %v2219
      %2223 = vmatprep.subr.bf16.mxu0 0
      %2224 = vmatpush1.bf16.msra.mxu0 0
      %2225 = vmatprep.subr.bf16.mxu0 0
      %2226 = vmatpush1.bf16.msra.mxu0 0
      %2227 = vmatprep.subr.bf16.mxu0 0
      %2228 = vmatpush1.bf16.msra.mxu0 0
      %2229 = vmatprep.subr.bf16.mxu0 0
      %2230 = vmatpush1.bf16.msra.mxu0 0
      %2231 = vmatprep.subr.bf16.mxu0 0
      %2232 = vmatpush1.bf16.msra.mxu0 0
      %2233 = vmatprep.subr.bf16.mxu0 0
      %2234 = vmatpush1.bf16.msra.mxu0 0
      %2235 = vmatprep.subr.bf16.mxu0 0
      %2236 = vmatpush1.bf16.msra.mxu0 0
      %2237 = vmatprep.subr.bf16.mxu0 0
      %2238 = vmatpush1.bf16.msra.mxu0 0
      %2239 = vmatprep.subr.bf16.mxu0 0
      %2240 = vmatpush1.bf16.msra.mxu0 0
      %2241 = vmatprep.subr.bf16.mxu0 0
      %2242 = vmatpush1.bf16.msra.mxu0 0
      %2243 = vmatprep.subr.bf16.mxu0 0
      %2244 = vmatpush1.bf16.msra.mxu0 0
      %2245 = vmatprep.subr.bf16.mxu0 0
      %2246 = vmatpush1.bf16.msra.mxu0 0
      %2247 = vmatprep.subr.bf16.mxu0 0
      %2248 = vmatpush1.bf16.msra.mxu0 0
      %2249 = vmatprep.subr.bf16.mxu0 0
      %2250 = vmatpush1.bf16.msra.mxu0 0
      %2251 = vmatprep.subr.bf16.mxu0 0
      %2252 = vmatpush1.bf16.msra.mxu0 0
      %2253 = vmatprep.mubr.bf16.mxu0 0
      %2254 = vmatmul.mubr.bf16.gmra.mrb[0].mxu0 %v2192
      %v2255 = vpop.f32.mrb[0].mxu0
      %v2256 = vadd.f32 0.0, %v2255
      %v2257 = vpop.f32.mrb[0].mxu0
      %v2258 = vpop.f32.mrb[0].mxu0
      %v2259 = vadd.f32 0.0, %v2258
      %v2260 = vpop.f32.mrb[0].mxu0
      %2261 = vmatprep.mubr.bf16.mxu0 0
      %2262 = vmatmul.mubr.bf16.gmra.mrb[0].mxu0 %v2195
      %v2263 = vpop.f32.mrb[0].mxu0
      %v2264 = vadd.f32 0.0, %v2263
      %v2265 = vpop.f32.mrb[0].mxu0
      %v2266 = vpop.f32.mrb[0].mxu0
      %v2267 = vadd.f32 0.0, %v2266
      %v2268 = vpop.f32.mrb[0].mxu0
      %2269 = vmatprep.mubr.bf16.mxu0 0
      %2270 = vmatmul.mubr.bf16.gmra.mrb[0].mxu0 %v2198
      %v2271 = vpop.f32.mrb[0].mxu0
      %v2272 = vadd.f32 0.0, %v2271
      %v2273 = vpop.f32.mrb[0].mxu0
      %v2274 = vpop.f32.mrb[0].mxu0
      %v2275 = vadd.f32 0.0, %v2274
      %v2276 = vpop.f32.mrb[0].mxu0
      %2277 = vmatprep.mubr.bf16.mxu0 0
      %2278 = vmatmul.mubr.bf16.gmra.mrb[0].mxu0 %v2201
      %v2279 = vpop.f32.mrb[0].mxu0
      %v2280 = vadd.f32 0.0, %v2279
      %v2281 = vpop.f32.mrb[0].mxu0
      %v2282 = vpop.f32.mrb[0].mxu0
      %v2283 = vadd.f32 0.0, %v2282
      %v2284 = vpop.f32.mrb[0].mxu0
      %2285 = vmatprep.mubr.bf16.mxu0 0
      %2286 = vmatmul.mubr.bf16.gmra.mrb[0].mxu0 %v2204
      %v2287 = vpop.f32.mrb[0].mxu0
      %v2288 = vadd.f32 0.0, %v2287
      %v2289 = vpop.f32.mrb[0].mxu0
      %v2290 = vpop.f32.mrb[0].mxu0
      %v2291 = vadd.f32 0.0, %v2290
      %v2292 = vpop.f32.mrb[0].mxu0
      %2293 = vmatprep.mubr.bf16.mxu0 0
      %2294 = vmatmul.mubr.bf16.gmra.mrb[0].mxu0 %v2207
      %v2295 = vpop.f32.mrb[0].mxu0
      %v2296 = vadd.f32 0.0, %v2295
      %v2297 = vpop.f32.mrb[0].mxu0
      %v2298 = vpop.f32.mrb[0].mxu0
      %v2299 = vadd.f32 0.0, %v2298
      %v2300 = vpop.f32.mrb[0].mxu0
      %2301 = vmatprep.mubr.bf16.mxu0 0
      %2302 = vmatmul.mubr.bf16.gmra.mrb[0].mxu0 %v2210
      %v2303 = vpop.f32.mrb[0].mxu0
      %v2304 = vadd.f32 0.0, %v2303
      %v2305 = vpop.f32.mrb[0].mxu0
      %v2306 = vpop.f32.mrb[0].mxu0
      %v2307 = vadd.f32 0.0, %v2306
      %v2308 = vpop.f32.mrb[0].mxu0
      %2309 = vmatprep.mubr.bf16.mxu0 0
      %2310 = vmatmul.mubr.bf16.gmra.mrb[0].mxu0 %v2213
      %v2311 = vpop.f32.mrb[0].mxu0
      %v2312 = vadd.f32 0.0, %v2311
      %v2313 = vpop.f32.mrb[0].mxu0
      %v2314 = vpop.f32.mrb[0].mxu0
      %v2315 = vadd.f32 0.0, %v2314
      %v2316 = vpop.f32.mrb[0].mxu0
      %2317 = vmatprep.mubr.bf16.mxu0 0
      %2318 = vmatmul.mubr.bf16.gmra.mrb[0].mxu0 %v2216
      %v2319 = vpop.f32.mrb[0].mxu0
      %v2320 = vadd.f32 0.0, %v2319
      %v2321 = vpop.f32.mrb[0].mxu0
      %v2322 = vpop.f32.mrb[0].mxu0
      %v2323 = vadd.f32 0.0, %v2322
      %v2324 = vpop.f32.mrb[0].mxu0
      %2325 = vdwg.mxu0
      %v2326 = vadd.f32 %v2144, %v2256
      %v2327 = vadd.f32 %v2145, %v2259
      %v2328 = vadd.f32 %v2146, %v2264
      %v2329 = vadd.f32 %v2147, %v2267
      %v2330 = vadd.f32 %v2148, %v2272
      %v2331 = vadd.f32 %v2149, %v2275
      %v2332 = vadd.f32 %v2150, %v2280
      %v2333 = vadd.f32 %v2151, %v2283
      %v2334 = vadd.f32 %v2152, %v2288
      %v2335 = vadd.f32 %v2153, %v2291
      %v2336 = vadd.f32 %v2154, %v2296
      %v2337 = vadd.f32 %v2155, %v2299
      %v2338 = vadd.f32 %v2156, %v2304
      %v2339 = vadd.f32 %v2157, %v2307
      %v2340 = vadd.f32 %v2158, %v2312
      %v2341 = vadd.f32 %v2159, %v2315
      %v2342 = vadd.f32 %v2160, %v2320
      %v2343 = vadd.f32 %v2161, %v2323
      %v2344 = vld [vmem:[#allocation2 + $0x26] sm:$0xff]
      %v2345 = vld [vmem:[#allocation2 + $0x2e] sm:$0xff]
      %v2346 = vld [vmem:[#allocation2 + $0x36] sm:$0xff]
      %v2347 = vld [vmem:[#allocation2 + $0x3e] sm:$0xff]
      %v2348 = vld [vmem:[#allocation2 + $0x46] sm:$0xff]
      %v2349 = vld [vmem:[#allocation2 + $0x4e] sm:$0xff]
      %v2350 = vld [vmem:[#allocation2 + $0x56] sm:$0xff]
      %v2351 = vld [vmem:[#allocation2 + $0x5e] sm:$0xff]
      %v2352 = vld [vmem:[#allocation2 + $0x66] sm:$0xff]
      %v2353 = vld [vmem:[#allocation2 + $0x6e] sm:$0xff]
      %v2354 = vld [vmem:[#allocation2 + $0x76] sm:$0xff]
      %v2355 = vld [vmem:[#allocation2 + $0x7e] sm:$0xff]
      %v2356 = vld [vmem:[#allocation2 + $0x86] sm:$0xff]
      %v2357 = vld [vmem:[#allocation2 + $0x8e] sm:$0xff]
      %v2358 = vld [vmem:[#allocation2 + $0x96] sm:$0xff]
      %v2359 = vld [vmem:[#allocation2 + $0x9e] sm:$0xff]
      %v2360 = vld [vmem:[#allocation2 + $0xa6] sm:$0xff]
      %v2361 = vld [vmem:[#allocation2 + $0xae] sm:$0xff]
      %v2362 = vpack.c.bf16 %v2345, %v2344
      %v2363 = vpack.c.bf16 %v2347, %v2346
      %v2364 = vpack.c.bf16 %v2349, %v2348
      %v2365 = vpack.c.bf16 %v2351, %v2350
      %v2366 = vpack.c.bf16 %v2353, %v2352
      %v2367 = vpack.c.bf16 %v2355, %v2354
      %v2368 = vpack.c.bf16 %v2357, %v2356
      %v2369 = vpack.c.bf16 %v2359, %v2358
      %v2370 = vpack.c.bf16 %v2361, %v2360
      %s2371 = scalar_lea.vmem %s5, 16
      %v2372 = vld [vmem:[%s2371] sm:$0x3]
      %v2374 = vsel %vm899, %v2362, 0
      %v2377 = vsel %vm899, %v2363, 0
      %v2380 = vsel %vm899, %v2364, 0
      %v2383 = vsel %vm899, %v2365, 0
      %v2386 = vsel %vm899, %v2366, 0
      %v2389 = vsel %vm899, %v2367, 0
      %v2392 = vsel %vm899, %v2368, 0
      %v2395 = vsel %vm899, %v2369, 0
      %v2398 = vsel %vm899, %v2370, 0
      %v2401 = vsel %vm1008, %v2372, 0
      %2403 = vmatprep.subr.bf16.mxu0 0
      %2404 = vmatpush1.bf16.msra.mxu0 %v2401
      %2405 = vmatprep.subr.bf16.mxu0 0
      %2406 = vmatpush1.bf16.msra.mxu0 0
      %2407 = vmatprep.subr.bf16.mxu0 0
      %2408 = vmatpush1.bf16.msra.mxu0 0
      %2409 = vmatprep.subr.bf16.mxu0 0
      %2410 = vmatpush1.bf16.msra.mxu0 0
      %2411 = vmatprep.subr.bf16.mxu0 0
      %2412 = vmatpush1.bf16.msra.mxu0 0
      %2413 = vmatprep.subr.bf16.mxu0 0
      %2414 = vmatpush1.bf16.msra.mxu0 0
      %2415 = vmatprep.subr.bf16.mxu0 0
      %2416 = vmatpush1.bf16.msra.mxu0 0
      %2417 = vmatprep.subr.bf16.mxu0 0
      %2418 = vmatpush1.bf16.msra.mxu0 0
      %2419 = vmatprep.subr.bf16.mxu0 0
      %2420 = vmatpush1.bf16.msra.mxu0 0
      %2421 = vmatprep.subr.bf16.mxu0 0
      %2422 = vmatpush1.bf16.msra.mxu0 0
      %2423 = vmatprep.subr.bf16.mxu0 0
      %2424 = vmatpush1.bf16.msra.mxu0 0
      %2425 = vmatprep.subr.bf16.mxu0 0
      %2426 = vmatpush1.bf16.msra.mxu0 0
      %2427 = vmatprep.subr.bf16.mxu0 0
      %2428 = vmatpush1.bf16.msra.mxu0 0
      %2429 = vmatprep.subr.bf16.mxu0 0
      %2430 = vmatpush1.bf16.msra.mxu0 0
      %2431 = vmatprep.subr.bf16.mxu0 0
      %2432 = vmatpush1.bf16.msra.mxu0 0
      %2433 = vmatprep.subr.bf16.mxu0 0
      %2434 = vmatpush1.bf16.msra.mxu0 0
      %2435 = vmatprep.mubr.bf16.mxu0 0
      %2436 = vmatmul.mubr.bf16.gmra.mrb[0].mxu0 %v2374
      %v2437 = vpop.f32.mrb[0].mxu0
      %v2438 = vadd.f32 0.0, %v2437
      %v2439 = vpop.f32.mrb[0].mxu0
      %v2440 = vpop.f32.mrb[0].mxu0
      %v2441 = vadd.f32 0.0, %v2440
      %v2442 = vpop.f32.mrb[0].mxu0
      %2443 = vmatprep.mubr.bf16.mxu0 0
      %2444 = vmatmul.mubr.bf16.gmra.mrb[0].mxu0 %v2377
      %v2445 = vpop.f32.mrb[0].mxu0
      %v2446 = vadd.f32 0.0, %v2445
      %v2447 = vpop.f32.mrb[0].mxu0
      %v2448 = vpop.f32.mrb[0].mxu0
      %v2449 = vadd.f32 0.0, %v2448
      %v2450 = vpop.f32.mrb[0].mxu0
      %2451 = vmatprep.mubr.bf16.mxu0 0
      %2452 = vmatmul.mubr.bf16.gmra.mrb[0].mxu0 %v2380
      %v2453 = vpop.f32.mrb[0].mxu0
      %v2454 = vadd.f32 0.0, %v2453
      %v2455 = vpop.f32.mrb[0].mxu0
      %v2456 = vpop.f32.mrb[0].mxu0
      %v2457 = vadd.f32 0.0, %v2456
      %v2458 = vpop.f32.mrb[0].mxu0
      %2459 = vmatprep.mubr.bf16.mxu0 0
      %2460 = vmatmul.mubr.bf16.gmra.mrb[0].mxu0 %v2383
      %v2461 = vpop.f32.mrb[0].mxu0
      %v2462 = vadd.f32 0.0, %v2461
      %v2463 = vpop.f32.mrb[0].mxu0
      %v2464 = vpop.f32.mrb[0].mxu0
      %v2465 = vadd.f32 0.0, %v2464
      %v2466 = vpop.f32.mrb[0].mxu0
      %2467 = vmatprep.mubr.bf16.mxu0 0
      %2468 = vmatmul.mubr.bf16.gmra.mrb[0].mxu0 %v2386
      %v2469 = vpop.f32.mrb[0].mxu0
      %v2470 = vadd.f32 0.0, %v2469
      %v2471 = vpop.f32.mrb[0].mxu0
      %v2472 = vpop.f32.mrb[0].mxu0
      %v2473 = vadd.f32 0.0, %v2472
      %v2474 = vpop.f32.mrb[0].mxu0
      %2475 = vmatprep.mubr.bf16.mxu0 0
      %2476 = vmatmul.mubr.bf16.gmra.mrb[0].mxu0 %v2389
      %v2477 = vpop.f32.mrb[0].mxu0
      %v2478 = vadd.f32 0.0, %v2477
      %v2479 = vpop.f32.mrb[0].mxu0
      %v2480 = vpop.f32.mrb[0].mxu0
      %v2481 = vadd.f32 0.0, %v2480
      %v2482 = vpop.f32.mrb[0].mxu0
      %2483 = vmatprep.mubr.bf16.mxu0 0
      %2484 = vmatmul.mubr.bf16.gmra.mrb[0].mxu0 %v2392
      %v2485 = vpop.f32.mrb[0].mxu0
      %v2486 = vadd.f32 0.0, %v2485
      %v2487 = vpop.f32.mrb[0].mxu0
      %v2488 = vpop.f32.mrb[0].mxu0
      %v2489 = vadd.f32 0.0, %v2488
      %v2490 = vpop.f32.mrb[0].mxu0
      %2491 = vmatprep.mubr.bf16.mxu0 0
      %2492 = vmatmul.mubr.bf16.gmra.mrb[0].mxu0 %v2395
      %v2493 = vpop.f32.mrb[0].mxu0
      %v2494 = vadd.f32 0.0, %v2493
      %v2495 = vpop.f32.mrb[0].mxu0
      %v2496 = vpop.f32.mrb[0].mxu0
      %v2497 = vadd.f32 0.0, %v2496
      %v2498 = vpop.f32.mrb[0].mxu0
      %2499 = vmatprep.mubr.bf16.mxu0 0
      %2500 = vmatmul.mubr.bf16.gmra.mrb[0].mxu0 %v2398
      %v2501 = vpop.f32.mrb[0].mxu0
      %v2502 = vadd.f32 0.0, %v2501
      %v2503 = vpop.f32.mrb[0].mxu0
      %v2504 = vpop.f32.mrb[0].mxu0
      %v2505 = vadd.f32 0.0, %v2504
      %v2506 = vpop.f32.mrb[0].mxu0
      %2507 = vdwg.mxu0
      %v2508 = vadd.f32 %v2326, %v2438
      %v2509 = vadd.f32 %v2327, %v2441
      %v2510 = vadd.f32 %v2328, %v2446
      %v2511 = vadd.f32 %v2329, %v2449
      %v2512 = vadd.f32 %v2330, %v2454
      %v2513 = vadd.f32 %v2331, %v2457
      %v2514 = vadd.f32 %v2332, %v2462
      %v2515 = vadd.f32 %v2333, %v2465
      %v2516 = vadd.f32 %v2334, %v2470
      %v2517 = vadd.f32 %v2335, %v2473
      %v2518 = vadd.f32 %v2336, %v2478
      %v2519 = vadd.f32 %v2337, %v2481
      %v2520 = vadd.f32 %v2338, %v2486
      %v2521 = vadd.f32 %v2339, %v2489
      %v2522 = vadd.f32 %v2340, %v2494
      %v2523 = vadd.f32 %v2341, %v2497
      %v2524 = vadd.f32 %v2342, %v2502
      %v2525 = vadd.f32 %v2343, %v2505
      %v2526 = vld [vmem:[%s6] sm:$0x1]
      %v2528 = vlaneseq
      %v2529 = vshrl.u32 %v2528, 7
      %v2530 = vsub.s32 0, %v2529
      %v2531 = vrot.slane %v2526, %v2530
      %v2533 = vmul.f32 %v2508, %v2531
      %v2534 = vmul.f32 %v2509, %v2531
      %v2535 = vmul.f32 %v2510, %v2531
      %v2536 = vmul.f32 %v2511, %v2531
      %v2537 = vmul.f32 %v2512, %v2531
      %v2538 = vmul.f32 %v2513, %v2531
      %v2539 = vmul.f32 %v2514, %v2531
      %v2540 = vmul.f32 %v2515, %v2531
      %v2541 = vmul.f32 %v2516, %v2531
      %v2542 = vmul.f32 %v2517, %v2531
      %v2543 = vmul.f32 %v2518, %v2531
      %v2544 = vmul.f32 %v2519, %v2531
      %v2545 = vmul.f32 %v2520, %v2531
      %v2546 = vmul.f32 %v2521, %v2531
      %v2547 = vmul.f32 %v2522, %v2531
      %v2548 = vmul.f32 %v2523, %v2531
      %v2549 = vmul.f32 %v2524, %v2531
      %v2550 = vmul.f32 %v2525, %v2531
      %v2551 = vld [vmem:[%s7] sm:$0x1]
      %v2553 = vlaneseq
      %v2554 = vshrl.u32 %v2553, 7
      %v2555 = vsub.s32 0, %v2554
      %v2556 = vrot.slane %v2551, %v2555
      %v2558 = vadd.f32 %v2533, %v2556
      %v2559 = vadd.f32 %v2534, %v2556
      %v2560 = vadd.f32 %v2535, %v2556
      %v2561 = vadd.f32 %v2536, %v2556
      %v2562 = vadd.f32 %v2537, %v2556
      %v2563 = vadd.f32 %v2538, %v2556
      %v2564 = vadd.f32 %v2539, %v2556
      %v2565 = vadd.f32 %v2540, %v2556
      %v2566 = vadd.f32 %v2541, %v2556
      %v2567 = vadd.f32 %v2542, %v2556
      %v2568 = vadd.f32 %v2543, %v2556
      %v2569 = vadd.f32 %v2544, %v2556
      %v2570 = vadd.f32 %v2545, %v2556
      %v2571 = vadd.f32 %v2546, %v2556
      %v2572 = vadd.f32 %v2547, %v2556
      %v2573 = vadd.f32 %v2548, %v2556
      %v2574 = vadd.f32 %v2549, %v2556
      %v2575 = vadd.f32 %v2550, %v2556
      %v2576 = vmax.f32 %v2558, 0.0
      %v2577 = vmax.f32 %v2559, 0.0
      %v2578 = vmax.f32 %v2560, 0.0
      %v2579 = vmax.f32 %v2561, 0.0
      %v2580 = vmax.f32 %v2562, 0.0
      %v2581 = vmax.f32 %v2563, 0.0
      %v2582 = vmax.f32 %v2564, 0.0
      %v2583 = vmax.f32 %v2565, 0.0
      %v2584 = vmax.f32 %v2566, 0.0
      %v2585 = vmax.f32 %v2567, 0.0
      %v2586 = vmax.f32 %v2568, 0.0
      %v2587 = vmax.f32 %v2569, 0.0
      %v2588 = vmax.f32 %v2570, 0.0
      %v2589 = vmax.f32 %v2571, 0.0
      %v2590 = vmax.f32 %v2572, 0.0
      %v2591 = vmax.f32 %v2573, 0.0
      %v2592 = vmax.f32 %v2574, 0.0
      %v2593 = vmax.f32 %v2575, 0.0
      %v2594 = vpack.c.bf16 %v2577, %v2576
      %v2595 = vpack.c.bf16 %v2579, %v2578
      %v2596 = vpack.c.bf16 %v2581, %v2580
      %v2597 = vpack.c.bf16 %v2583, %v2582
      %v2598 = vpack.c.bf16 %v2585, %v2584
      %v2599 = vpack.c.bf16 %v2587, %v2586
      %v2600 = vpack.c.bf16 %v2589, %v2588
      %v2601 = vpack.c.bf16 %v2591, %v2590
      %v2602 = vpack.c.bf16 %v2593, %v2592
      %v2603 = vld [vmem:[%s8] sm:$0x3]
      %v2605 = vsel %vm899, %v2594, 0
      %v2608 = vsel %vm899, %v2595, 0
      %v2611 = vsel %vm899, %v2596, 0
      %v2614 = vsel %vm899, %v2597, 0
      %v2617 = vsel %vm899, %v2598, 0
      %v2620 = vsel %vm899, %v2599, 0
      %v2623 = vsel %vm899, %v2600, 0
      %v2626 = vsel %vm899, %v2601, 0
      %v2629 = vsel %vm899, %v2602, 0
      %v2632 = vsel %vm1008, %v2603, 0
      %2634 = vmatprep.subr.bf16.mxu0 0
      %2635 = vmatpush1.bf16.msra.mxu0 %v2632
      %2636 = vmatprep.subr.bf16.mxu0 0
      %2637 = vmatpush1.bf16.msra.mxu0 0
      %2638 = vmatprep.subr.bf16.mxu0 0
      %2639 = vmatpush1.bf16.msra.mxu0 0
      %2640 = vmatprep.subr.bf16.mxu0 0
      %2641 = vmatpush1.bf16.msra.mxu0 0
      %2642 = vmatprep.subr.bf16.mxu0 0
      %2643 = vmatpush1.bf16.msra.mxu0 0
      %2644 = vmatprep.subr.bf16.mxu0 0
      %2645 = vmatpush1.bf16.msra.mxu0 0
      %2646 = vmatprep.subr.bf16.mxu0 0
      %2647 = vmatpush1.bf16.msra.mxu0 0
      %2648 = vmatprep.subr.bf16.mxu0 0
      %2649 = vmatpush1.bf16.msra.mxu0 0
      %2650 = vmatprep.subr.bf16.mxu0 0
      %2651 = vmatpush1.bf16.msra.mxu0 0
      %2652 = vmatprep.subr.bf16.mxu0 0
      %2653 = vmatpush1.bf16.msra.mxu0 0
      %2654 = vmatprep.subr.bf16.mxu0 0
      %2655 = vmatpush1.bf16.msra.mxu0 0
      %2656 = vmatprep.subr.bf16.mxu0 0
      %2657 = vmatpush1.bf16.msra.mxu0 0
      %2658 = vmatprep.subr.bf16.mxu0 0
      %2659 = vmatpush1.bf16.msra.mxu0 0
      %2660 = vmatprep.subr.bf16.mxu0 0
      %2661 = vmatpush1.bf16.msra.mxu0 0
      %2662 = vmatprep.subr.bf16.mxu0 0
      %2663 = vmatpush1.bf16.msra.mxu0 0
      %2664 = vmatprep.subr.bf16.mxu0 0
      %2665 = vmatpush1.bf16.msra.mxu0 0
      %2666 = vmatprep.mubr.bf16.mxu0 0
      %2667 = vmatmul.mubr.bf16.gmra.mrb[0].mxu0 %v2605
      %v2668 = vpop.f32.mrb[0].mxu0
      %v2669 = vadd.f32 0.0, %v2668
      %v2670 = vpop.f32.mrb[0].mxu0
      %v2671 = vpop.f32.mrb[0].mxu0
      %v2672 = vadd.f32 0.0, %v2671
      %v2673 = vpop.f32.mrb[0].mxu0
      %2674 = vmatprep.mubr.bf16.mxu0 0
      %2675 = vmatmul.mubr.bf16.gmra.mrb[0].mxu0 %v2608
      %v2676 = vpop.f32.mrb[0].mxu0
      %v2677 = vadd.f32 0.0, %v2676
      %v2678 = vpop.f32.mrb[0].mxu0
      %v2679 = vpop.f32.mrb[0].mxu0
      %v2680 = vadd.f32 0.0, %v2679
      %v2681 = vpop.f32.mrb[0].mxu0
      %2682 = vmatprep.mubr.bf16.mxu0 0
      %2683 = vmatmul.mubr.bf16.gmra.mrb[0].mxu0 %v2611
      %v2684 = vpop.f32.mrb[0].mxu0
      %v2685 = vadd.f32 0.0, %v2684
      %v2686 = vpop.f32.mrb[0].mxu0
      %v2687 = vpop.f32.mrb[0].mxu0
      %v2688 = vadd.f32 0.0, %v2687
      %v2689 = vpop.f32.mrb[0].mxu0
      %2690 = vmatprep.mubr.bf16.mxu0 0
      %2691 = vmatmul.mubr.bf16.gmra.mrb[0].mxu0 %v2614
      %v2692 = vpop.f32.mrb[0].mxu0
      %v2693 = vadd.f32 0.0, %v2692
      %v2694 = vpop.f32.mrb[0].mxu0
      %v2695 = vpop.f32.mrb[0].mxu0
      %v2696 = vadd.f32 0.0, %v2695
      %v2697 = vpop.f32.mrb[0].mxu0
      %2698 = vmatprep.mubr.bf16.mxu0 0
      %2699 = vmatmul.mubr.bf16.gmra.mrb[0].mxu0 %v2617
      %v2700 = vpop.f32.mrb[0].mxu0
      %v2701 = vadd.f32 0.0, %v2700
      %v2702 = vpop.f32.mrb[0].mxu0
      %v2703 = vpop.f32.mrb[0].mxu0
      %v2704 = vadd.f32 0.0, %v2703
      %v2705 = vpop.f32.mrb[0].mxu0
      %2706 = vmatprep.mubr.bf16.mxu0 0
      %2707 = vmatmul.mubr.bf16.gmra.mrb[0].mxu0 %v2620
      %v2708 = vpop.f32.mrb[0].mxu0
      %v2709 = vadd.f32 0.0, %v2708
      %v2710 = vpop.f32.mrb[0].mxu0
      %v2711 = vpop.f32.mrb[0].mxu0
      %v2712 = vadd.f32 0.0, %v2711
      %v2713 = vpop.f32.mrb[0].mxu0
      %2714 = vmatprep.mubr.bf16.mxu0 0
      %2715 = vmatmul.mubr.bf16.gmra.mrb[0].mxu0 %v2623
      %v2716 = vpop.f32.mrb[0].mxu0
      %v2717 = vadd.f32 0.0, %v2716
      %v2718 = vpop.f32.mrb[0].mxu0
      %v2719 = vpop.f32.mrb[0].mxu0
      %v2720 = vadd.f32 0.0, %v2719
      %v2721 = vpop.f32.mrb[0].mxu0
      %2722 = vmatprep.mubr.bf16.mxu0 0
      %2723 = vmatmul.mubr.bf16.gmra.mrb[0].mxu0 %v2626
      %v2724 = vpop.f32.mrb[0].mxu0
      %v2725 = vadd.f32 0.0, %v2724
      %v2726 = vpop.f32.mrb[0].mxu0
      %v2727 = vpop.f32.mrb[0].mxu0
      %v2728 = vadd.f32 0.0, %v2727
      %v2729 = vpop.f32.mrb[0].mxu0
      %2730 = vmatprep.mubr.bf16.mxu0 0
      %2731 = vmatmul.mubr.bf16.gmra.mrb[0].mxu0 %v2629
      %v2732 = vpop.f32.mrb[0].mxu0
      %v2733 = vadd.f32 0.0, %v2732
      %v2734 = vpop.f32.mrb[0].mxu0
      %v2735 = vpop.f32.mrb[0].mxu0
      %v2736 = vadd.f32 0.0, %v2735
      %v2737 = vpop.f32.mrb[0].mxu0
      %2738 = vdwg.mxu0
      %v2739 = vld [vmem:[%s9] sm:$0x1]
      %v2741 = vlaneseq
      %v2742 = vshrl.u32 %v2741, 7
      %v2743 = vsub.s32 0, %v2742
      %v2744 = vrot.slane %v2739, %v2743
      %v2746 = vmul.f32 %v2669, %v2744
      %v2747 = vmul.f32 %v2672, %v2744
      %v2748 = vmul.f32 %v2677, %v2744
      %v2749 = vmul.f32 %v2680, %v2744
      %v2750 = vmul.f32 %v2685, %v2744
      %v2751 = vmul.f32 %v2688, %v2744
      %v2752 = vmul.f32 %v2693, %v2744
      %v2753 = vmul.f32 %v2696, %v2744
      %v2754 = vmul.f32 %v2701, %v2744
      %v2755 = vmul.f32 %v2704, %v2744
      %v2756 = vmul.f32 %v2709, %v2744
      %v2757 = vmul.f32 %v2712, %v2744
      %v2758 = vmul.f32 %v2717, %v2744
      %v2759 = vmul.f32 %v2720, %v2744
      %v2760 = vmul.f32 %v2725, %v2744
      %v2761 = vmul.f32 %v2728, %v2744
      %v2762 = vmul.f32 %v2733, %v2744
      %v2763 = vmul.f32 %v2736, %v2744
      %v2764 = vld [vmem:[%s10] sm:$0x1]
      %v2766 = vlaneseq
      %v2767 = vshrl.u32 %v2766, 7
      %v2768 = vsub.s32 0, %v2767
      %v2769 = vrot.slane %v2764, %v2768
      %v2771 = vadd.f32 %v2746, %v2769
      %v2772 = vadd.f32 %v2747, %v2769
      %v2773 = vadd.f32 %v2748, %v2769
      %v2774 = vadd.f32 %v2749, %v2769
      %v2775 = vadd.f32 %v2750, %v2769
      %v2776 = vadd.f32 %v2751, %v2769
      %v2777 = vadd.f32 %v2752, %v2769
      %v2778 = vadd.f32 %v2753, %v2769
      %v2779 = vadd.f32 %v2754, %v2769
      %v2780 = vadd.f32 %v2755, %v2769
      %v2781 = vadd.f32 %v2756, %v2769
      %v2782 = vadd.f32 %v2757, %v2769
      %v2783 = vadd.f32 %v2758, %v2769
      %v2784 = vadd.f32 %v2759, %v2769
      %v2785 = vadd.f32 %v2760, %v2769
      %v2786 = vadd.f32 %v2761, %v2769
      %v2787 = vadd.f32 %v2762, %v2769
      %v2788 = vadd.f32 %v2763, %v2769
      %vm2808 = vcmask 1045504
      %v2809 = vrot.slane %v446, 2
      %v2810 = vrot.slane %v447, 2
      %v2811 = vsel %vm2808, %v2809, %v2810
      %v2812 = vrot.slane %v448, 2
      %v2813 = vsel %vm2808, %v2810, %v2812
      %v2814 = vrot.slane %v449, 2
      %v2815 = vsel %vm2808, %v2812, %v2814
      %v2816 = vrot.slane %v450, 2
      %v2817 = vsel %vm2808, %v2814, %v2816
      %v2818 = vrot.slane %v451, 2
      %v2819 = vsel %vm2808, %v2816, %v2818
      %v2820 = vrot.slane %v452, 2
      %v2821 = vsel %vm2808, %v2818, %v2820
      %v2822 = vrot.slane %v453, 2
      %v2823 = vsel %vm2808, %v2820, %v2822
      %v2824 = vrot.slane %v454, 2
      %v2825 = vsel %vm2808, %v2822, %v2824
      %v2826 = vrot.slane %v455, 2
      %v2827 = vsel %vm2808, %v2824, %v2826
      %v2828 = vrot.slane %v456, 2
      %v2829 = vsel %vm2808, %v2826, %v2828
      %v2830 = vrot.slane %v457, 2
      %v2831 = vsel %vm2808, %v2828, %v2830
      %v2832 = vrot.slane %v458, 2
      %v2833 = vsel %vm2808, %v2830, %v2832
      %v2834 = vrot.slane %v459, 2
      %v2835 = vsel %vm2808, %v2832, %v2834
      %v2836 = vrot.slane %v460, 2
      %v2837 = vsel %vm2808, %v2834, %v2836
      %v2838 = vrot.slane %v461, 2
      %v2839 = vsel %vm2808, %v2836, %v2838
      %v2840 = vrot.slane %v462, 2
      %v2841 = vsel %vm2808, %v2838, %v2840
      %v2842 = vrot.slane %v463, 2
      %v2843 = vsel %vm2808, %v2840, %v2842
      %v2844 = vrot.slane %v464, 2
      %v2845 = vsel %vm2808, %v2842, %v2844
      %v2864 = vadd.f32 %v2771, %v2811
      %v2865 = vadd.f32 %v2772, %v2813
      %v2866 = vadd.f32 %v2773, %v2815
      %v2867 = vadd.f32 %v2774, %v2817
      %v2868 = vadd.f32 %v2775, %v2819
      %v2869 = vadd.f32 %v2776, %v2821
      %v2870 = vadd.f32 %v2777, %v2823
      %v2871 = vadd.f32 %v2778, %v2825
      %v2872 = vadd.f32 %v2779, %v2827
      %v2873 = vadd.f32 %v2780, %v2829
      %v2874 = vadd.f32 %v2781, %v2831
      %v2875 = vadd.f32 %v2782, %v2833
      %v2876 = vadd.f32 %v2783, %v2835
      %v2877 = vadd.f32 %v2784, %v2837
      %v2878 = vadd.f32 %v2785, %v2839
      %v2879 = vadd.f32 %v2786, %v2841
      %v2880 = vadd.f32 %v2787, %v2843
      %v2881 = vadd.f32 %v2788, %v2845
      %v2882 = vmax.f32 %v2864, 0.0
      %v2883 = vmax.f32 %v2865, 0.0
      %v2884 = vmax.f32 %v2866, 0.0
      %v2885 = vmax.f32 %v2867, 0.0
      %v2886 = vmax.f32 %v2868, 0.0
      %v2887 = vmax.f32 %v2869, 0.0
      %v2888 = vmax.f32 %v2870, 0.0
      %v2889 = vmax.f32 %v2871, 0.0
      %v2890 = vmax.f32 %v2872, 0.0
      %v2891 = vmax.f32 %v2873, 0.0
      %v2892 = vmax.f32 %v2874, 0.0
      %v2893 = vmax.f32 %v2875, 0.0
      %v2894 = vmax.f32 %v2876, 0.0
      %v2895 = vmax.f32 %v2877, 0.0
      %v2896 = vmax.f32 %v2878, 0.0
      %v2897 = vmax.f32 %v2879, 0.0
      %v2898 = vmax.f32 %v2880, 0.0
      %v2899 = vmax.f32 %v2881, 0.0
      %2900 = vst.msk [vmem:[%s442] sm:$0xff] %vm487, %v2882
      %2901 = vst.msk [vmem:[%s442 + $0x8] sm:$0xff] %vm487, %v2883
      %2902 = vst.msk [vmem:[%s442 + $0x10] sm:$0xff] %vm487, %v2884
      %2903 = vst.msk [vmem:[%s442 + $0x18] sm:$0xff] %vm487, %v2885
      %2904 = vst.msk [vmem:[%s442 + $0x20] sm:$0xff] %vm487, %v2886
      %2905 = vst.msk [vmem:[%s442 + $0x28] sm:$0xff] %vm487, %v2887
      %2906 = vst.msk [vmem:[%s442 + $0x30] sm:$0xff] %vm487, %v2888
      %2907 = vst.msk [vmem:[%s442 + $0x38] sm:$0xff] %vm487, %v2889
      %2908 = vst.msk [vmem:[%s442 + $0x40] sm:$0xff] %vm487, %v2890
      %2909 = vst.msk [vmem:[%s442 + $0x48] sm:$0xff] %vm487, %v2891
      %2910 = vst.msk [vmem:[%s442 + $0x50] sm:$0xff] %vm487, %v2892
      %2911 = vst.msk [vmem:[%s442 + $0x58] sm:$0xff] %vm487, %v2893
      %2912 = vst.msk [vmem:[%s442 + $0x60] sm:$0xff] %vm487, %v2894
      %2913 = vst.msk [vmem:[%s442 + $0x68] sm:$0xff] %vm487, %v2895
      %2914 = vst.msk [vmem:[%s442 + $0x70] sm:$0xff] %vm487, %v2896
      %2915 = vst.msk [vmem:[%s442 + $0x78] sm:$0xff] %vm487, %v2897
      %2916 = vst.msk [vmem:[%s442 + $0x80] sm:$0xff] %vm487, %v2898
      %2917 = vst.msk [vmem:[%s442 + $0x88] sm:$0xff] %vm487, %v2899
      %p2918 = scmp.lt.s32.totalorder %s26, 1
      %s2919 = scalar_select %p2918, %s26, 1
      %p2920 = scmp.lt.s32.totalorder %s27, 1
      %s2921 = scalar_select %p2920, %s27, 1
      %s2922 = smul.addr %s2921, 18
      %s2923 = smul.addr %s2919, 36
      %s2924 = sadd.s32 %s2922, %s2923
      %s2925 = smul.addr %s2924, 8
      %s2926 = scalar_lea.vmem %s11, %s2925
      // Predicated region
      $region65: #{bottleneck_pallas.1} parent=63 // pred_check
        %p2927 = pneg %p297
      $region66: #{bottleneck_pallas.1} parent=63 // pred_check_branch
        %2929 = sbr.rel (%p2927) target = $region68
      $region67: #{bottleneck_pallas.1} parent=63 // pred_region
        _
      $region68: #{bottleneck_pallas.1} parent=63 // pred_fallthru
        _
    $region64: #{bottleneck_pallas.1} parent=5 // pred_fallthru
      _
    %p2930 = scmp.le.s32.totalorder 2, %s17
    // Predicated region
    $region69: #{bottleneck_pallas.1} parent=5 // pred_check
      %p2931 = pneg %p2930
    $region70: #{bottleneck_pallas.1} parent=5 // pred_check_branch
      %2933 = sbr.rel (%p2931) target = $region72
    $region71: #{bottleneck_pallas.1} parent=5 // pred_region
      %s2934 = ssub.s32 %s17, 2
      // Predicated region
      $region73: #{bottleneck_pallas.1} parent=71 // pred_check
        %p2935 = pneg %p303
      $region74: #{bottleneck_pallas.1} parent=71 // pred_check_branch
        %2937 = sbr.rel (%p2935) target = $region76
      $region75: #{bottleneck_pallas.1} parent=71 // pred_region
        %p2938 = scmp.lt.s32.totalorder %s28, 1
        %s2939 = scalar_select %p2938, %s28, 1
        %p2940 = scmp.lt.s32.totalorder %s29, 1
        %s2941 = scalar_select %p2940, %s29, 1
        %s2942 = smul.addr %s2941, 18
        %s2943 = smul.addr %s2939, 36
        %s2944 = sadd.s32 %s2942, %s2943
        %s2945 = smul.addr %s2944, 8
        %s2946 = scalar_lea.vmem %s11, %s2945
      $region76: #{bottleneck_pallas.1} parent=71 // pred_fallthru
        _
    $region72: #{bottleneck_pallas.1} parent=5 // pred_fallthru
      _
  $region6: #{bottleneck_pallas.1} parent=0 // loop_footer
    %s21 = sadd.s32 1, %s17
  $region7: #{bottleneck_pallas.1} parent=0 // loop_footer_branch
    %16 = sbr.rel target = $region3
  $region8: #{bottleneck_pallas.1} parent=0 // loop_exit
    _

</llo_original>
